<compile_context>
chip_gen: v5e
topology: v5e:2x2
jax: 0.10.0
libtpu: 0.0.40
codegen_flags: <defaults>
</compile_context>

<pallas_src>
import functools

import numpy as np
import jax
import jax.numpy as jnp
from jax.experimental import pallas as pl
from jax.experimental.pallas import tpu as pltpu


# ---------------------------------------------------------------------------
# In-script darknet cfg (replaces parse_cfg(cfgfile); no file I/O).
# Exercises: conv(+BN+leaky), conv(bias,linear), shortcut, route (1 and 2
# layers), upsample, and two yolo heads that get concatenated.
# ---------------------------------------------------------------------------
CFG = """
[net]
height=16
width=16
channels=3

[convolutional]
batch_normalize=1
filters=8
size=3
stride=1
pad=1
activation=leaky

[convolutional]
batch_normalize=1
filters=16
size=3
stride=2
pad=1
activation=leaky

[convolutional]
batch_normalize=1
filters=16
size=3
stride=1
pad=1
activation=leaky

[shortcut]
from=-2
activation=linear

[convolutional]
filters=21
size=1
stride=1
pad=1
activation=linear

[yolo]
mask=0,1,2
anchors=10,13,16,30,33,23
classes=2

[route]
layers=-3

[upsample]
stride=2

[route]
layers=-1,-8

[convolutional]
filters=21
size=1
stride=1
pad=1
activation=linear

[yolo]
mask=0,1,2
anchors=10,13,16,30,33,23
classes=2
"""


def parse_cfg_string(cfg):
    lines = [l.strip() for l in cfg.split("\n")]
    lines = [l for l in lines if len(l) > 0 and l[0] != "#"]
    block, blocks = {}, []
    for line in lines:
        if line[0] == "[":
            if block:
                blocks.append(block)
                block = {}
            block["type"] = line[1:-1].strip()
        else:
            k, v = line.split("=")
            block[k.strip()] = v.strip()
    blocks.append(block)
    return blocks


# ---------------------------------------------------------------------------
# Constants / helpers
# ---------------------------------------------------------------------------
LANE = 128          # TPU lane width; conv output channels are padded to this.
BN_EPS = 1e-5       # nn.BatchNorm2d default.
LEAKY_SLOPE = 0.1   # nn.LeakyReLU(0.1).

_VMEM_SPEC = pl.BlockSpec(memory_space=pltpu.MemorySpace.VMEM)

# Grid-tiled conv calls: one M-axis marked "parallel" (v7x megacore shards the
# tiles across its 2 TensorCores); 32 MiB scoped VMEM is safe on v5e/v6e/v7x.
_CONV_CP = pltpu.CompilerParams(
    dimension_semantics=("parallel",),
    vmem_limit_bytes=32 * 1024 * 1024,
)

# Fully-fused BN conv is used when patches + weights + 2x output fit here
# (keeps the no-grid call well under the 32 MiB scoped cap on every gen).
_FUSE_VMEM_BYTES = 12 * 1024 * 1024

# Bounded double-buffered (patches tile + output tile) budget for the tiled
# path -- keeps tiles small enough for v7x's 64 MiB physical VMEM at scale.
_TILE_PAIR_BYTES = 8 * 1024 * 1024


def _round_up(x, m):
    return ((x + m - 1) // m) * m


def _pick_tm(M, K, Fp):
    """Bounded M-tile: prefer >=2 grid steps (v7x megacore), sublane aligned,
    and keep the double-buffered (patches + output) tile pair under budget."""
    cands = [tm for tm in (512, 256, 128, 64, 32, 16, 8)
             if 2 * 4 * tm * (K + Fp) <= _TILE_PAIR_BYTES]
    if not cands:
        cands = [8]
    for tm in cands:
        if M % tm == 0 and M // tm >= 2:
            return tm
    for tm in cands:
        if tm <= _round_up(M, 8):
            return tm
    return cands[-1]


# ---------------------------------------------------------------------------
# Pallas kernels
# ---------------------------------------------------------------------------
def conv_bn_act_fused_kernel(p_ref, w_ref, gamma_ref, beta_ref, o_ref, *,
                             leaky, inv_m):
    """Fully fused conv + training-mode BatchNorm + LeakyReLU (one HBM pass).

    p_ref: (M, K) im2col patches     w_ref: (K, Fp) weights
    gamma_ref/beta_ref: (1, Fp)      o_ref: (M, Fp) lane-dense output.
    The raw conv output y lives only in VMEM/vregs: matmul -> per-filter
    sum / sum_sq -> global (batch) mean/var -> folded scale/shift -> act.
    """
    y = jnp.dot(p_ref[...], w_ref[...], preferred_element_type=jnp.float32)
    mean = jnp.sum(y, axis=0, keepdims=True) * inv_m                 # (1, Fp)
    var = jnp.maximum(jnp.sum(y * y, axis=0, keepdims=True) * inv_m
                      - mean * mean, 0.0)
    scale = gamma_ref[...] * jax.lax.rsqrt(var + BN_EPS)
    shift = beta_ref[...] - mean * scale
    y = y * scale + shift
    if leaky:
        y = jnp.where(y > 0, y, LEAKY_SLOPE * y)
    o_ref[...] = y


def conv_mm_bias_kernel(p_ref, w_ref, b_ref, o_ref, *, leaky):
    """Tiled im2col-matmul + bias (+ optional LeakyReLU), non-BN convs.

    p_ref: (tm, K)   w_ref: (K, Fp)   b_ref: (1, Fp)   o_ref: (tm, Fp).
    """
    y = jnp.dot(p_ref[...], w_ref[...], preferred_element_type=jnp.float32)
    y = y + b_ref[...]
    if leaky:
        y = jnp.where(y > 0, y, LEAKY_SLOPE * y)
    o_ref[...] = y


def conv_mm_stats_kernel(p_ref, w_ref, y_ref, stats_ref):
    """Two-pass BN fallback, pass 1: tiled matmul + per-tile partial sums.

    y_ref: (tm, Fp) raw conv tile.  stats_ref: (1, 2, Fp), row 0 = sum,
    row 1 = sum of squares over the tile rows (slice stores, no concat).
    """
    y = jnp.dot(p_ref[...], w_ref[...], preferred_element_type=jnp.float32)
    y_ref[...] = y
    stats_ref[:, 0:1, :] = jnp.sum(y, axis=0, keepdims=True)[None]
    stats_ref[:, 1:2, :] = jnp.sum(y * y, axis=0, keepdims=True)[None]


def bn_affine_act_kernel(y_ref, stats_ref, gamma_ref, beta_ref, o_ref, *,
                         leaky, inv_m):
    """Two-pass BN fallback, pass 2: fold partial stats -> scale/shift INSIDE
    the kernel (stats_ref is the whole (Mt, 2, Fp) array, un-blocked), then
    affine + activation.  The redundant per-tile fold is a few VPU/XLU ops
    hidden under the mem-bound affine pass; no JAX glue between the calls."""
    tot = jnp.sum(stats_ref[...], axis=0)                            # (2, Fp)
    mean = tot[0:1] * inv_m                                          # (1, Fp)
    var = jnp.maximum(tot[1:2] * inv_m - mean * mean, 0.0)
    scale = gamma_ref[...] * jax.lax.rsqrt(var + BN_EPS)
    shift = beta_ref[...] - mean * scale
    y = y_ref[...] * scale + shift
    if leaky:
        y = jnp.where(y > 0, y, LEAKY_SLOPE * y)
    o_ref[...] = y


def yolo_kernel(p_ref, mul_ref, add_ref, o_ref):
    """predict_transform elementwise math on a lane-dense (N, bbox, L) layout.

    rows 0,1 : sigmoid(p) * stride + grid_offset * stride
    rows 2,3 : exp(p) * anchor
    rows 4.. : sigmoid(p)
    Encoded as f(p) * mul + add with a per-row (sublane) select, so there is a
    single unmasked lane-dense store and no sublane concatenate.  Sigmoid is
    exact (matches torch.sigmoid; the 2 extra exp rows ride the EUP slot).
    """
    p = p_ref[...]
    row = jax.lax.broadcasted_iota(jnp.int32, p.shape, 1)
    is_wh = jnp.logical_and(row >= 2, row < 4)
    sig = 1.0 / (1.0 + jnp.exp(-p))
    t = jnp.where(is_wh, jnp.exp(p), sig)
    o_ref[...] = t * mul_ref[...] + add_ref[...]


# ---------------------------------------------------------------------------
# Layer wrappers (JAX glue: im2col, reshapes, parameter plumbing)
# ---------------------------------------------------------------------------
def im2col_nhwc(x, k, stride, pad):
    """x: (N, H, W, C) -> patches (N*OH*OW, k*k*C), feature order (i, j, c)."""
    # TODO(synk): move patch formation into the conv kernel (tap-axis grid with
    # shifted BlockSpec windows + VMEM accumulator) to avoid the k^2 HBM
    # blow-up of im2col at scaled-up resolutions.
    N, H, W, C = x.shape
    xp = jnp.pad(x, ((0, 0), (pad, pad), (pad, pad), (0, 0)))
    OH = (H + 2 * pad - k) // stride + 1
    OW = (W + 2 * pad - k) // stride + 1
    cols = []
    for i in range(k):
        for j in range(k):
            cols.append(xp[:, i:i + stride * OH:stride, j:j + stride * OW:stride, :])
    patches = jnp.concatenate(cols, axis=-1)            # (N, OH, OW, k*k*C)
    return patches.reshape(N * OH * OW, k * k * C), OH, OW


def conv_layer(x, p, ksize, stride, pad, use_bn, leaky):
    """x: NHWC. Conv (+ training-mode BN) (+ LeakyReLU). Returns NHWC."""
    N = x.shape[0]
    F, Fp = p["F"], p["Fp"]

    if ksize == 1 and stride == 1:
        # 1x1 conv: no im2col needed (no pad/slice/concat glue).
        _, OH, OW, C = x.shape
        patches = x.reshape(N * OH * OW, C)
    else:
        patches, OH, OW = im2col_nhwc(x, ksize, stride, pad)
    M, K = patches.shape

    if use_bn and 4 * (M * K + K * Fp + 2 * M * Fp) <= _FUSE_VMEM_BYTES:
        # One fused pallas_call: the dominant tensor (y) never hits HBM.
        out = pl.pallas_call(
            functools.partial(conv_bn_act_fused_kernel, leaky=leaky,
                              inv_m=1.0 / M),
            out_shape=jax.ShapeDtypeStruct((M, Fp), jnp.float32),
            in_specs=[_VMEM_SPEC] * 4,
            out_specs=_VMEM_SPEC,
        )(patches, p["w2d"], p["gamma"], p["beta"])
        return out.reshape(N, OH, OW, Fp)[..., :F]

    # ---- grid-tiled paths (bounded M tiles; cdiv + zero-row padding) -------
    tm = _pick_tm(M, K, Fp)
    Mp = _round_up(M, tm)
    if Mp != M:
        patches = jnp.pad(patches, ((0, Mp - M), (0, 0)))
    Mt = Mp // tm
    mm_in_specs = [
        pl.BlockSpec((tm, K), lambda i: (i, 0)),
        pl.BlockSpec((K, Fp), lambda i: (0, 0)),
    ]

    if use_bn:
        # Two-pass fallback for conv outputs too large to hold in VMEM.
        # Zero-padded rows contribute nothing to the sums; inv_m uses true M.
        y, stats = pl.pallas_call(
            conv_mm_stats_kernel,
            grid=(Mt,),
            in_specs=mm_in_specs,
            out_specs=(
                pl.BlockSpec((tm, Fp), lambda i: (i, 0)),
                pl.BlockSpec((1, 2, Fp), lambda i: (i, 0, 0)),
            ),
            out_shape=(
                jax.ShapeDtypeStruct((Mp, Fp), jnp.float32),
                jax.ShapeDtypeStruct((Mt, 2, Fp), jnp.float32),
            ),
            compiler_params=_CONV_CP,
        )(patches, p["w2d"])

        out = pl.pallas_call(
            functools.partial(bn_affine_act_kernel, leaky=leaky,
                              inv_m=1.0 / M),
            grid=(Mt,),
            in_specs=[
                pl.BlockSpec((tm, Fp), lambda i: (i, 0)),
                pl.BlockSpec((Mt, 2, Fp), lambda i: (0, 0, 0)),   # whole array
                pl.BlockSpec((1, Fp), lambda i: (0, 0)),
                pl.BlockSpec((1, Fp), lambda i: (0, 0)),
            ],
            out_specs=pl.BlockSpec((tm, Fp), lambda i: (i, 0)),
            out_shape=jax.ShapeDtypeStruct((Mp, Fp), jnp.float32),
            compiler_params=_CONV_CP,
        )(y, stats, p["gamma"], p["beta"])
    else:
        # Single fused pass: matmul + bias + optional activation.
        out = pl.pallas_call(
            functools.partial(conv_mm_bias_kernel, leaky=leaky),
            grid=(Mt,),
            in_specs=mm_in_specs + [pl.BlockSpec((1, Fp), lambda i: (0, 0))],
            out_specs=pl.BlockSpec((tm, Fp), lambda i: (i, 0)),
            out_shape=jax.ShapeDtypeStruct((Mp, Fp), jnp.float32),
            compiler_params=_CONV_CP,
        )(patches, p["w2d"], p["bias"])

    return out[:M].reshape(N, OH, OW, Fp)[..., :F]


def upsample_bilinear_x2(x):
    # TODO(synk): nn.Upsample(scale_factor=2, mode='bilinear', align_corners=False)
    # kept in plain JAX: interleave/gather glue with negligible FLOPs.
    # Half-pixel stencil:  out[2k] = 0.25*x[k-1] + 0.75*x[k]
    #                      out[2k+1] = 0.75*x[k] + 0.25*x[k+1]   (edge-clamped)
    N, H, W, C = x.shape
    xp = jnp.concatenate([x[:, :1], x[:, :-1]], axis=1)
    xn = jnp.concatenate([x[:, 1:], x[:, -1:]], axis=1)
    r_even = 0.25 * xp + 0.75 * x
    r_odd = 0.75 * x + 0.25 * xn
    rows = jnp.stack([r_even, r_odd], axis=2).reshape(N, 2 * H, W, C)
    cp = jnp.concatenate([rows[:, :, :1], rows[:, :, :-1]], axis=2)
    cn = jnp.concatenate([rows[:, :, 1:], rows[:, :, -1:]], axis=2)
    c_even = 0.25 * cp + 0.75 * rows
    c_odd = 0.75 * rows + 0.25 * cn
    return jnp.stack([c_even, c_odd], axis=3).reshape(N, 2 * H, 2 * W, C)


def _yolo_tables(G, anchors, num_classes, inp_dim):
    """Host-side (numpy) grid-offset / anchor / stride tables -> under jit they
    are baked constants (zero runtime XLA ops).  out = f(p) * mul + add."""
    stride = float(inp_dim // G)
    bbox = 5 + num_classes
    A = len(anchors)
    L = G * G * A
    gx, gy = np.meshgrid(np.arange(G, dtype=np.float32),
                         np.arange(G, dtype=np.float32))      # 'xy' indexing
    x_off = np.repeat(gx.reshape(-1), A)                      # (L,)
    y_off = np.repeat(gy.reshape(-1), A)
    anc = np.asarray(anchors, np.float32)                     # (A, 2)
    aw = np.tile(anc[:, 0], G * G)
    ah = np.tile(anc[:, 1], G * G)
    one = np.ones((L,), np.float32)
    zero = np.zeros((L,), np.float32)
    mul = np.stack([one * stride, one * stride, aw, ah] + [one] * (bbox - 4))[None]
    add = np.stack([x_off * stride, y_off * stride] + [zero] * (bbox - 2))[None]
    return jnp.asarray(mul), jnp.asarray(add), bbox, L


def yolo_head(x, anchors, num_classes, inp_dim):
    """x: NHWC (N, G, G, A*bbox). Returns detections in the lane-dense
    (N, bbox, L) layout; the transpose back to (N, L, bbox) happens once after
    both heads are concatenated (in darknet_forward)."""
    N, G, _, _ = x.shape
    mul, add, bbox, L = _yolo_tables(G, anchors, num_classes, inp_dim)
    # NHWC channel index == a*bbox + b, so this reshape reproduces the torch
    # view/transpose/view; bbox then moves to the sublane axis so the kernel's
    # loads/stores are lane-dense over L = G*G*A.
    pred_t = x.reshape(N, L, bbox).transpose(0, 2, 1)          # (N, bbox, L)
    out_t = pl.pallas_call(
        yolo_kernel,
        out_shape=jax.ShapeDtypeStruct((N, bbox, L), jnp.float32),
        in_specs=[_VMEM_SPEC] * 3,
        out_specs=_VMEM_SPEC,
    )(pred_t, mul, add)
    return out_t                                               # (N, bbox, L)


# ---------------------------------------------------------------------------
# Parameter construction (mirrors create_modules bookkeeping; weight layout,
# transposes and channel padding are hoisted here so they run once) + forward
# ---------------------------------------------------------------------------
def create_params(blocks, key):
    net_info = blocks[0]
    prev_filters = int(net_info.get("channels", 3))
    filters = prev_filters
    output_filters = []
    params = []
    for index, b in enumerate(blocks[1:]):
        p = {}
        if b["type"] == "convolutional":
            bn = int(b.get("batch_normalize", 0))
            filters = int(b["filters"])
            ksize = int(b["size"])
            key, k1, k2, k3 = jax.random.split(key, 4)
            fan_in = prev_filters * ksize * ksize
            w = jax.random.normal(
                k1, (filters, prev_filters, ksize, ksize), jnp.float32) * (fan_in ** -0.5)
            K = prev_filters * ksize * ksize
            Fp = _round_up(filters, LANE)
            # (F, C, kh, kw) -> (kh, kw, C, F) -> (K, F): matches the NHWC
            # im2col feature order ((i*k + j)*C + c). Pad F up to a lane
            # multiple so the conv output is lane-dense (unmasked stores).
            w2d = w.transpose(2, 3, 1, 0).reshape(K, filters)
            p["w2d"] = jnp.pad(w2d, ((0, 0), (0, Fp - filters)))
            p["F"], p["Fp"] = filters, Fp
            if bn:
                gamma = 1.0 + 0.1 * jax.random.normal(k2, (filters,), jnp.float32)
                beta = 0.1 * jax.random.normal(k3, (filters,), jnp.float32)
                p["gamma"] = jnp.pad(gamma, (0, Fp - filters)).reshape(1, Fp)
                p["beta"] = jnp.pad(beta, (0, Fp - filters)).reshape(1, Fp)
            else:
                bias = 0.1 * jax.random.normal(k2, (filters,), jnp.float32)
                p["bias"] = jnp.pad(bias, (0, Fp - filters)).reshape(1, Fp)
        elif b["type"] == "route":
            layers = [int(a) for a in b["layers"].split(",")]
            start = layers[0]
            end = layers[1] if len(layers) > 1 else 0
            if start > 0:
                start -= index
            if end > 0:
                end -= index
            if end < 0:
                filters = output_filters[index + start] + output_filters[index + end]
            else:
                filters = output_filters[index + start]
        # shortcut / upsample / yolo: filters unchanged (same as create_modules)
        params.append(p)
        prev_filters = filters
        output_filters.append(filters)
    return params


def darknet_forward(x_nchw, blocks, params):
    net_info = blocks[0]
    modules = blocks[1:]
    # NHWC end-to-end: one transpose at the model input, none per layer.
    x = jnp.transpose(x_nchw, (0, 2, 3, 1))
    outputs = {}
    det_parts = []      # heads kept in (N, bbox, L); one concat+transpose at end
    for i, m in enumerate(modules):
        t = m["type"]
        if t == "convolutional":
            bn = int(m.get("batch_normalize", 0))
            leaky = m["activation"] == "leaky"
            k = int(m["size"])
            s = int(m["stride"])
            pad = (k - 1) // 2 if int(m["pad"]) else 0
            x = conv_layer(x, params[i], k, s, pad, bool(bn), leaky)
        elif t == "upsample":
            x = upsample_bilinear_x2(x)
        elif t == "route":
            layers = [int(a) for a in m["layers"].split(",")]
            if layers[0] > 0:
                layers[0] -= i
            if len(layers) == 1:
                x = outputs[i + layers[0]]
            else:
                if layers[1] > 0:
                    layers[1] -= i
                x = jnp.concatenate(
                    [outputs[i + layers[0]], outputs[i + layers[1]]], axis=-1)
        elif t == "shortcut":
            frm = int(m["from"])
            x = outputs[i - 1] + outputs[i + frm]
        elif t == "yolo":
            mask = [int(v) for v in m["mask"].split(",")]
            anch = [int(a) for a in m["anchors"].split(",")]
            anch = [(anch[j], anch[j + 1]) for j in range(0, len(anch), 2)]
            anch = [anch[j] for j in mask]
            inp_dim = int(net_info["height"])
            num_classes = int(m["classes"])
            x = yolo_head(x, anch, num_classes, inp_dim)   # (N, bbox, L)
            det_parts.append(x)
        outputs[i] = x
    det_t = det_parts[0] if len(det_parts) == 1 else jnp.concatenate(det_parts, axis=2)
    return det_t.transpose(0, 2, 1)                         # (N, sum(L), bbox)


if __name__ == "__main__":
    key = jax.random.PRNGKey(0)
    kp, kx = jax.random.split(key)

    blocks = parse_cfg_string(CFG)
    params = create_params(blocks, kp)

    # input: batch=2, channels=3, 16x16 NCHW (matches [net] height/width/channels)
    x = jax.random.normal(kx, (2, 3, 16, 16), jnp.float32)

    fwd = jax.jit(lambda inp: darknet_forward(inp, blocks, params))
    out = jax.block_until_ready(fwd(x))

    # two yolo heads: 8*8*3 + 16*16*3 boxes, 5+2 attrs each
    assert out.shape == (2, 8 * 8 * 3 + 16 * 16 * 3, 7), out.shape
    assert out.dtype == jnp.float32
    assert bool(jnp.all(jnp.isfinite(out)))
    print("KERNEL_OK")
</pallas_src>

<mosaic_0001>
module attributes {stable_mosaic.version = 11 : i64} {
  func.func @conv_bn_act_fused_kernel(%arg0: memref<512x27xf32, #tpu.memory_space<vmem>>, %arg1: memref<27x128xf32, #tpu.memory_space<vmem>>, %arg2: memref<1x128xf32, #tpu.memory_space<vmem>>, %arg3: memref<1x128xf32, #tpu.memory_space<vmem>>, %arg4: memref<512x128xf32, #tpu.memory_space<vmem>>) attributes {dimension_semantics = [], scalar_prefetch = 0 : i64, scratch_operands = 0 : i64, tpu.core_type = #tpu.core_type<tc>} {
    %c0 = arith.constant 0 : index
    %c0_0 = arith.constant 0 : index
    %0 = vector.load %arg0[%c0, %c0_0] : memref<512x27xf32, #tpu.memory_space<vmem>>, vector<512x27xf32>
    %c0_1 = arith.constant 0 : index
    %c0_2 = arith.constant 0 : index
    %1 = vector.load %arg1[%c0_1, %c0_2] : memref<27x128xf32, #tpu.memory_space<vmem>>, vector<27x128xf32>
    %cst = arith.constant dense<0.000000e+00> : vector<512x128xf32>
    %2 = tpu.matmul %0, %1, %cst {dimension_numbers = #tpu.dot_dimension_numbers<[1], [0], [0], [1], [0, 0, 1, 1], [], []>} : vector<512x27xf32>, vector<27x128xf32>, vector<512x128xf32> -> vector<512x128xf32>
    %cst_3 = arith.constant dense<0.000000e+00> : vector<128xf32>
    %3 = vector.multi_reduction <add>, %2, %cst_3 [0] : vector<512x128xf32> to vector<128xf32>
    %4 = vector.shape_cast %3 : vector<128xf32> to vector<1x128xf32>
    %cst_4 = arith.constant 0.001953125 : f32
    %5 = vector.broadcast %cst_4 : f32 to vector<1x128xf32>
    %6 = arith.mulf %4, %5 : vector<1x128xf32>
    %7 = arith.mulf %2, %2 : vector<512x128xf32>
    %cst_5 = arith.constant dense<0.000000e+00> : vector<128xf32>
    %8 = vector.multi_reduction <add>, %7, %cst_5 [0] : vector<512x128xf32> to vector<128xf32>
    %9 = vector.shape_cast %8 : vector<128xf32> to vector<1x128xf32>
    %cst_6 = arith.constant 0.001953125 : f32
    %10 = vector.broadcast %cst_6 : f32 to vector<1x128xf32>
    %11 = arith.mulf %9, %10 : vector<1x128xf32>
    %12 = arith.mulf %6, %6 : vector<1x128xf32>
    %13 = arith.subf %11, %12 : vector<1x128xf32>
    %cst_7 = arith.constant 0.000000e+00 : f32
    %14 = vector.broadcast %cst_7 : f32 to vector<1x128xf32>
    %15 = arith.maximumf %13, %14 : vector<1x128xf32>
    %c0_8 = arith.constant 0 : index
    %c0_9 = arith.constant 0 : index
    %16 = vector.load %arg2[%c0_8, %c0_9] : memref<1x128xf32, #tpu.memory_space<vmem>>, vector<1x128xf32>
    %cst_10 = arith.constant 9.99999974E-6 : f32
    %17 = vector.broadcast %cst_10 : f32 to vector<1x128xf32>
    %18 = arith.addf %15, %17 : vector<1x128xf32>
    %19 = math.rsqrt %18 : vector<1x128xf32>
    %20 = arith.mulf %16, %19 : vector<1x128xf32>
    %c0_11 = arith.constant 0 : index
    %c0_12 = arith.constant 0 : index
    %21 = vector.load %arg3[%c0_11, %c0_12] : memref<1x128xf32, #tpu.memory_space<vmem>>, vector<1x128xf32>
    %22 = arith.mulf %6, %20 : vector<1x128xf32>
    %23 = arith.subf %21, %22 : vector<1x128xf32>
    %24 = vector.broadcast %20 : vector<1x128xf32> to vector<512x128xf32>
    %25 = arith.mulf %2, %24 : vector<512x128xf32>
    %26 = vector.broadcast %23 : vector<1x128xf32> to vector<512x128xf32>
    %27 = arith.addf %25, %26 : vector<512x128xf32>
    %cst_13 = arith.constant 0.000000e+00 : f32
    %28 = vector.broadcast %cst_13 : f32 to vector<512x128xf32>
    %29 = arith.cmpf ogt, %27, %28 : vector<512x128xf32>
    %cst_14 = arith.constant 1.000000e-01 : f32
    %30 = vector.broadcast %cst_14 : f32 to vector<512x128xf32>
    %31 = arith.mulf %30, %27 : vector<512x128xf32>
    %32 = arith.select %29, %27, %31 : vector<512x128xi1>, vector<512x128xf32>
    %c0_15 = arith.constant 0 : index
    %c0_16 = arith.constant 0 : index
    %33 = vector.load %arg4[%c0_15, %c0_16] : memref<512x128xf32, #tpu.memory_space<vmem>>, vector<512x128xf32>
    tpu.vector_store %arg4[%c0_15, %c0_16], %32 {strides = array<i32>} : memref<512x128xf32, #tpu.memory_space<vmem>>, vector<512x128xf32>,
    return
  }
}

module attributes {stable_mosaic.version = 11 : i64} {
  func.func @conv_bn_act_fused_kernel(%arg0: memref<128x72xf32, #tpu.memory_space<vmem>>, %arg1: memref<72x128xf32, #tpu.memory_space<vmem>>, %arg2: memref<1x128xf32, #tpu.memory_space<vmem>>, %arg3: memref<1x128xf32, #tpu.memory_space<vmem>>, %arg4: memref<128x128xf32, #tpu.memory_space<vmem>>) attributes {dimension_semantics = [], scalar_prefetch = 0 : i64, scratch_operands = 0 : i64, tpu.core_type = #tpu.core_type<tc>} {
    %c0 = arith.constant 0 : index
    %c0_0 = arith.constant 0 : index
    %0 = vector.load %arg0[%c0, %c0_0] : memref<128x72xf32, #tpu.memory_space<vmem>>, vector<128x72xf32>
    %c0_1 = arith.constant 0 : index
    %c0_2 = arith.constant 0 : index
    %1 = vector.load %arg1[%c0_1, %c0_2] : memref<72x128xf32, #tpu.memory_space<vmem>>, vector<72x128xf32>
    %cst = arith.constant dense<0.000000e+00> : vector<128x128xf32>
    %2 = tpu.matmul %0, %1, %cst {dimension_numbers = #tpu.dot_dimension_numbers<[1], [0], [0], [1], [0, 0, 1, 1], [], []>} : vector<128x72xf32>, vector<72x128xf32>, vector<128x128xf32> -> vector<128x128xf32>
    %cst_3 = arith.constant dense<0.000000e+00> : vector<128xf32>
    %3 = vector.multi_reduction <add>, %2, %cst_3 [0] : vector<128x128xf32> to vector<128xf32>
    %4 = vector.shape_cast %3 : vector<128xf32> to vector<1x128xf32>
    %cst_4 = arith.constant 7.812500e-03 : f32
    %5 = vector.broadcast %cst_4 : f32 to vector<1x128xf32>
    %6 = arith.mulf %4, %5 : vector<1x128xf32>
    %7 = arith.mulf %2, %2 : vector<128x128xf32>
    %cst_5 = arith.constant dense<0.000000e+00> : vector<128xf32>
    %8 = vector.multi_reduction <add>, %7, %cst_5 [0] : vector<128x128xf32> to vector<128xf32>
    %9 = vector.shape_cast %8 : vector<128xf32> to vector<1x128xf32>
    %cst_6 = arith.constant 7.812500e-03 : f32
    %10 = vector.broadcast %cst_6 : f32 to vector<1x128xf32>
    %11 = arith.mulf %9, %10 : vector<1x128xf32>
    %12 = arith.mulf %6, %6 : vector<1x128xf32>
    %13 = arith.subf %11, %12 : vector<1x128xf32>
    %cst_7 = arith.constant 0.000000e+00 : f32
    %14 = vector.broadcast %cst_7 : f32 to vector<1x128xf32>
    %15 = arith.maximumf %13, %14 : vector<1x128xf32>
    %c0_8 = arith.constant 0 : index
    %c0_9 = arith.constant 0 : index
    %16 = vector.load %arg2[%c0_8, %c0_9] : memref<1x128xf32, #tpu.memory_space<vmem>>, vector<1x128xf32>
    %cst_10 = arith.constant 9.99999974E-6 : f32
    %17 = vector.broadcast %cst_10 : f32 to vector<1x128xf32>
    %18 = arith.addf %15, %17 : vector<1x128xf32>
    %19 = math.rsqrt %18 : vector<1x128xf32>
    %20 = arith.mulf %16, %19 : vector<1x128xf32>
    %c0_11 = arith.constant 0 : index
    %c0_12 = arith.constant 0 : index
    %21 = vector.load %arg3[%c0_11, %c0_12] : memref<1x128xf32, #tpu.memory_space<vmem>>, vector<1x128xf32>
    %22 = arith.mulf %6, %20 : vector<1x128xf32>
    %23 = arith.subf %21, %22 : vector<1x128xf32>
    %24 = vector.broadcast %20 : vector<1x128xf32> to vector<128x128xf32>
    %25 = arith.mulf %2, %24 : vector<128x128xf32>
    %26 = vector.broadcast %23 : vector<1x128xf32> to vector<128x128xf32>
    %27 = arith.addf %25, %26 : vector<128x128xf32>
    %cst_13 = arith.constant 0.000000e+00 : f32
    %28 = vector.broadcast %cst_13 : f32 to vector<128x128xf32>
    %29 = arith.cmpf ogt, %27, %28 : vector<128x128xf32>
    %cst_14 = arith.constant 1.000000e-01 : f32
    %30 = vector.broadcast %cst_14 : f32 to vector<128x128xf32>
    %31 = arith.mulf %30, %27 : vector<128x128xf32>
    %32 = arith.select %29, %27, %31 : vector<128x128xi1>, vector<128x128xf32>
    %c0_15 = arith.constant 0 : index
    %c0_16 = arith.constant 0 : index
    %33 = vector.load %arg4[%c0_15, %c0_16] : memref<128x128xf32, #tpu.memory_space<vmem>>, vector<128x128xf32>
    tpu.vector_store %arg4[%c0_15, %c0_16], %32 {strides = array<i32>} : memref<128x128xf32, #tpu.memory_space<vmem>>, vector<128x128xf32>,
    return
  }
}

module attributes {stable_mosaic.version = 11 : i64} {
  func.func @conv_bn_act_fused_kernel(%arg0: memref<128x144xf32, #tpu.memory_space<vmem>>, %arg1: memref<144x128xf32, #tpu.memory_space<vmem>>, %arg2: memref<1x128xf32, #tpu.memory_space<vmem>>, %arg3: memref<1x128xf32, #tpu.memory_space<vmem>>, %arg4: memref<128x128xf32, #tpu.memory_space<vmem>>) attributes {dimension_semantics = [], scalar_prefetch = 0 : i64, scratch_operands = 0 : i64, tpu.core_type = #tpu.core_type<tc>} {
    %c0 = arith.constant 0 : index
    %c0_0 = arith.constant 0 : index
    %0 = vector.load %arg0[%c0, %c0_0] : memref<128x144xf32, #tpu.memory_space<vmem>>, vector<128x144xf32>
    %c0_1 = arith.constant 0 : index
    %c0_2 = arith.constant 0 : index
    %1 = vector.load %arg1[%c0_1, %c0_2] : memref<144x128xf32, #tpu.memory_space<vmem>>, vector<144x128xf32>
    %cst = arith.constant dense<0.000000e+00> : vector<128x128xf32>
    %2 = tpu.matmul %0, %1, %cst {dimension_numbers = #tpu.dot_dimension_numbers<[1], [0], [0], [1], [0, 0, 1, 1], [], []>} : vector<128x144xf32>, vector<144x128xf32>, vector<128x128xf32> -> vector<128x128xf32>
    %cst_3 = arith.constant dense<0.000000e+00> : vector<128xf32>
    %3 = vector.multi_reduction <add>, %2, %cst_3 [0] : vector<128x128xf32> to vector<128xf32>
    %4 = vector.shape_cast %3 : vector<128xf32> to vector<1x128xf32>
    %cst_4 = arith.constant 7.812500e-03 : f32
    %5 = vector.broadcast %cst_4 : f32 to vector<1x128xf32>
    %6 = arith.mulf %4, %5 : vector<1x128xf32>
    %7 = arith.mulf %2, %2 : vector<128x128xf32>
    %cst_5 = arith.constant dense<0.000000e+00> : vector<128xf32>
    %8 = vector.multi_reduction <add>, %7, %cst_5 [0] : vector<128x128xf32> to vector<128xf32>
    %9 = vector.shape_cast %8 : vector<128xf32> to vector<1x128xf32>
    %cst_6 = arith.constant 7.812500e-03 : f32
    %10 = vector.broadcast %cst_6 : f32 to vector<1x128xf32>
    %11 = arith.mulf %9, %10 : vector<1x128xf32>
    %12 = arith.mulf %6, %6 : vector<1x128xf32>
    %13 = arith.subf %11, %12 : vector<1x128xf32>
    %cst_7 = arith.constant 0.000000e+00 : f32
    %14 = vector.broadcast %cst_7 : f32 to vector<1x128xf32>
    %15 = arith.maximumf %13, %14 : vector<1x128xf32>
    %c0_8 = arith.constant 0 : index
    %c0_9 = arith.constant 0 : index
    %16 = vector.load %arg2[%c0_8, %c0_9] : memref<1x128xf32, #tpu.memory_space<vmem>>, vector<1x128xf32>
    %cst_10 = arith.constant 9.99999974E-6 : f32
    %17 = vector.broadcast %cst_10 : f32 to vector<1x128xf32>
    %18 = arith.addf %15, %17 : vector<1x128xf32>
    %19 = math.rsqrt %18 : vector<1x128xf32>
    %20 = arith.mulf %16, %19 : vector<1x128xf32>
    %c0_11 = arith.constant 0 : index
    %c0_12 = arith.constant 0 : index
    %21 = vector.load %arg3[%c0_11, %c0_12] : memref<1x128xf32, #tpu.memory_space<vmem>>, vector<1x128xf32>
    %22 = arith.mulf %6, %20 : vector<1x128xf32>
    %23 = arith.subf %21, %22 : vector<1x128xf32>
    %24 = vector.broadcast %20 : vector<1x128xf32> to vector<128x128xf32>
    %25 = arith.mulf %2, %24 : vector<128x128xf32>
    %26 = vector.broadcast %23 : vector<1x128xf32> to vector<128x128xf32>
    %27 = arith.addf %25, %26 : vector<128x128xf32>
    %cst_13 = arith.constant 0.000000e+00 : f32
    %28 = vector.broadcast %cst_13 : f32 to vector<128x128xf32>
    %29 = arith.cmpf ogt, %27, %28 : vector<128x128xf32>
    %cst_14 = arith.constant 1.000000e-01 : f32
    %30 = vector.broadcast %cst_14 : f32 to vector<128x128xf32>
    %31 = arith.mulf %30, %27 : vector<128x128xf32>
    %32 = arith.select %29, %27, %31 : vector<128x128xi1>, vector<128x128xf32>
    %c0_15 = arith.constant 0 : index
    %c0_16 = arith.constant 0 : index
    %33 = vector.load %arg4[%c0_15, %c0_16] : memref<128x128xf32, #tpu.memory_space<vmem>>, vector<128x128xf32>
    tpu.vector_store %arg4[%c0_15, %c0_16], %32 {strides = array<i32>} : memref<128x128xf32, #tpu.memory_space<vmem>>, vector<128x128xf32>,
    return
  }
}

module attributes {stable_mosaic.version = 11 : i64} {
  func.func @yolo_kernel(%arg0: memref<2x7x192xf32, #tpu.memory_space<vmem>>, %arg1: memref<1x7x192xf32, #tpu.memory_space<vmem>>, %arg2: memref<1x7x192xf32, #tpu.memory_space<vmem>>, %arg3: memref<2x7x192xf32, #tpu.memory_space<vmem>>) attributes {dimension_semantics = [], scalar_prefetch = 0 : i64, scratch_operands = 0 : i64, tpu.core_type = #tpu.core_type<tc>} {
    %c0 = arith.constant 0 : index
    %c0_0 = arith.constant 0 : index
    %c0_1 = arith.constant 0 : index
    %0 = vector.load %arg0[%c0, %c0_0, %c0_1] : memref<2x7x192xf32, #tpu.memory_space<vmem>>, vector<2x7x192xf32>
    %1 = tpu.iota {dimensions = array<i32: 1>} : vector<2x7x192xi32>
    %c2_i32 = arith.constant 2 : i32
    %2 = vector.broadcast %c2_i32 : i32 to vector<2x7x192xi32>
    %3 = arith.cmpi sge, %1, %2 : vector<2x7x192xi32>
    %c4_i32 = arith.constant 4 : i32
    %4 = vector.broadcast %c4_i32 : i32 to vector<2x7x192xi32>
    %5 = arith.cmpi slt, %1, %4 : vector<2x7x192xi32>
    %6 = arith.andi %3, %5 : vector<2x7x192xi1>
    %cst = arith.constant 0.000000e+00 : f32
    %7 = vector.broadcast %cst : f32 to vector<2x7x192xf32>
    %8 = arith.subf %7, %0 : vector<2x7x192xf32>
    %9 = math.exp %8 : vector<2x7x192xf32>
    %cst_2 = arith.constant 1.000000e+00 : f32
    %10 = vector.broadcast %cst_2 : f32 to vector<2x7x192xf32>
    %11 = arith.addf %10, %9 : vector<2x7x192xf32>
    %cst_3 = arith.constant 1.000000e+00 : f32
    %12 = vector.broadcast %cst_3 : f32 to vector<2x7x192xf32>
    %13 = arith.divf %12, %11 : vector<2x7x192xf32>
    %14 = math.exp %0 : vector<2x7x192xf32>
    %15 = arith.select %6, %14, %13 : vector<2x7x192xi1>, vector<2x7x192xf32>
    %c0_4 = arith.constant 0 : index
    %c0_5 = arith.constant 0 : index
    %c0_6 = arith.constant 0 : index
    %16 = vector.load %arg1[%c0_4, %c0_5, %c0_6] : memref<1x7x192xf32, #tpu.memory_space<vmem>>, vector<1x7x192xf32>
    %17 = vector.broadcast %16 : vector<1x7x192xf32> to vector<2x7x192xf32>
    %18 = arith.mulf %15, %17 : vector<2x7x192xf32>
    %c0_7 = arith.constant 0 : index
    %c0_8 = arith.constant 0 : index
    %c0_9 = arith.constant 0 : index
    %19 = vector.load %arg2[%c0_7, %c0_8, %c0_9] : memref<1x7x192xf32, #tpu.memory_space<vmem>>, vector<1x7x192xf32>
    %20 = vector.broadcast %19 : vector<1x7x192xf32> to vector<2x7x192xf32>
    %21 = arith.addf %18, %20 : vector<2x7x192xf32>
    %c0_10 = arith.constant 0 : index
    %c0_11 = arith.constant 0 : index
    %c0_12 = arith.constant 0 : index
    %22 = vector.load %arg3[%c0_10, %c0_11, %c0_12] : memref<2x7x192xf32, #tpu.memory_space<vmem>>, vector<2x7x192xf32>
    tpu.vector_store %arg3[%c0_10, %c0_11, %c0_12], %21 {strides = array<i32>} : memref<2x7x192xf32, #tpu.memory_space<vmem>>, vector<2x7x192xf32>,
    return
  }
}

module attributes {stable_mosaic.version = 11 : i64} {
  func.func @conv_mm_bias_kernel(%arg0: i32, %arg1: memref<64x16xf32, #tpu.memory_space<vmem>>, %arg2: memref<16x128xf32, #tpu.memory_space<vmem>>, %arg3: memref<1x128xf32, #tpu.memory_space<vmem>>, %arg4: memref<64x128xf32, #tpu.memory_space<vmem>>) attributes {dimension_semantics = [#tpu.dimension_semantics<parallel>], iteration_bounds = array<i64: 2>, scalar_prefetch = 0 : i64, scratch_operands = 0 : i64, tpu.core_type = #tpu.core_type<tc>, window_params = [{transform_indices = @transform_0, window_bounds = array<i64: 64, 16>}, {pipeline_mode = #tpu.pipeline_mode<synchronous>, transform_indices = @transform_1, window_bounds = array<i64: 16, 128>}, {pipeline_mode = #tpu.pipeline_mode<synchronous>, transform_indices = @transform_2, window_bounds = array<i64: 1, 128>}, {transform_indices = @transform_3, window_bounds = array<i64: 64, 128>}]} {
    %c0 = arith.constant 0 : index
    %c0_0 = arith.constant 0 : index
    %0 = vector.load %arg1[%c0, %c0_0] : memref<64x16xf32, #tpu.memory_space<vmem>>, vector<64x16xf32>
    %c0_1 = arith.constant 0 : index
    %c0_2 = arith.constant 0 : index
    %1 = vector.load %arg2[%c0_1, %c0_2] : memref<16x128xf32, #tpu.memory_space<vmem>>, vector<16x128xf32>
    %cst = arith.constant dense<0.000000e+00> : vector<64x128xf32>
    %2 = tpu.matmul %0, %1, %cst {dimension_numbers = #tpu.dot_dimension_numbers<[1], [0], [0], [1], [0, 0, 1, 1], [], []>} : vector<64x16xf32>, vector<16x128xf32>, vector<64x128xf32> -> vector<64x128xf32>
    %c0_3 = arith.constant 0 : index
    %c0_4 = arith.constant 0 : index
    %3 = vector.load %arg3[%c0_3, %c0_4] : memref<1x128xf32, #tpu.memory_space<vmem>>, vector<1x128xf32>
    %4 = vector.broadcast %3 : vector<1x128xf32> to vector<64x128xf32>
    %5 = arith.addf %2, %4 : vector<64x128xf32>
    %c0_5 = arith.constant 0 : index
    %c0_6 = arith.constant 0 : index
    %6 = vector.load %arg4[%c0_5, %c0_6] : memref<64x128xf32, #tpu.memory_space<vmem>>, vector<64x128xf32>
    tpu.vector_store %arg4[%c0_5, %c0_6], %5 {strides = array<i32>} : memref<64x128xf32, #tpu.memory_space<vmem>>, vector<64x128xf32>,
    return
  }
  func.func @transform_0(%arg0: i32) -> (i32, i32) {
    %c0_i32 = arith.constant 0 : i32
    %c0_i32_0 = arith.constant 0 : i32
    return %arg0, %c0_i32 : i32, i32
  }
  func.func @transform_1(%arg0: i32) -> (i32, i32) {
    %c0_i32 = arith.constant 0 : i32
    %c0_i32_0 = arith.constant 0 : i32
    %c0_i32_1 = arith.constant 0 : i32
    return %c0_i32, %c0_i32_0 : i32, i32
  }
  func.func @transform_2(%arg0: i32) -> (i32, i32) {
    %c0_i32 = arith.constant 0 : i32
    %c0_i32_0 = arith.constant 0 : i32
    %c0_i32_1 = arith.constant 0 : i32
    return %c0_i32, %c0_i32_0 : i32, i32
  }
  func.func @transform_3(%arg0: i32) -> (i32, i32) {
    %c0_i32 = arith.constant 0 : i32
    %c0_i32_0 = arith.constant 0 : i32
    return %arg0, %c0_i32 : i32, i32
  }
}

module attributes {stable_mosaic.version = 11 : i64} {
  func.func @conv_mm_bias_kernel(%arg0: i32, %arg1: memref<256x24xf32, #tpu.memory_space<vmem>>, %arg2: memref<24x128xf32, #tpu.memory_space<vmem>>, %arg3: memref<1x128xf32, #tpu.memory_space<vmem>>, %arg4: memref<256x128xf32, #tpu.memory_space<vmem>>) attributes {dimension_semantics = [#tpu.dimension_semantics<parallel>], iteration_bounds = array<i64: 2>, scalar_prefetch = 0 : i64, scratch_operands = 0 : i64, tpu.core_type = #tpu.core_type<tc>, window_params = [{transform_indices = @transform_0, window_bounds = array<i64: 256, 24>}, {pipeline_mode = #tpu.pipeline_mode<synchronous>, transform_indices = @transform_1, window_bounds = array<i64: 24, 128>}, {pipeline_mode = #tpu.pipeline_mode<synchronous>, transform_indices = @transform_2, window_bounds = array<i64: 1, 128>}, {transform_indices = @transform_3, window_bounds = array<i64: 256, 128>}]} {
    %c0 = arith.constant 0 : index
    %c0_0 = arith.constant 0 : index
    %0 = vector.load %arg1[%c0, %c0_0] : memref<256x24xf32, #tpu.memory_space<vmem>>, vector<256x24xf32>
    %c0_1 = arith.constant 0 : index
    %c0_2 = arith.constant 0 : index
    %1 = vector.load %arg2[%c0_1, %c0_2] : memref<24x128xf32, #tpu.memory_space<vmem>>, vector<24x128xf32>
    %cst = arith.constant dense<0.000000e+00> : vector<256x128xf32>
    %2 = tpu.matmul %0, %1, %cst {dimension_numbers = #tpu.dot_dimension_numbers<[1], [0], [0], [1], [0, 0, 1, 1], [], []>} : vector<256x24xf32>, vector<24x128xf32>, vector<256x128xf32> -> vector<256x128xf32>
    %c0_3 = arith.constant 0 : index
    %c0_4 = arith.constant 0 : index
    %3 = vector.load %arg3[%c0_3, %c0_4] : memref<1x128xf32, #tpu.memory_space<vmem>>, vector<1x128xf32>
    %4 = vector.broadcast %3 : vector<1x128xf32> to vector<256x128xf32>
    %5 = arith.addf %2, %4 : vector<256x128xf32>
    %c0_5 = arith.constant 0 : index
    %c0_6 = arith.constant 0 : index
    %6 = vector.load %arg4[%c0_5, %c0_6] : memref<256x128xf32, #tpu.memory_space<vmem>>, vector<256x128xf32>
    tpu.vector_store %arg4[%c0_5, %c0_6], %5 {strides = array<i32>} : memref<256x128xf32, #tpu.memory_space<vmem>>, vector<256x128xf32>,
    return
  }
  func.func @transform_0(%arg0: i32) -> (i32, i32) {
    %c0_i32 = arith.constant 0 : i32
    %c0_i32_0 = arith.constant 0 : i32
    return %arg0, %c0_i32 : i32, i32
  }
  func.func @transform_1(%arg0: i32) -> (i32, i32) {
    %c0_i32 = arith.constant 0 : i32
    %c0_i32_0 = arith.constant 0 : i32
    %c0_i32_1 = arith.constant 0 : i32
    return %c0_i32, %c0_i32_0 : i32, i32
  }
  func.func @transform_2(%arg0: i32) -> (i32, i32) {
    %c0_i32 = arith.constant 0 : i32
    %c0_i32_0 = arith.constant 0 : i32
    %c0_i32_1 = arith.constant 0 : i32
    return %c0_i32, %c0_i32_0 : i32, i32
  }
  func.func @transform_3(%arg0: i32) -> (i32, i32) {
    %c0_i32 = arith.constant 0 : i32
    %c0_i32_0 = arith.constant 0 : i32
    return %arg0, %c0_i32 : i32, i32
  }
}

module attributes {stable_mosaic.version = 11 : i64} {
  func.func @yolo_kernel(%arg0: memref<2x7x768xf32, #tpu.memory_space<vmem>>, %arg1: memref<1x7x768xf32, #tpu.memory_space<vmem>>, %arg2: memref<1x7x768xf32, #tpu.memory_space<vmem>>, %arg3: memref<2x7x768xf32, #tpu.memory_space<vmem>>) attributes {dimension_semantics = [], scalar_prefetch = 0 : i64, scratch_operands = 0 : i64, tpu.core_type = #tpu.core_type<tc>} {
    %c0 = arith.constant 0 : index
    %c0_0 = arith.constant 0 : index
    %c0_1 = arith.constant 0 : index
    %0 = vector.load %arg0[%c0, %c0_0, %c0_1] : memref<2x7x768xf32, #tpu.memory_space<vmem>>, vector<2x7x768xf32>
    %1 = tpu.iota {dimensions = array<i32: 1>} : vector<2x7x768xi32>
    %c2_i32 = arith.constant 2 : i32
    %2 = vector.broadcast %c2_i32 : i32 to vector<2x7x768xi32>
    %3 = arith.cmpi sge, %1, %2 : vector<2x7x768xi32>
    %c4_i32 = arith.constant 4 : i32
    %4 = vector.broadcast %c4_i32 : i32 to vector<2x7x768xi32>
    %5 = arith.cmpi slt, %1, %4 : vector<2x7x768xi32>
    %6 = arith.andi %3, %5 : vector<2x7x768xi1>
    %cst = arith.constant 0.000000e+00 : f32
    %7 = vector.broadcast %cst : f32 to vector<2x7x768xf32>
    %8 = arith.subf %7, %0 : vector<2x7x768xf32>
    %9 = math.exp %8 : vector<2x7x768xf32>
    %cst_2 = arith.constant 1.000000e+00 : f32
    %10 = vector.broadcast %cst_2 : f32 to vector<2x7x768xf32>
    %11 = arith.addf %10, %9 : vector<2x7x768xf32>
    %cst_3 = arith.constant 1.000000e+00 : f32
    %12 = vector.broadcast %cst_3 : f32 to vector<2x7x768xf32>
    %13 = arith.divf %12, %11 : vector<2x7x768xf32>
    %14 = math.exp %0 : vector<2x7x768xf32>
    %15 = arith.select %6, %14, %13 : vector<2x7x768xi1>, vector<2x7x768xf32>
    %c0_4 = arith.constant 0 : index
    %c0_5 = arith.constant 0 : index
    %c0_6 = arith.constant 0 : index
    %16 = vector.load %arg1[%c0_4, %c0_5, %c0_6] : memref<1x7x768xf32, #tpu.memory_space<vmem>>, vector<1x7x768xf32>
    %17 = vector.broadcast %16 : vector<1x7x768xf32> to vector<2x7x768xf32>
    %18 = arith.mulf %15, %17 : vector<2x7x768xf32>
    %c0_7 = arith.constant 0 : index
    %c0_8 = arith.constant 0 : index
    %c0_9 = arith.constant 0 : index
    %19 = vector.load %arg2[%c0_7, %c0_8, %c0_9] : memref<1x7x768xf32, #tpu.memory_space<vmem>>, vector<1x7x768xf32>
    %20 = vector.broadcast %19 : vector<1x7x768xf32> to vector<2x7x768xf32>
    %21 = arith.addf %18, %20 : vector<2x7x768xf32>
    %c0_10 = arith.constant 0 : index
    %c0_11 = arith.constant 0 : index
    %c0_12 = arith.constant 0 : index
    %22 = vector.load %arg3[%c0_10, %c0_11, %c0_12] : memref<2x7x768xf32, #tpu.memory_space<vmem>>, vector<2x7x768xf32>
    tpu.vector_store %arg3[%c0_10, %c0_11, %c0_12], %21 {strides = array<i32>} : memref<2x7x768xf32, #tpu.memory_space<vmem>>, vector<2x7x768xf32>,
    return
  }
}

</mosaic_0001>

<llo_original>
// kernel: _lambda_.8
$region0: #{_lambda_.8}
  #allocation0 [shape = 'u32[]', space=smem, size = 0x4, offset = 0x4, fixed_abs, tag = 'smem constant byte address 0x4 - core index']
  #allocation1 [shape = 'u32[72,128]{1,0:T(1,128)}', space=vmem, size = 0x9000, scoped, tag = 'internal scratch']
  %s0 = inlined_call_operand.vmem [shape: f32[128,72], index: 0, kind: input, shape index: {}]
  %s1 = inlined_call_operand.vmem [shape: f32[72,128], index: 1, kind: input, shape index: {}]
  %s2 = inlined_call_operand.vmem [shape: f32[1,128], index: 2, kind: input, shape index: {}]
  %s3 = inlined_call_operand.vmem [shape: f32[1,128], index: 3, kind: input, shape index: {}]
  %s4 = inlined_call_operand.vmem [shape: f32[128,128], index: 4, kind: output, shape index: {}]
  %s5 = sld [smem:[#allocation0]]
  $region26: #{_lambda_.8} parent=0
    _
  %s7 = ssub.s32 1, %s5
  %s8 = scalar_select 0, %s7, %s5
  // Predicated region
  $region2: #{_lambda_.8} parent=0 // pred_check
    _
  $region3: #{_lambda_.8} parent=0 // pred_check_branch
    %10 = sbr.rel (0) target = $region5
  $region4: #{_lambda_.8} parent=0 // pred_region
    _
  $region5: #{_lambda_.8} parent=0 // pred_fallthru
    _
  // Predicated region
  $region6: #{_lambda_.8} parent=0 // pred_check
    _
  $region7: #{_lambda_.8} parent=0 // pred_check_branch
    %12 = sbr.rel (0) target = $region9
  $region8: #{_lambda_.8} parent=0 // pred_region
    _
  $region9: #{_lambda_.8} parent=0 // pred_fallthru
    _
  // Predicated region
  $region10: #{_lambda_.8} parent=0 // pred_check
    _
  $region11: #{_lambda_.8} parent=0 // pred_check_branch
    %14 = sbr.rel (0) target = $region13
  $region12: #{_lambda_.8} parent=0 // pred_region
    _
  $region13: #{_lambda_.8} parent=0 // pred_fallthru
    _
  // Predicated region
  $region14: #{_lambda_.8} parent=0 // pred_check
    _
  $region15: #{_lambda_.8} parent=0 // pred_check_branch
    %16 = sbr.rel (0) target = $region17
  $region16: #{_lambda_.8} parent=0 // pred_region
    _
  $region17: #{_lambda_.8} parent=0 // pred_fallthru
    _
  %v17 = vld [vmem:[%s0] sm:$0xff]
  %v18 = vld [vmem:[%s0 + $0x8] sm:$0xff]
  %v19 = vld [vmem:[%s0 + $0x10] sm:$0xff]
  %v20 = vld [vmem:[%s0 + $0x18] sm:$0xff]
  %v21 = vld [vmem:[%s0 + $0x20] sm:$0xff]
  %v22 = vld [vmem:[%s0 + $0x28] sm:$0xff]
  %v23 = vld [vmem:[%s0 + $0x30] sm:$0xff]
  %v24 = vld [vmem:[%s0 + $0x38] sm:$0xff]
  %v25 = vld [vmem:[%s0 + $0x40] sm:$0xff]
  %v26 = vld [vmem:[%s0 + $0x48] sm:$0xff]
  %v27 = vld [vmem:[%s0 + $0x50] sm:$0xff]
  %v28 = vld [vmem:[%s0 + $0x58] sm:$0xff]
  %v29 = vld [vmem:[%s0 + $0x60] sm:$0xff]
  %v30 = vld [vmem:[%s0 + $0x68] sm:$0xff]
  %v31 = vld [vmem:[%s0 + $0x70] sm:$0xff]
  %v32 = vld [vmem:[%s0 + $0x78] sm:$0xff]
  %v33 = vld [vmem:[%s1] sm:$0xff]
  %v34 = vld [vmem:[%s1 + $0x8] sm:$0xff]
  %v35 = vld [vmem:[%s1 + $0x10] sm:$0xff]
  %v36 = vld [vmem:[%s1 + $0x18] sm:$0xff]
  %v37 = vld [vmem:[%s1 + $0x20] sm:$0xff]
  %v38 = vld [vmem:[%s1 + $0x28] sm:$0xff]
  %v39 = vld [vmem:[%s1 + $0x30] sm:$0xff]
  %v40 = vld [vmem:[%s1 + $0x38] sm:$0xff]
  %v41 = vld [vmem:[%s1 + $0x40] sm:$0xff]
  %vm42 = vcmask 588800
  %v44 = vsel %vm42, %v17, 0
  %v47 = vsel %vm42, %v18, 0
  %v50 = vsel %vm42, %v19, 0
  %v53 = vsel %vm42, %v20, 0
  %v56 = vsel %vm42, %v21, 0
  %v59 = vsel %vm42, %v22, 0
  %v62 = vsel %vm42, %v23, 0
  %v65 = vsel %vm42, %v24, 0
  %v68 = vsel %vm42, %v25, 0
  %v71 = vsel %vm42, %v26, 0
  %v74 = vsel %vm42, %v27, 0
  %v77 = vsel %vm42, %v28, 0
  %v80 = vsel %vm42, %v29, 0
  %v83 = vsel %vm42, %v30, 0
  %v86 = vsel %vm42, %v31, 0
  %v89 = vsel %vm42, %v32, 0
  %91 = vmatpush.msra.mxu0 0.0
  %92 = vmatpush.msra.mxu0 0.0
  %93 = vmatpush.msra.mxu0 0.0
  %94 = vmatpush.msra.mxu0 0.0
  %95 = vmatpush.msra.mxu0 0.0
  %96 = vmatpush.msra.mxu0 0.0
  %97 = vmatpush.msra.mxu0 0.0
  %98 = vmatpush.msra.mxu0 %v41
  %99 = vmatpush.msra.mxu0 %v40
  %100 = vmatpush.msra.mxu0 %v39
  %101 = vmatpush.msra.mxu0 %v38
  %102 = vmatpush.msra.mxu0 %v37
  %103 = vmatpush.msra.mxu0 %v36
  %104 = vmatpush.msra.mxu0 %v35
  %105 = vmatpush.msra.mxu0 %v34
  %106 = vmatpush.msra.mxu0 %v33
  %107 = vmatmul.f32.gmra.mxu0 %v44
  %v108 = vpop.f32.mrf.mxu0
  %v109 = vadd.f32 0.0, %v108
  %110 = vmatmul.f32.gmra.mxu0 %v47
  %v111 = vpop.f32.mrf.mxu0
  %v112 = vadd.f32 0.0, %v111
  %113 = vmatmul.f32.gmra.mxu0 %v50
  %v114 = vpop.f32.mrf.mxu0
  %v115 = vadd.f32 0.0, %v114
  %116 = vmatmul.f32.gmra.mxu0 %v53
  %v117 = vpop.f32.mrf.mxu0
  %v118 = vadd.f32 0.0, %v117
  %119 = vmatmul.f32.gmra.mxu0 %v56
  %v120 = vpop.f32.mrf.mxu0
  %v121 = vadd.f32 0.0, %v120
  %122 = vmatmul.f32.gmra.mxu0 %v59
  %v123 = vpop.f32.mrf.mxu0
  %v124 = vadd.f32 0.0, %v123
  %125 = vmatmul.f32.gmra.mxu0 %v62
  %v126 = vpop.f32.mrf.mxu0
  %v127 = vadd.f32 0.0, %v126
  %128 = vmatmul.f32.gmra.mxu0 %v65
  %v129 = vpop.f32.mrf.mxu0
  %v130 = vadd.f32 0.0, %v129
  %131 = vmatmul.f32.gmra.mxu0 %v68
  %v132 = vpop.f32.mrf.mxu0
  %v133 = vadd.f32 0.0, %v132
  %134 = vmatmul.f32.gmra.mxu0 %v71
  %v135 = vpop.f32.mrf.mxu0
  %v136 = vadd.f32 0.0, %v135
  %137 = vmatmul.f32.gmra.mxu0 %v74
  %v138 = vpop.f32.mrf.mxu0
  %v139 = vadd.f32 0.0, %v138
  %140 = vmatmul.f32.gmra.mxu0 %v77
  %v141 = vpop.f32.mrf.mxu0
  %v142 = vadd.f32 0.0, %v141
  %143 = vmatmul.f32.gmra.mxu0 %v80
  %v144 = vpop.f32.mrf.mxu0
  %v145 = vadd.f32 0.0, %v144
  %146 = vmatmul.f32.gmra.mxu0 %v83
  %v147 = vpop.f32.mrf.mxu0
  %v148 = vadd.f32 0.0, %v147
  %149 = vmatmul.f32.gmra.mxu0 %v86
  %v150 = vpop.f32.mrf.mxu0
  %v151 = vadd.f32 0.0, %v150
  %152 = vmatmul.f32.gmra.mxu0 %v89
  %v153 = vpop.f32.mrf.mxu0
  %v154 = vadd.f32 0.0, %v153
  %155 = vdwg.mxu0
  %v156 = vadd.f32 %v109, %v112
  %v157 = vadd.f32 %v156, %v115
  %v158 = vadd.f32 %v157, %v118
  %v159 = vadd.f32 %v158, %v121
  %v160 = vadd.f32 %v159, %v124
  %v161 = vadd.f32 %v160, %v127
  %v162 = vadd.f32 %v161, %v130
  %v163 = vadd.f32 %v162, %v133
  %v164 = vadd.f32 %v163, %v136
  %v165 = vadd.f32 %v164, %v139
  %v166 = vadd.f32 %v165, %v142
  %v167 = vadd.f32 %v166, %v145
  %v168 = vadd.f32 %v167, %v148
  %v169 = vadd.f32 %v168, %v151
  %v170 = vadd.f32 %v169, %v154
  %v171 = vrot.slane %v170, 4
  %v172 = vadd.f32 %v170, %v171
  %v173 = vrot.slane %v172, 2
  %v174 = vadd.f32 %v172, %v173
  %v175 = vrot.slane %v174, 1
  %v176 = vadd.f32 %v174, %v175
  %v177 = vmul.f32 %v176, 0.0078125
  %v178 = vmul.f32 %v109, %v109
  %v179 = vmul.f32 %v112, %v112
  %v180 = vmul.f32 %v115, %v115
  %v181 = vmul.f32 %v118, %v118
  %v182 = vmul.f32 %v121, %v121
  %v183 = vmul.f32 %v124, %v124
  %v184 = vmul.f32 %v127, %v127
  %v185 = vmul.f32 %v130, %v130
  %v186 = vmul.f32 %v133, %v133
  %v187 = vmul.f32 %v136, %v136
  %v188 = vmul.f32 %v139, %v139
  %v189 = vmul.f32 %v142, %v142
  %v190 = vmul.f32 %v145, %v145
  %v191 = vmul.f32 %v148, %v148
  %v192 = vmul.f32 %v151, %v151
  %v193 = vmul.f32 %v154, %v154
  %v194 = vadd.f32 %v178, %v179
  %v195 = vadd.f32 %v194, %v180
  %v196 = vadd.f32 %v195, %v181
  %v197 = vadd.f32 %v196, %v182
  %v198 = vadd.f32 %v197, %v183
  %v199 = vadd.f32 %v198, %v184
  %v200 = vadd.f32 %v199, %v185
  %v201 = vadd.f32 %v200, %v186
  %v202 = vadd.f32 %v201, %v187
  %v203 = vadd.f32 %v202, %v188
  %v204 = vadd.f32 %v203, %v189
  %v205 = vadd.f32 %v204, %v190
  %v206 = vadd.f32 %v205, %v191
  %v207 = vadd.f32 %v206, %v192
  %v208 = vadd.f32 %v207, %v193
  %v209 = vrot.slane %v208, 4
  %v210 = vadd.f32 %v208, %v209
  %v211 = vrot.slane %v210, 2
  %v212 = vadd.f32 %v210, %v211
  %v213 = vrot.slane %v212, 1
  %v214 = vadd.f32 %v212, %v213
  %v215 = vmul.f32 %v214, 0.0078125
  %v216 = vmul.f32 %v177, %v177
  %v217 = vsub.f32 %v215, %v216
  %v218 = vmax.f32 %v217, 0.0
  %v219 = vld [vmem:[%s2] sm:$0x1]
  %v220 = vadd.f32 %v218, 1e-05
  %v221 = vrsqrt.pop %v220
  %v222 = vmul.f32 %v221, %v220
  %v223 = vmul.f32 %v222, %v221
  %v224 = vmul.f32 0.5, %v223
  %v225 = vsub.f32 1.5, %v224
  %v226 = vmul.f32 %v221, %v225
  %vm227 = vweird.f32 %v220
  %vm228 = vweird.f32 %v221
  %vm229 = vmor %vm227, %vm228
  %v230 = vsel %vm229, %v221, %v226
  %v231 = vmul.f32 %v219, %v230
  %v232 = vld [vmem:[%s3] sm:$0x1]
  %v233 = vmul.f32 %v177, %v231
  %v234 = vsub.f32 %v232, %v233
  %v236 = vperm.slane %v231, 0
  %v238 = vmul.f32 %v109, %v236
  %v239 = vmul.f32 %v112, %v236
  %v240 = vmul.f32 %v115, %v236
  %v241 = vmul.f32 %v118, %v236
  %v242 = vmul.f32 %v121, %v236
  %v243 = vmul.f32 %v124, %v236
  %v244 = vmul.f32 %v127, %v236
  %v245 = vmul.f32 %v130, %v236
  %v246 = vmul.f32 %v133, %v236
  %v247 = vmul.f32 %v136, %v236
  %v248 = vmul.f32 %v139, %v236
  %v249 = vmul.f32 %v142, %v236
  %v250 = vmul.f32 %v145, %v236
  %v251 = vmul.f32 %v148, %v236
  %v252 = vmul.f32 %v151, %v236
  %v253 = vmul.f32 %v154, %v236
  %v255 = vperm.slane %v234, 0
  %v257 = vadd.f32 %v238, %v255
  %v258 = vadd.f32 %v239, %v255
  %v259 = vadd.f32 %v240, %v255
  %v260 = vadd.f32 %v241, %v255
  %v261 = vadd.f32 %v242, %v255
  %v262 = vadd.f32 %v243, %v255
  %v263 = vadd.f32 %v244, %v255
  %v264 = vadd.f32 %v245, %v255
  %v265 = vadd.f32 %v246, %v255
  %v266 = vadd.f32 %v247, %v255
  %v267 = vadd.f32 %v248, %v255
  %v268 = vadd.f32 %v249, %v255
  %v269 = vadd.f32 %v250, %v255
  %v270 = vadd.f32 %v251, %v255
  %v271 = vadd.f32 %v252, %v255
  %v272 = vadd.f32 %v253, %v255
  %vm273 = vcmp.gt.f32.partialorder %v257, 0.0
  %vm274 = vcmp.gt.f32.partialorder %v258, 0.0
  %vm275 = vcmp.gt.f32.partialorder %v259, 0.0
  %vm276 = vcmp.gt.f32.partialorder %v260, 0.0
  %vm277 = vcmp.gt.f32.partialorder %v261, 0.0
  %vm278 = vcmp.gt.f32.partialorder %v262, 0.0
  %vm279 = vcmp.gt.f32.partialorder %v263, 0.0
  %vm280 = vcmp.gt.f32.partialorder %v264, 0.0
  %vm281 = vcmp.gt.f32.partialorder %v265, 0.0
  %vm282 = vcmp.gt.f32.partialorder %v266, 0.0
  %vm283 = vcmp.gt.f32.partialorder %v267, 0.0
  %vm284 = vcmp.gt.f32.partialorder %v268, 0.0
  %vm285 = vcmp.gt.f32.partialorder %v269, 0.0
  %vm286 = vcmp.gt.f32.partialorder %v270, 0.0
  %vm287 = vcmp.gt.f32.partialorder %v271, 0.0
  %vm288 = vcmp.gt.f32.partialorder %v272, 0.0
  %v289 = vmul.f32 %v257, 0.1
  %v290 = vmul.f32 %v258, 0.1
  %v291 = vmul.f32 %v259, 0.1
  %v292 = vmul.f32 %v260, 0.1
  %v293 = vmul.f32 %v261, 0.1
  %v294 = vmul.f32 %v262, 0.1
  %v295 = vmul.f32 %v263, 0.1
  %v296 = vmul.f32 %v264, 0.1
  %v297 = vmul.f32 %v265, 0.1
  %v298 = vmul.f32 %v266, 0.1
  %v299 = vmul.f32 %v267, 0.1
  %v300 = vmul.f32 %v268, 0.1
  %v301 = vmul.f32 %v269, 0.1
  %v302 = vmul.f32 %v270, 0.1
  %v303 = vmul.f32 %v271, 0.1
  %v304 = vmul.f32 %v272, 0.1
  %v305 = vsel %vm273, %v257, %v289
  %v306 = vsel %vm274, %v258, %v290
  %v307 = vsel %vm275, %v259, %v291
  %v308 = vsel %vm276, %v260, %v292
  %v309 = vsel %vm277, %v261, %v293
  %v310 = vsel %vm278, %v262, %v294
  %v311 = vsel %vm279, %v263, %v295
  %v312 = vsel %vm280, %v264, %v296
  %v313 = vsel %vm281, %v265, %v297
  %v314 = vsel %vm282, %v266, %v298
  %v315 = vsel %vm283, %v267, %v299
  %v316 = vsel %vm284, %v268, %v300
  %v317 = vsel %vm285, %v269, %v301
  %v318 = vsel %vm286, %v270, %v302
  %v319 = vsel %vm287, %v271, %v303
  %v320 = vsel %vm288, %v272, %v304
  %321 = vst [vmem:[%s4] sm:$0xff] %v305
  %322 = vst [vmem:[%s4 + $0x8] sm:$0xff] %v306
  %323 = vst [vmem:[%s4 + $0x10] sm:$0xff] %v307
  %324 = vst [vmem:[%s4 + $0x18] sm:$0xff] %v308
  %325 = vst [vmem:[%s4 + $0x20] sm:$0xff] %v309
  %326 = vst [vmem:[%s4 + $0x28] sm:$0xff] %v310
  %327 = vst [vmem:[%s4 + $0x30] sm:$0xff] %v311
  %328 = vst [vmem:[%s4 + $0x38] sm:$0xff] %v312
  %329 = vst [vmem:[%s4 + $0x40] sm:$0xff] %v313
  %330 = vst [vmem:[%s4 + $0x48] sm:$0xff] %v314
  %331 = vst [vmem:[%s4 + $0x50] sm:$0xff] %v315
  %332 = vst [vmem:[%s4 + $0x58] sm:$0xff] %v316
  %333 = vst [vmem:[%s4 + $0x60] sm:$0xff] %v317
  %334 = vst [vmem:[%s4 + $0x68] sm:$0xff] %v318
  %335 = vst [vmem:[%s4 + $0x70] sm:$0xff] %v319
  %336 = vst [vmem:[%s4 + $0x78] sm:$0xff] %v320
  // Predicated region
  $region18: #{_lambda_.8} parent=0 // pred_check
    _
  $region19: #{_lambda_.8} parent=0 // pred_check_branch
    %338 = sbr.rel (0) target = $region21
  $region20: #{_lambda_.8} parent=0 // pred_region
    _
  $region21: #{_lambda_.8} parent=0 // pred_fallthru
    _
  // Predicated region
  $region22: #{_lambda_.8} parent=0 // pred_check
    _
  $region23: #{_lambda_.8} parent=0 // pred_check_branch
    %340 = sbr.rel (0) target = $region25
  $region24: #{_lambda_.8} parent=0 // pred_region
    _
  $region25: #{_lambda_.8} parent=0 // pred_fallthru
    _

// kernel: _lambda_.7
$region0: #{_lambda_.7}
  #allocation0 [shape = 'u32[]', space=smem, size = 0x4, offset = 0x4, fixed_abs, tag = 'smem constant byte address 0x4 - core index']
  #allocation1 [shape = 'u32[72,128]{1,0:T(1,128)}', space=vmem, size = 0x9000, scoped, tag = 'internal scratch']
  %s0 = inlined_call_operand.vmem [shape: f32[512,27], index: 0, kind: input, shape index: {}]
  %s1 = inlined_call_operand.vmem [shape: f32[27,128], index: 1, kind: input, shape index: {}]
  %s2 = inlined_call_operand.vmem [shape: f32[1,128], index: 2, kind: input, shape index: {}]
  %s3 = inlined_call_operand.vmem [shape: f32[1,128], index: 3, kind: input, shape index: {}]
  %s4 = inlined_call_operand.vmem [shape: f32[512,128], index: 4, kind: output, shape index: {}]
  %s5 = sld [smem:[#allocation0]]
  $region26: #{_lambda_.7} parent=0
    _
  %s7 = ssub.s32 1, %s5
  %s8 = scalar_select 0, %s7, %s5
  // Predicated region
  $region2: #{_lambda_.7} parent=0 // pred_check
    _
  $region3: #{_lambda_.7} parent=0 // pred_check_branch
    %10 = sbr.rel (0) target = $region5
  $region4: #{_lambda_.7} parent=0 // pred_region
    _
  $region5: #{_lambda_.7} parent=0 // pred_fallthru
    _
  // Predicated region
  $region6: #{_lambda_.7} parent=0 // pred_check
    _
  $region7: #{_lambda_.7} parent=0 // pred_check_branch
    %12 = sbr.rel (0) target = $region9
  $region8: #{_lambda_.7} parent=0 // pred_region
    _
  $region9: #{_lambda_.7} parent=0 // pred_fallthru
    _
  // Predicated region
  $region10: #{_lambda_.7} parent=0 // pred_check
    _
  $region11: #{_lambda_.7} parent=0 // pred_check_branch
    %14 = sbr.rel (0) target = $region13
  $region12: #{_lambda_.7} parent=0 // pred_region
    _
  $region13: #{_lambda_.7} parent=0 // pred_fallthru
    _
  // Predicated region
  $region14: #{_lambda_.7} parent=0 // pred_check
    _
  $region15: #{_lambda_.7} parent=0 // pred_check_branch
    %16 = sbr.rel (0) target = $region17
  $region16: #{_lambda_.7} parent=0 // pred_region
    _
  $region17: #{_lambda_.7} parent=0 // pred_fallthru
    _
  %v17 = vld [vmem:[%s0] sm:$0xff]
  %v18 = vld [vmem:[%s0 + $0x8] sm:$0xff]
  %v19 = vld [vmem:[%s0 + $0x10] sm:$0xff]
  %v20 = vld [vmem:[%s0 + $0x18] sm:$0xff]
  %v21 = vld [vmem:[%s0 + $0x20] sm:$0xff]
  %v22 = vld [vmem:[%s0 + $0x28] sm:$0xff]
  %v23 = vld [vmem:[%s0 + $0x30] sm:$0xff]
  %v24 = vld [vmem:[%s0 + $0x38] sm:$0xff]
  %v25 = vld [vmem:[%s0 + $0x40] sm:$0xff]
  %v26 = vld [vmem:[%s0 + $0x48] sm:$0xff]
  %v27 = vld [vmem:[%s0 + $0x50] sm:$0xff]
  %v28 = vld [vmem:[%s0 + $0x58] sm:$0xff]
  %v29 = vld [vmem:[%s0 + $0x60] sm:$0xff]
  %v30 = vld [vmem:[%s0 + $0x68] sm:$0xff]
  %v31 = vld [vmem:[%s0 + $0x70] sm:$0xff]
  %v32 = vld [vmem:[%s0 + $0x78] sm:$0xff]
  %v33 = vld [vmem:[%s0 + $0x80] sm:$0xff]
  %v34 = vld [vmem:[%s0 + $0x88] sm:$0xff]
  %v35 = vld [vmem:[%s0 + $0x90] sm:$0xff]
  %v36 = vld [vmem:[%s0 + $0x98] sm:$0xff]
  %v37 = vld [vmem:[%s0 + $0xa0] sm:$0xff]
  %v38 = vld [vmem:[%s0 + $0xa8] sm:$0xff]
  %v39 = vld [vmem:[%s0 + $0xb0] sm:$0xff]
  %v40 = vld [vmem:[%s0 + $0xb8] sm:$0xff]
  %v41 = vld [vmem:[%s0 + $0xc0] sm:$0xff]
  %v42 = vld [vmem:[%s0 + $0xc8] sm:$0xff]
  %v43 = vld [vmem:[%s0 + $0xd0] sm:$0xff]
  %v44 = vld [vmem:[%s0 + $0xd8] sm:$0xff]
  %v45 = vld [vmem:[%s0 + $0xe0] sm:$0xff]
  %v46 = vld [vmem:[%s0 + $0xe8] sm:$0xff]
  %v47 = vld [vmem:[%s0 + $0xf0] sm:$0xff]
  %v48 = vld [vmem:[%s0 + $0xf8] sm:$0xff]
  %v49 = vld [vmem:[%s0 + $0x100] sm:$0xff]
  %v50 = vld [vmem:[%s0 + $0x108] sm:$0xff]
  %v51 = vld [vmem:[%s0 + $0x110] sm:$0xff]
  %v52 = vld [vmem:[%s0 + $0x118] sm:$0xff]
  %v53 = vld [vmem:[%s0 + $0x120] sm:$0xff]
  %v54 = vld [vmem:[%s0 + $0x128] sm:$0xff]
  %v55 = vld [vmem:[%s0 + $0x130] sm:$0xff]
  %v56 = vld [vmem:[%s0 + $0x138] sm:$0xff]
  %v57 = vld [vmem:[%s0 + $0x140] sm:$0xff]
  %v58 = vld [vmem:[%s0 + $0x148] sm:$0xff]
  %v59 = vld [vmem:[%s0 + $0x150] sm:$0xff]
  %v60 = vld [vmem:[%s0 + $0x158] sm:$0xff]
  %v61 = vld [vmem:[%s0 + $0x160] sm:$0xff]
  %v62 = vld [vmem:[%s0 + $0x168] sm:$0xff]
  %v63 = vld [vmem:[%s0 + $0x170] sm:$0xff]
  %v64 = vld [vmem:[%s0 + $0x178] sm:$0xff]
  %v65 = vld [vmem:[%s0 + $0x180] sm:$0xff]
  %v66 = vld [vmem:[%s0 + $0x188] sm:$0xff]
  %v67 = vld [vmem:[%s0 + $0x190] sm:$0xff]
  %v68 = vld [vmem:[%s0 + $0x198] sm:$0xff]
  %v69 = vld [vmem:[%s0 + $0x1a0] sm:$0xff]
  %v70 = vld [vmem:[%s0 + $0x1a8] sm:$0xff]
  %v71 = vld [vmem:[%s0 + $0x1b0] sm:$0xff]
  %v72 = vld [vmem:[%s0 + $0x1b8] sm:$0xff]
  %v73 = vld [vmem:[%s0 + $0x1c0] sm:$0xff]
  %v74 = vld [vmem:[%s0 + $0x1c8] sm:$0xff]
  %v75 = vld [vmem:[%s0 + $0x1d0] sm:$0xff]
  %v76 = vld [vmem:[%s0 + $0x1d8] sm:$0xff]
  %v77 = vld [vmem:[%s0 + $0x1e0] sm:$0xff]
  %v78 = vld [vmem:[%s0 + $0x1e8] sm:$0xff]
  %v79 = vld [vmem:[%s0 + $0x1f0] sm:$0xff]
  %v80 = vld [vmem:[%s0 + $0x1f8] sm:$0xff]
  %v81 = vld [vmem:[%s1] sm:$0xff]
  %v82 = vld [vmem:[%s1 + $0x8] sm:$0xff]
  %v83 = vld [vmem:[%s1 + $0x10] sm:$0xff]
  %v84 = vld [vmem:[%s1 + $0x18] sm:$0x7]
  %vm85 = vcmask 220160
  %v87 = vsel %vm85, %v17, 0
  %v90 = vsel %vm85, %v18, 0
  %v93 = vsel %vm85, %v19, 0
  %v96 = vsel %vm85, %v20, 0
  %v99 = vsel %vm85, %v21, 0
  %v102 = vsel %vm85, %v22, 0
  %v105 = vsel %vm85, %v23, 0
  %v108 = vsel %vm85, %v24, 0
  %v111 = vsel %vm85, %v25, 0
  %v114 = vsel %vm85, %v26, 0
  %v117 = vsel %vm85, %v27, 0
  %v120 = vsel %vm85, %v28, 0
  %v123 = vsel %vm85, %v29, 0
  %v126 = vsel %vm85, %v30, 0
  %v129 = vsel %vm85, %v31, 0
  %v132 = vsel %vm85, %v32, 0
  %v135 = vsel %vm85, %v33, 0
  %v138 = vsel %vm85, %v34, 0
  %v141 = vsel %vm85, %v35, 0
  %v144 = vsel %vm85, %v36, 0
  %v147 = vsel %vm85, %v37, 0
  %v150 = vsel %vm85, %v38, 0
  %v153 = vsel %vm85, %v39, 0
  %v156 = vsel %vm85, %v40, 0
  %v159 = vsel %vm85, %v41, 0
  %v162 = vsel %vm85, %v42, 0
  %v165 = vsel %vm85, %v43, 0
  %v168 = vsel %vm85, %v44, 0
  %v171 = vsel %vm85, %v45, 0
  %v174 = vsel %vm85, %v46, 0
  %v177 = vsel %vm85, %v47, 0
  %v180 = vsel %vm85, %v48, 0
  %v183 = vsel %vm85, %v49, 0
  %v186 = vsel %vm85, %v50, 0
  %v189 = vsel %vm85, %v51, 0
  %v192 = vsel %vm85, %v52, 0
  %v195 = vsel %vm85, %v53, 0
  %v198 = vsel %vm85, %v54, 0
  %v201 = vsel %vm85, %v55, 0
  %v204 = vsel %vm85, %v56, 0
  %v207 = vsel %vm85, %v57, 0
  %v210 = vsel %vm85, %v58, 0
  %v213 = vsel %vm85, %v59, 0
  %v216 = vsel %vm85, %v60, 0
  %v219 = vsel %vm85, %v61, 0
  %v222 = vsel %vm85, %v62, 0
  %v225 = vsel %vm85, %v63, 0
  %v228 = vsel %vm85, %v64, 0
  %v231 = vsel %vm85, %v65, 0
  %v234 = vsel %vm85, %v66, 0
  %v237 = vsel %vm85, %v67, 0
  %v240 = vsel %vm85, %v68, 0
  %v243 = vsel %vm85, %v69, 0
  %v246 = vsel %vm85, %v70, 0
  %v249 = vsel %vm85, %v71, 0
  %v252 = vsel %vm85, %v72, 0
  %v255 = vsel %vm85, %v73, 0
  %v258 = vsel %vm85, %v74, 0
  %v261 = vsel %vm85, %v75, 0
  %v264 = vsel %vm85, %v76, 0
  %v267 = vsel %vm85, %v77, 0
  %v270 = vsel %vm85, %v78, 0
  %v273 = vsel %vm85, %v79, 0
  %v276 = vsel %vm85, %v80, 0
  %vm278 = vcmask 1042432
  %v280 = vsel %vm278, %v84, 0
  %282 = vmatpush.msra.mxu0 0.0
  %283 = vmatpush.msra.mxu0 0.0
  %284 = vmatpush.msra.mxu0 0.0
  %285 = vmatpush.msra.mxu0 0.0
  %286 = vmatpush.msra.mxu0 0.0
  %287 = vmatpush.msra.mxu0 0.0
  %288 = vmatpush.msra.mxu0 0.0
  %289 = vmatpush.msra.mxu0 0.0
  %290 = vmatpush.msra.mxu0 0.0
  %291 = vmatpush.msra.mxu0 0.0
  %292 = vmatpush.msra.mxu0 0.0
  %293 = vmatpush.msra.mxu0 0.0
  %294 = vmatpush.msra.mxu0 %v280
  %295 = vmatpush.msra.mxu0 %v83
  %296 = vmatpush.msra.mxu0 %v82
  %297 = vmatpush.msra.mxu0 %v81
  %298 = vmatmul.f32.gmra.mxu0 %v87
  %v299 = vpop.f32.mrf.mxu0
  %v300 = vadd.f32 0.0, %v299
  %301 = vmatmul.f32.gmra.mxu0 %v90
  %v302 = vpop.f32.mrf.mxu0
  %v303 = vadd.f32 0.0, %v302
  %304 = vmatmul.f32.gmra.mxu0 %v93
  %v305 = vpop.f32.mrf.mxu0
  %v306 = vadd.f32 0.0, %v305
  %307 = vmatmul.f32.gmra.mxu0 %v96
  %v308 = vpop.f32.mrf.mxu0
  %v309 = vadd.f32 0.0, %v308
  %310 = vmatmul.f32.gmra.mxu0 %v99
  %v311 = vpop.f32.mrf.mxu0
  %v312 = vadd.f32 0.0, %v311
  %313 = vmatmul.f32.gmra.mxu0 %v102
  %v314 = vpop.f32.mrf.mxu0
  %v315 = vadd.f32 0.0, %v314
  %316 = vmatmul.f32.gmra.mxu0 %v105
  %v317 = vpop.f32.mrf.mxu0
  %v318 = vadd.f32 0.0, %v317
  %319 = vmatmul.f32.gmra.mxu0 %v108
  %v320 = vpop.f32.mrf.mxu0
  %v321 = vadd.f32 0.0, %v320
  %322 = vmatmul.f32.gmra.mxu0 %v111
  %v323 = vpop.f32.mrf.mxu0
  %v324 = vadd.f32 0.0, %v323
  %325 = vmatmul.f32.gmra.mxu0 %v114
  %v326 = vpop.f32.mrf.mxu0
  %v327 = vadd.f32 0.0, %v326
  %328 = vmatmul.f32.gmra.mxu0 %v117
  %v329 = vpop.f32.mrf.mxu0
  %v330 = vadd.f32 0.0, %v329
  %331 = vmatmul.f32.gmra.mxu0 %v120
  %v332 = vpop.f32.mrf.mxu0
  %v333 = vadd.f32 0.0, %v332
  %334 = vmatmul.f32.gmra.mxu0 %v123
  %v335 = vpop.f32.mrf.mxu0
  %v336 = vadd.f32 0.0, %v335
  %337 = vmatmul.f32.gmra.mxu0 %v126
  %v338 = vpop.f32.mrf.mxu0
  %v339 = vadd.f32 0.0, %v338
  %340 = vmatmul.f32.gmra.mxu0 %v129
  %v341 = vpop.f32.mrf.mxu0
  %v342 = vadd.f32 0.0, %v341
  %343 = vmatmul.f32.gmra.mxu0 %v132
  %v344 = vpop.f32.mrf.mxu0
  %v345 = vadd.f32 0.0, %v344
  %346 = vmatmul.f32.gmra.mxu0 %v135
  %v347 = vpop.f32.mrf.mxu0
  %v348 = vadd.f32 0.0, %v347
  %349 = vmatmul.f32.gmra.mxu0 %v138
  %v350 = vpop.f32.mrf.mxu0
  %v351 = vadd.f32 0.0, %v350
  %352 = vmatmul.f32.gmra.mxu0 %v141
  %v353 = vpop.f32.mrf.mxu0
  %v354 = vadd.f32 0.0, %v353
  %355 = vmatmul.f32.gmra.mxu0 %v144
  %v356 = vpop.f32.mrf.mxu0
  %v357 = vadd.f32 0.0, %v356
  %358 = vmatmul.f32.gmra.mxu0 %v147
  %v359 = vpop.f32.mrf.mxu0
  %v360 = vadd.f32 0.0, %v359
  %361 = vmatmul.f32.gmra.mxu0 %v150
  %v362 = vpop.f32.mrf.mxu0
  %v363 = vadd.f32 0.0, %v362
  %364 = vmatmul.f32.gmra.mxu0 %v153
  %v365 = vpop.f32.mrf.mxu0
  %v366 = vadd.f32 0.0, %v365
  %367 = vmatmul.f32.gmra.mxu0 %v156
  %v368 = vpop.f32.mrf.mxu0
  %v369 = vadd.f32 0.0, %v368
  %370 = vmatmul.f32.gmra.mxu0 %v159
  %v371 = vpop.f32.mrf.mxu0
  %v372 = vadd.f32 0.0, %v371
  %373 = vmatmul.f32.gmra.mxu0 %v162
  %v374 = vpop.f32.mrf.mxu0
  %v375 = vadd.f32 0.0, %v374
  %376 = vmatmul.f32.gmra.mxu0 %v165
  %v377 = vpop.f32.mrf.mxu0
  %v378 = vadd.f32 0.0, %v377
  %379 = vmatmul.f32.gmra.mxu0 %v168
  %v380 = vpop.f32.mrf.mxu0
  %v381 = vadd.f32 0.0, %v380
  %382 = vmatmul.f32.gmra.mxu0 %v171
  %v383 = vpop.f32.mrf.mxu0
  %v384 = vadd.f32 0.0, %v383
  %385 = vmatmul.f32.gmra.mxu0 %v174
  %v386 = vpop.f32.mrf.mxu0
  %v387 = vadd.f32 0.0, %v386
  %388 = vmatmul.f32.gmra.mxu0 %v177
  %v389 = vpop.f32.mrf.mxu0
  %v390 = vadd.f32 0.0, %v389
  %391 = vmatmul.f32.gmra.mxu0 %v180
  %v392 = vpop.f32.mrf.mxu0
  %v393 = vadd.f32 0.0, %v392
  %394 = vmatmul.f32.gmra.mxu0 %v183
  %v395 = vpop.f32.mrf.mxu0
  %v396 = vadd.f32 0.0, %v395
  %397 = vmatmul.f32.gmra.mxu0 %v186
  %v398 = vpop.f32.mrf.mxu0
  %v399 = vadd.f32 0.0, %v398
  %400 = vmatmul.f32.gmra.mxu0 %v189
  %v401 = vpop.f32.mrf.mxu0
  %v402 = vadd.f32 0.0, %v401
  %403 = vmatmul.f32.gmra.mxu0 %v192
  %v404 = vpop.f32.mrf.mxu0
  %v405 = vadd.f32 0.0, %v404
  %406 = vmatmul.f32.gmra.mxu0 %v195
  %v407 = vpop.f32.mrf.mxu0
  %v408 = vadd.f32 0.0, %v407
  %409 = vmatmul.f32.gmra.mxu0 %v198
  %v410 = vpop.f32.mrf.mxu0
  %v411 = vadd.f32 0.0, %v410
  %412 = vmatmul.f32.gmra.mxu0 %v201
  %v413 = vpop.f32.mrf.mxu0
  %v414 = vadd.f32 0.0, %v413
  %415 = vmatmul.f32.gmra.mxu0 %v204
  %v416 = vpop.f32.mrf.mxu0
  %v417 = vadd.f32 0.0, %v416
  %418 = vmatmul.f32.gmra.mxu0 %v207
  %v419 = vpop.f32.mrf.mxu0
  %v420 = vadd.f32 0.0, %v419
  %421 = vmatmul.f32.gmra.mxu0 %v210
  %v422 = vpop.f32.mrf.mxu0
  %v423 = vadd.f32 0.0, %v422
  %424 = vmatmul.f32.gmra.mxu0 %v213
  %v425 = vpop.f32.mrf.mxu0
  %v426 = vadd.f32 0.0, %v425
  %427 = vmatmul.f32.gmra.mxu0 %v216
  %v428 = vpop.f32.mrf.mxu0
  %v429 = vadd.f32 0.0, %v428
  %430 = vmatmul.f32.gmra.mxu0 %v219
  %v431 = vpop.f32.mrf.mxu0
  %v432 = vadd.f32 0.0, %v431
  %433 = vmatmul.f32.gmra.mxu0 %v222
  %v434 = vpop.f32.mrf.mxu0
  %v435 = vadd.f32 0.0, %v434
  %436 = vmatmul.f32.gmra.mxu0 %v225
  %v437 = vpop.f32.mrf.mxu0
  %v438 = vadd.f32 0.0, %v437
  %439 = vmatmul.f32.gmra.mxu0 %v228
  %v440 = vpop.f32.mrf.mxu0
  %v441 = vadd.f32 0.0, %v440
  %442 = vmatmul.f32.gmra.mxu0 %v231
  %v443 = vpop.f32.mrf.mxu0
  %v444 = vadd.f32 0.0, %v443
  %445 = vmatmul.f32.gmra.mxu0 %v234
  %v446 = vpop.f32.mrf.mxu0
  %v447 = vadd.f32 0.0, %v446
  %448 = vmatmul.f32.gmra.mxu0 %v237
  %v449 = vpop.f32.mrf.mxu0
  %v450 = vadd.f32 0.0, %v449
  %451 = vmatmul.f32.gmra.mxu0 %v240
  %v452 = vpop.f32.mrf.mxu0
  %v453 = vadd.f32 0.0, %v452
  %454 = vmatmul.f32.gmra.mxu0 %v243
  %v455 = vpop.f32.mrf.mxu0
  %v456 = vadd.f32 0.0, %v455
  %457 = vmatmul.f32.gmra.mxu0 %v246
  %v458 = vpop.f32.mrf.mxu0
  %v459 = vadd.f32 0.0, %v458
  %460 = vmatmul.f32.gmra.mxu0 %v249
  %v461 = vpop.f32.mrf.mxu0
  %v462 = vadd.f32 0.0, %v461
  %463 = vmatmul.f32.gmra.mxu0 %v252
  %v464 = vpop.f32.mrf.mxu0
  %v465 = vadd.f32 0.0, %v464
  %466 = vmatmul.f32.gmra.mxu0 %v255
  %v467 = vpop.f32.mrf.mxu0
  %v468 = vadd.f32 0.0, %v467
  %469 = vmatmul.f32.gmra.mxu0 %v258
  %v470 = vpop.f32.mrf.mxu0
  %v471 = vadd.f32 0.0, %v470
  %472 = vmatmul.f32.gmra.mxu0 %v261
  %v473 = vpop.f32.mrf.mxu0
  %v474 = vadd.f32 0.0, %v473
  %475 = vmatmul.f32.gmra.mxu0 %v264
  %v476 = vpop.f32.mrf.mxu0
  %v477 = vadd.f32 0.0, %v476
  %478 = vmatmul.f32.gmra.mxu0 %v267
  %v479 = vpop.f32.mrf.mxu0
  %v480 = vadd.f32 0.0, %v479
  %481 = vmatmul.f32.gmra.mxu0 %v270
  %v482 = vpop.f32.mrf.mxu0
  %v483 = vadd.f32 0.0, %v482
  %484 = vmatmul.f32.gmra.mxu0 %v273
  %v485 = vpop.f32.mrf.mxu0
  %v486 = vadd.f32 0.0, %v485
  %487 = vmatmul.f32.gmra.mxu0 %v276
  %v488 = vpop.f32.mrf.mxu0
  %v489 = vadd.f32 0.0, %v488
  %490 = vdwg.mxu0
  %v491 = vadd.f32 %v300, %v303
  %v492 = vadd.f32 %v491, %v306
  %v493 = vadd.f32 %v492, %v309
  %v494 = vadd.f32 %v493, %v312
  %v495 = vadd.f32 %v494, %v315
  %v496 = vadd.f32 %v495, %v318
  %v497 = vadd.f32 %v496, %v321
  %v498 = vadd.f32 %v497, %v324
  %v499 = vadd.f32 %v498, %v327
  %v500 = vadd.f32 %v499, %v330
  %v501 = vadd.f32 %v500, %v333
  %v502 = vadd.f32 %v501, %v336
  %v503 = vadd.f32 %v502, %v339
  %v504 = vadd.f32 %v503, %v342
  %v505 = vadd.f32 %v504, %v345
  %v506 = vadd.f32 %v505, %v348
  %v507 = vadd.f32 %v506, %v351
  %v508 = vadd.f32 %v507, %v354
  %v509 = vadd.f32 %v508, %v357
  %v510 = vadd.f32 %v509, %v360
  %v511 = vadd.f32 %v510, %v363
  %v512 = vadd.f32 %v511, %v366
  %v513 = vadd.f32 %v512, %v369
  %v514 = vadd.f32 %v513, %v372
  %v515 = vadd.f32 %v514, %v375
  %v516 = vadd.f32 %v515, %v378
  %v517 = vadd.f32 %v516, %v381
  %v518 = vadd.f32 %v517, %v384
  %v519 = vadd.f32 %v518, %v387
  %v520 = vadd.f32 %v519, %v390
  %v521 = vadd.f32 %v520, %v393
  %v522 = vadd.f32 %v521, %v396
  %v523 = vadd.f32 %v522, %v399
  %v524 = vadd.f32 %v523, %v402
  %v525 = vadd.f32 %v524, %v405
  %v526 = vadd.f32 %v525, %v408
  %v527 = vadd.f32 %v526, %v411
  %v528 = vadd.f32 %v527, %v414
  %v529 = vadd.f32 %v528, %v417
  %v530 = vadd.f32 %v529, %v420
  %v531 = vadd.f32 %v530, %v423
  %v532 = vadd.f32 %v531, %v426
  %v533 = vadd.f32 %v532, %v429
  %v534 = vadd.f32 %v533, %v432
  %v535 = vadd.f32 %v534, %v435
  %v536 = vadd.f32 %v535, %v438
  %v537 = vadd.f32 %v536, %v441
  %v538 = vadd.f32 %v537, %v444
  %v539 = vadd.f32 %v538, %v447
  %v540 = vadd.f32 %v539, %v450
  %v541 = vadd.f32 %v540, %v453
  %v542 = vadd.f32 %v541, %v456
  %v543 = vadd.f32 %v542, %v459
  %v544 = vadd.f32 %v543, %v462
  %v545 = vadd.f32 %v544, %v465
  %v546 = vadd.f32 %v545, %v468
  %v547 = vadd.f32 %v546, %v471
  %v548 = vadd.f32 %v547, %v474
  %v549 = vadd.f32 %v548, %v477
  %v550 = vadd.f32 %v549, %v480
  %v551 = vadd.f32 %v550, %v483
  %v552 = vadd.f32 %v551, %v486
  %v553 = vadd.f32 %v552, %v489
  %v554 = vrot.slane %v553, 4
  %v555 = vadd.f32 %v553, %v554
  %v556 = vrot.slane %v555, 2
  %v557 = vadd.f32 %v555, %v556
  %v558 = vrot.slane %v557, 1
  %v559 = vadd.f32 %v557, %v558
  %v560 = vmul.f32 %v559, 0.001953125
  %v561 = vmul.f32 %v300, %v300
  %v562 = vmul.f32 %v303, %v303
  %v563 = vmul.f32 %v306, %v306
  %v564 = vmul.f32 %v309, %v309
  %v565 = vmul.f32 %v312, %v312
  %v566 = vmul.f32 %v315, %v315
  %v567 = vmul.f32 %v318, %v318
  %v568 = vmul.f32 %v321, %v321
  %v569 = vmul.f32 %v324, %v324
  %v570 = vmul.f32 %v327, %v327
  %v571 = vmul.f32 %v330, %v330
  %v572 = vmul.f32 %v333, %v333
  %v573 = vmul.f32 %v336, %v336
  %v574 = vmul.f32 %v339, %v339
  %v575 = vmul.f32 %v342, %v342
  %v576 = vmul.f32 %v345, %v345
  %v577 = vmul.f32 %v348, %v348
  %v578 = vmul.f32 %v351, %v351
  %v579 = vmul.f32 %v354, %v354
  %v580 = vmul.f32 %v357, %v357
  %v581 = vmul.f32 %v360, %v360
  %v582 = vmul.f32 %v363, %v363
  %v583 = vmul.f32 %v366, %v366
  %v584 = vmul.f32 %v369, %v369
  %v585 = vmul.f32 %v372, %v372
  %v586 = vmul.f32 %v375, %v375
  %v587 = vmul.f32 %v378, %v378
  %v588 = vmul.f32 %v381, %v381
  %v589 = vmul.f32 %v384, %v384
  %v590 = vmul.f32 %v387, %v387
  %v591 = vmul.f32 %v390, %v390
  %v592 = vmul.f32 %v393, %v393
  %v593 = vmul.f32 %v396, %v396
  %v594 = vmul.f32 %v399, %v399
  %v595 = vmul.f32 %v402, %v402
  %v596 = vmul.f32 %v405, %v405
  %v597 = vmul.f32 %v408, %v408
  %v598 = vmul.f32 %v411, %v411
  %v599 = vmul.f32 %v414, %v414
  %v600 = vmul.f32 %v417, %v417
  %v601 = vmul.f32 %v420, %v420
  %v602 = vmul.f32 %v423, %v423
  %v603 = vmul.f32 %v426, %v426
  %v604 = vmul.f32 %v429, %v429
  %v605 = vmul.f32 %v432, %v432
  %v606 = vmul.f32 %v435, %v435
  %v607 = vmul.f32 %v438, %v438
  %v608 = vmul.f32 %v441, %v441
  %v609 = vmul.f32 %v444, %v444
  %v610 = vmul.f32 %v447, %v447
  %v611 = vmul.f32 %v450, %v450
  %v612 = vmul.f32 %v453, %v453
  %v613 = vmul.f32 %v456, %v456
  %v614 = vmul.f32 %v459, %v459
  %v615 = vmul.f32 %v462, %v462
  %v616 = vmul.f32 %v465, %v465
  %v617 = vmul.f32 %v468, %v468
  %v618 = vmul.f32 %v471, %v471
  %v619 = vmul.f32 %v474, %v474
  %v620 = vmul.f32 %v477, %v477
  %v621 = vmul.f32 %v480, %v480
  %v622 = vmul.f32 %v483, %v483
  %v623 = vmul.f32 %v486, %v486
  %v624 = vmul.f32 %v489, %v489
  %v625 = vadd.f32 %v561, %v562
  %v626 = vadd.f32 %v625, %v563
  %v627 = vadd.f32 %v626, %v564
  %v628 = vadd.f32 %v627, %v565
  %v629 = vadd.f32 %v628, %v566
  %v630 = vadd.f32 %v629, %v567
  %v631 = vadd.f32 %v630, %v568
  %v632 = vadd.f32 %v631, %v569
  %v633 = vadd.f32 %v632, %v570
  %v634 = vadd.f32 %v633, %v571
  %v635 = vadd.f32 %v634, %v572
  %v636 = vadd.f32 %v635, %v573
  %v637 = vadd.f32 %v636, %v574
  %v638 = vadd.f32 %v637, %v575
  %v639 = vadd.f32 %v638, %v576
  %v640 = vadd.f32 %v639, %v577
  %v641 = vadd.f32 %v640, %v578
  %v642 = vadd.f32 %v641, %v579
  %v643 = vadd.f32 %v642, %v580
  %v644 = vadd.f32 %v643, %v581
  %v645 = vadd.f32 %v644, %v582
  %v646 = vadd.f32 %v645, %v583
  %v647 = vadd.f32 %v646, %v584
  %v648 = vadd.f32 %v647, %v585
  %v649 = vadd.f32 %v648, %v586
  %v650 = vadd.f32 %v649, %v587
  %v651 = vadd.f32 %v650, %v588
  %v652 = vadd.f32 %v651, %v589
  %v653 = vadd.f32 %v652, %v590
  %v654 = vadd.f32 %v653, %v591
  %v655 = vadd.f32 %v654, %v592
  %v656 = vadd.f32 %v655, %v593
  %v657 = vadd.f32 %v656, %v594
  %v658 = vadd.f32 %v657, %v595
  %v659 = vadd.f32 %v658, %v596
  %v660 = vadd.f32 %v659, %v597
  %v661 = vadd.f32 %v660, %v598
  %v662 = vadd.f32 %v661, %v599
  %v663 = vadd.f32 %v662, %v600
  %v664 = vadd.f32 %v663, %v601
  %v665 = vadd.f32 %v664, %v602
  %v666 = vadd.f32 %v665, %v603
  %v667 = vadd.f32 %v666, %v604
  %v668 = vadd.f32 %v667, %v605
  %v669 = vadd.f32 %v668, %v606
  %v670 = vadd.f32 %v669, %v607
  %v671 = vadd.f32 %v670, %v608
  %v672 = vadd.f32 %v671, %v609
  %v673 = vadd.f32 %v672, %v610
  %v674 = vadd.f32 %v673, %v611
  %v675 = vadd.f32 %v674, %v612
  %v676 = vadd.f32 %v675, %v613
  %v677 = vadd.f32 %v676, %v614
  %v678 = vadd.f32 %v677, %v615
  %v679 = vadd.f32 %v678, %v616
  %v680 = vadd.f32 %v679, %v617
  %v681 = vadd.f32 %v680, %v618
  %v682 = vadd.f32 %v681, %v619
  %v683 = vadd.f32 %v682, %v620
  %v684 = vadd.f32 %v683, %v621
  %v685 = vadd.f32 %v684, %v622
  %v686 = vadd.f32 %v685, %v623
  %v687 = vadd.f32 %v686, %v624
  %v688 = vrot.slane %v687, 4
  %v689 = vadd.f32 %v687, %v688
  %v690 = vrot.slane %v689, 2
  %v691 = vadd.f32 %v689, %v690
  %v692 = vrot.slane %v691, 1
  %v693 = vadd.f32 %v691, %v692
  %v694 = vmul.f32 %v693, 0.001953125
  %v695 = vmul.f32 %v560, %v560
  %v696 = vsub.f32 %v694, %v695
  %v697 = vmax.f32 %v696, 0.0
  %v698 = vld [vmem:[%s2] sm:$0x1]
  %v699 = vadd.f32 %v697, 1e-05
  %v700 = vrsqrt.pop %v699
  %v701 = vmul.f32 %v700, %v699
  %v702 = vmul.f32 %v701, %v700
  %v703 = vmul.f32 0.5, %v702
  %v704 = vsub.f32 1.5, %v703
  %v705 = vmul.f32 %v700, %v704
  %vm706 = vweird.f32 %v699
  %vm707 = vweird.f32 %v700
  %vm708 = vmor %vm706, %vm707
  %v709 = vsel %vm708, %v700, %v705
  %v710 = vmul.f32 %v698, %v709
  %v711 = vld [vmem:[%s3] sm:$0x1]
  %v712 = vmul.f32 %v560, %v710
  %v713 = vsub.f32 %v711, %v712
  %v715 = vperm.slane %v710, 0
  %v717 = vmul.f32 %v300, %v715
  %v718 = vmul.f32 %v303, %v715
  %v719 = vmul.f32 %v306, %v715
  %v720 = vmul.f32 %v309, %v715
  %v721 = vmul.f32 %v312, %v715
  %v722 = vmul.f32 %v315, %v715
  %v723 = vmul.f32 %v318, %v715
  %v724 = vmul.f32 %v321, %v715
  %v725 = vmul.f32 %v324, %v715
  %v726 = vmul.f32 %v327, %v715
  %v727 = vmul.f32 %v330, %v715
  %v728 = vmul.f32 %v333, %v715
  %v729 = vmul.f32 %v336, %v715
  %v730 = vmul.f32 %v339, %v715
  %v731 = vmul.f32 %v342, %v715
  %v732 = vmul.f32 %v345, %v715
  %v733 = vmul.f32 %v348, %v715
  %v734 = vmul.f32 %v351, %v715
  %v735 = vmul.f32 %v354, %v715
  %v736 = vmul.f32 %v357, %v715
  %v737 = vmul.f32 %v360, %v715
  %v738 = vmul.f32 %v363, %v715
  %v739 = vmul.f32 %v366, %v715
  %v740 = vmul.f32 %v369, %v715
  %v741 = vmul.f32 %v372, %v715
  %v742 = vmul.f32 %v375, %v715
  %v743 = vmul.f32 %v378, %v715
  %v744 = vmul.f32 %v381, %v715
  %v745 = vmul.f32 %v384, %v715
  %v746 = vmul.f32 %v387, %v715
  %v747 = vmul.f32 %v390, %v715
  %v748 = vmul.f32 %v393, %v715
  %v749 = vmul.f32 %v396, %v715
  %v750 = vmul.f32 %v399, %v715
  %v751 = vmul.f32 %v402, %v715
  %v752 = vmul.f32 %v405, %v715
  %v753 = vmul.f32 %v408, %v715
  %v754 = vmul.f32 %v411, %v715
  %v755 = vmul.f32 %v414, %v715
  %v756 = vmul.f32 %v417, %v715
  %v757 = vmul.f32 %v420, %v715
  %v758 = vmul.f32 %v423, %v715
  %v759 = vmul.f32 %v426, %v715
  %v760 = vmul.f32 %v429, %v715
  %v761 = vmul.f32 %v432, %v715
  %v762 = vmul.f32 %v435, %v715
  %v763 = vmul.f32 %v438, %v715
  %v764 = vmul.f32 %v441, %v715
  %v765 = vmul.f32 %v444, %v715
  %v766 = vmul.f32 %v447, %v715
  %v767 = vmul.f32 %v450, %v715
  %v768 = vmul.f32 %v453, %v715
  %v769 = vmul.f32 %v456, %v715
  %v770 = vmul.f32 %v459, %v715
  %v771 = vmul.f32 %v462, %v715
  %v772 = vmul.f32 %v465, %v715
  %v773 = vmul.f32 %v468, %v715
  %v774 = vmul.f32 %v471, %v715
  %v775 = vmul.f32 %v474, %v715
  %v776 = vmul.f32 %v477, %v715
  %v777 = vmul.f32 %v480, %v715
  %v778 = vmul.f32 %v483, %v715
  %v779 = vmul.f32 %v486, %v715
  %v780 = vmul.f32 %v489, %v715
  %v782 = vperm.slane %v713, 0
  %v784 = vadd.f32 %v717, %v782
  %v785 = vadd.f32 %v718, %v782
  %v786 = vadd.f32 %v719, %v782
  %v787 = vadd.f32 %v720, %v782
  %v788 = vadd.f32 %v721, %v782
  %v789 = vadd.f32 %v722, %v782
  %v790 = vadd.f32 %v723, %v782
  %v791 = vadd.f32 %v724, %v782
  %v792 = vadd.f32 %v725, %v782
  %v793 = vadd.f32 %v726, %v782
  %v794 = vadd.f32 %v727, %v782
  %v795 = vadd.f32 %v728, %v782
  %v796 = vadd.f32 %v729, %v782
  %v797 = vadd.f32 %v730, %v782
  %v798 = vadd.f32 %v731, %v782
  %v799 = vadd.f32 %v732, %v782
  %v800 = vadd.f32 %v733, %v782
  %v801 = vadd.f32 %v734, %v782
  %v802 = vadd.f32 %v735, %v782
  %v803 = vadd.f32 %v736, %v782
  %v804 = vadd.f32 %v737, %v782
  %v805 = vadd.f32 %v738, %v782
  %v806 = vadd.f32 %v739, %v782
  %v807 = vadd.f32 %v740, %v782
  %v808 = vadd.f32 %v741, %v782
  %v809 = vadd.f32 %v742, %v782
  %v810 = vadd.f32 %v743, %v782
  %v811 = vadd.f32 %v744, %v782
  %v812 = vadd.f32 %v745, %v782
  %v813 = vadd.f32 %v746, %v782
  %v814 = vadd.f32 %v747, %v782
  %v815 = vadd.f32 %v748, %v782
  %v816 = vadd.f32 %v749, %v782
  %v817 = vadd.f32 %v750, %v782
  %v818 = vadd.f32 %v751, %v782
  %v819 = vadd.f32 %v752, %v782
  %v820 = vadd.f32 %v753, %v782
  %v821 = vadd.f32 %v754, %v782
  %v822 = vadd.f32 %v755, %v782
  %v823 = vadd.f32 %v756, %v782
  %v824 = vadd.f32 %v757, %v782
  %v825 = vadd.f32 %v758, %v782
  %v826 = vadd.f32 %v759, %v782
  %v827 = vadd.f32 %v760, %v782
  %v828 = vadd.f32 %v761, %v782
  %v829 = vadd.f32 %v762, %v782
  %v830 = vadd.f32 %v763, %v782
  %v831 = vadd.f32 %v764, %v782
  %v832 = vadd.f32 %v765, %v782
  %v833 = vadd.f32 %v766, %v782
  %v834 = vadd.f32 %v767, %v782
  %v835 = vadd.f32 %v768, %v782
  %v836 = vadd.f32 %v769, %v782
  %v837 = vadd.f32 %v770, %v782
  %v838 = vadd.f32 %v771, %v782
  %v839 = vadd.f32 %v772, %v782
  %v840 = vadd.f32 %v773, %v782
  %v841 = vadd.f32 %v774, %v782
  %v842 = vadd.f32 %v775, %v782
  %v843 = vadd.f32 %v776, %v782
  %v844 = vadd.f32 %v777, %v782
  %v845 = vadd.f32 %v778, %v782
  %v846 = vadd.f32 %v779, %v782
  %v847 = vadd.f32 %v780, %v782
  %vm848 = vcmp.gt.f32.partialorder %v784, 0.0
  %vm849 = vcmp.gt.f32.partialorder %v785, 0.0
  %vm850 = vcmp.gt.f32.partialorder %v786, 0.0
  %vm851 = vcmp.gt.f32.partialorder %v787, 0.0
  %vm852 = vcmp.gt.f32.partialorder %v788, 0.0
  %vm853 = vcmp.gt.f32.partialorder %v789, 0.0
  %vm854 = vcmp.gt.f32.partialorder %v790, 0.0
  %vm855 = vcmp.gt.f32.partialorder %v791, 0.0
  %vm856 = vcmp.gt.f32.partialorder %v792, 0.0
  %vm857 = vcmp.gt.f32.partialorder %v793, 0.0
  %vm858 = vcmp.gt.f32.partialorder %v794, 0.0
  %vm859 = vcmp.gt.f32.partialorder %v795, 0.0
  %vm860 = vcmp.gt.f32.partialorder %v796, 0.0
  %vm861 = vcmp.gt.f32.partialorder %v797, 0.0
  %vm862 = vcmp.gt.f32.partialorder %v798, 0.0
  %vm863 = vcmp.gt.f32.partialorder %v799, 0.0
  %vm864 = vcmp.gt.f32.partialorder %v800, 0.0
  %vm865 = vcmp.gt.f32.partialorder %v801, 0.0
  %vm866 = vcmp.gt.f32.partialorder %v802, 0.0
  %vm867 = vcmp.gt.f32.partialorder %v803, 0.0
  %vm868 = vcmp.gt.f32.partialorder %v804, 0.0
  %vm869 = vcmp.gt.f32.partialorder %v805, 0.0
  %vm870 = vcmp.gt.f32.partialorder %v806, 0.0
  %vm871 = vcmp.gt.f32.partialorder %v807, 0.0
  %vm872 = vcmp.gt.f32.partialorder %v808, 0.0
  %vm873 = vcmp.gt.f32.partialorder %v809, 0.0
  %vm874 = vcmp.gt.f32.partialorder %v810, 0.0
  %vm875 = vcmp.gt.f32.partialorder %v811, 0.0
  %vm876 = vcmp.gt.f32.partialorder %v812, 0.0
  %vm877 = vcmp.gt.f32.partialorder %v813, 0.0
  %vm878 = vcmp.gt.f32.partialorder %v814, 0.0
  %vm879 = vcmp.gt.f32.partialorder %v815, 0.0
  %vm880 = vcmp.gt.f32.partialorder %v816, 0.0
  %vm881 = vcmp.gt.f32.partialorder %v817, 0.0
  %vm882 = vcmp.gt.f32.partialorder %v818, 0.0
  %vm883 = vcmp.gt.f32.partialorder %v819, 0.0
  %vm884 = vcmp.gt.f32.partialorder %v820, 0.0
  %vm885 = vcmp.gt.f32.partialorder %v821, 0.0
  %vm886 = vcmp.gt.f32.partialorder %v822, 0.0
  %vm887 = vcmp.gt.f32.partialorder %v823, 0.0
  %vm888 = vcmp.gt.f32.partialorder %v824, 0.0
  %vm889 = vcmp.gt.f32.partialorder %v825, 0.0
  %vm890 = vcmp.gt.f32.partialorder %v826, 0.0
  %vm891 = vcmp.gt.f32.partialorder %v827, 0.0
  %vm892 = vcmp.gt.f32.partialorder %v828, 0.0
  %vm893 = vcmp.gt.f32.partialorder %v829, 0.0
  %vm894 = vcmp.gt.f32.partialorder %v830, 0.0
  %vm895 = vcmp.gt.f32.partialorder %v831, 0.0
  %vm896 = vcmp.gt.f32.partialorder %v832, 0.0
  %vm897 = vcmp.gt.f32.partialorder %v833, 0.0
  %vm898 = vcmp.gt.f32.partialorder %v834, 0.0
  %vm899 = vcmp.gt.f32.partialorder %v835, 0.0
  %vm900 = vcmp.gt.f32.partialorder %v836, 0.0
  %vm901 = vcmp.gt.f32.partialorder %v837, 0.0
  %vm902 = vcmp.gt.f32.partialorder %v838, 0.0
  %vm903 = vcmp.gt.f32.partialorder %v839, 0.0
  %vm904 = vcmp.gt.f32.partialorder %v840, 0.0
  %vm905 = vcmp.gt.f32.partialorder %v841, 0.0
  %vm906 = vcmp.gt.f32.partialorder %v842, 0.0
  %vm907 = vcmp.gt.f32.partialorder %v843, 0.0
  %vm908 = vcmp.gt.f32.partialorder %v844, 0.0
  %vm909 = vcmp.gt.f32.partialorder %v845, 0.0
  %vm910 = vcmp.gt.f32.partialorder %v846, 0.0
  %vm911 = vcmp.gt.f32.partialorder %v847, 0.0
  %v912 = vmul.f32 %v784, 0.1
  %v913 = vmul.f32 %v785, 0.1
  %v914 = vmul.f32 %v786, 0.1
  %v915 = vmul.f32 %v787, 0.1
  %v916 = vmul.f32 %v788, 0.1
  %v917 = vmul.f32 %v789, 0.1
  %v918 = vmul.f32 %v790, 0.1
  %v919 = vmul.f32 %v791, 0.1
  %v920 = vmul.f32 %v792, 0.1
  %v921 = vmul.f32 %v793, 0.1
  %v922 = vmul.f32 %v794, 0.1
  %v923 = vmul.f32 %v795, 0.1
  %v924 = vmul.f32 %v796, 0.1
  %v925 = vmul.f32 %v797, 0.1
  %v926 = vmul.f32 %v798, 0.1
  %v927 = vmul.f32 %v799, 0.1
  %v928 = vmul.f32 %v800, 0.1
  %v929 = vmul.f32 %v801, 0.1
  %v930 = vmul.f32 %v802, 0.1
  %v931 = vmul.f32 %v803, 0.1
  %v932 = vmul.f32 %v804, 0.1
  %v933 = vmul.f32 %v805, 0.1
  %v934 = vmul.f32 %v806, 0.1
  %v935 = vmul.f32 %v807, 0.1
  %v936 = vmul.f32 %v808, 0.1
  %v937 = vmul.f32 %v809, 0.1
  %v938 = vmul.f32 %v810, 0.1
  %v939 = vmul.f32 %v811, 0.1
  %v940 = vmul.f32 %v812, 0.1
  %v941 = vmul.f32 %v813, 0.1
  %v942 = vmul.f32 %v814, 0.1
  %v943 = vmul.f32 %v815, 0.1
  %v944 = vmul.f32 %v816, 0.1
  %v945 = vmul.f32 %v817, 0.1
  %v946 = vmul.f32 %v818, 0.1
  %v947 = vmul.f32 %v819, 0.1
  %v948 = vmul.f32 %v820, 0.1
  %v949 = vmul.f32 %v821, 0.1
  %v950 = vmul.f32 %v822, 0.1
  %v951 = vmul.f32 %v823, 0.1
  %v952 = vmul.f32 %v824, 0.1
  %v953 = vmul.f32 %v825, 0.1
  %v954 = vmul.f32 %v826, 0.1
  %v955 = vmul.f32 %v827, 0.1
  %v956 = vmul.f32 %v828, 0.1
  %v957 = vmul.f32 %v829, 0.1
  %v958 = vmul.f32 %v830, 0.1
  %v959 = vmul.f32 %v831, 0.1
  %v960 = vmul.f32 %v832, 0.1
  %v961 = vmul.f32 %v833, 0.1
  %v962 = vmul.f32 %v834, 0.1
  %v963 = vmul.f32 %v835, 0.1
  %v964 = vmul.f32 %v836, 0.1
  %v965 = vmul.f32 %v837, 0.1
  %v966 = vmul.f32 %v838, 0.1
  %v967 = vmul.f32 %v839, 0.1
  %v968 = vmul.f32 %v840, 0.1
  %v969 = vmul.f32 %v841, 0.1
  %v970 = vmul.f32 %v842, 0.1
  %v971 = vmul.f32 %v843, 0.1
  %v972 = vmul.f32 %v844, 0.1
  %v973 = vmul.f32 %v845, 0.1
  %v974 = vmul.f32 %v846, 0.1
  %v975 = vmul.f32 %v847, 0.1
  %v976 = vsel %vm848, %v784, %v912
  %v977 = vsel %vm849, %v785, %v913
  %v978 = vsel %vm850, %v786, %v914
  %v979 = vsel %vm851, %v787, %v915
  %v980 = vsel %vm852, %v788, %v916
  %v981 = vsel %vm853, %v789, %v917
  %v982 = vsel %vm854, %v790, %v918
  %v983 = vsel %vm855, %v791, %v919
  %v984 = vsel %vm856, %v792, %v920
  %v985 = vsel %vm857, %v793, %v921
  %v986 = vsel %vm858, %v794, %v922
  %v987 = vsel %vm859, %v795, %v923
  %v988 = vsel %vm860, %v796, %v924
  %v989 = vsel %vm861, %v797, %v925
  %v990 = vsel %vm862, %v798, %v926
  %v991 = vsel %vm863, %v799, %v927
  %v992 = vsel %vm864, %v800, %v928
  %v993 = vsel %vm865, %v801, %v929
  %v994 = vsel %vm866, %v802, %v930
  %v995 = vsel %vm867, %v803, %v931
  %v996 = vsel %vm868, %v804, %v932
  %v997 = vsel %vm869, %v805, %v933
  %v998 = vsel %vm870, %v806, %v934
  %v999 = vsel %vm871, %v807, %v935
  %v1000 = vsel %vm872, %v808, %v936
  %v1001 = vsel %vm873, %v809, %v937
  %v1002 = vsel %vm874, %v810, %v938
  %v1003 = vsel %vm875, %v811, %v939
  %v1004 = vsel %vm876, %v812, %v940
  %v1005 = vsel %vm877, %v813, %v941
  %v1006 = vsel %vm878, %v814, %v942
  %v1007 = vsel %vm879, %v815, %v943
  %v1008 = vsel %vm880, %v816, %v944
  %v1009 = vsel %vm881, %v817, %v945
  %v1010 = vsel %vm882, %v818, %v946
  %v1011 = vsel %vm883, %v819, %v947
  %v1012 = vsel %vm884, %v820, %v948
  %v1013 = vsel %vm885, %v821, %v949
  %v1014 = vsel %vm886, %v822, %v950
  %v1015 = vsel %vm887, %v823, %v951
  %v1016 = vsel %vm888, %v824, %v952
  %v1017 = vsel %vm889, %v825, %v953
  %v1018 = vsel %vm890, %v826, %v954
  %v1019 = vsel %vm891, %v827, %v955
  %v1020 = vsel %vm892, %v828, %v956
  %v1021 = vsel %vm893, %v829, %v957
  %v1022 = vsel %vm894, %v830, %v958
  %v1023 = vsel %vm895, %v831, %v959
  %v1024 = vsel %vm896, %v832, %v960
  %v1025 = vsel %vm897, %v833, %v961
  %v1026 = vsel %vm898, %v834, %v962
  %v1027 = vsel %vm899, %v835, %v963
  %v1028 = vsel %vm900, %v836, %v964
  %v1029 = vsel %vm901, %v837, %v965
  %v1030 = vsel %vm902, %v838, %v966
  %v1031 = vsel %vm903, %v839, %v967
  %v1032 = vsel %vm904, %v840, %v968
  %v1033 = vsel %vm905, %v841, %v969
  %v1034 = vsel %vm906, %v842, %v970
  %v1035 = vsel %vm907, %v843, %v971
  %v1036 = vsel %vm908, %v844, %v972
  %v1037 = vsel %vm909, %v845, %v973
  %v1038 = vsel %vm910, %v846, %v974
  %v1039 = vsel %vm911, %v847, %v975
  %1040 = vst [vmem:[%s4] sm:$0xff] %v976
  %1041 = vst [vmem:[%s4 + $0x8] sm:$0xff] %v977
  %1042 = vst [vmem:[%s4 + $0x10] sm:$0xff] %v978
  %1043 = vst [vmem:[%s4 + $0x18] sm:$0xff] %v979
  %1044 = vst [vmem:[%s4 + $0x20] sm:$0xff] %v980
  %1045 = vst [vmem:[%s4 + $0x28] sm:$0xff] %v981
  %1046 = vst [vmem:[%s4 + $0x30] sm:$0xff] %v982
  %1047 = vst [vmem:[%s4 + $0x38] sm:$0xff] %v983
  %1048 = vst [vmem:[%s4 + $0x40] sm:$0xff] %v984
  %1049 = vst [vmem:[%s4 + $0x48] sm:$0xff] %v985
  %1050 = vst [vmem:[%s4 + $0x50] sm:$0xff] %v986
  %1051 = vst [vmem:[%s4 + $0x58] sm:$0xff] %v987
  %1052 = vst [vmem:[%s4 + $0x60] sm:$0xff] %v988
  %1053 = vst [vmem:[%s4 + $0x68] sm:$0xff] %v989
  %1054 = vst [vmem:[%s4 + $0x70] sm:$0xff] %v990
  %1055 = vst [vmem:[%s4 + $0x78] sm:$0xff] %v991
  %1056 = vst [vmem:[%s4 + $0x80] sm:$0xff] %v992
  %1057 = vst [vmem:[%s4 + $0x88] sm:$0xff] %v993
  %1058 = vst [vmem:[%s4 + $0x90] sm:$0xff] %v994
  %1059 = vst [vmem:[%s4 + $0x98] sm:$0xff] %v995
  %1060 = vst [vmem:[%s4 + $0xa0] sm:$0xff] %v996
  %1061 = vst [vmem:[%s4 + $0xa8] sm:$0xff] %v997
  %1062 = vst [vmem:[%s4 + $0xb0] sm:$0xff] %v998
  %1063 = vst [vmem:[%s4 + $0xb8] sm:$0xff] %v999
  %1064 = vst [vmem:[%s4 + $0xc0] sm:$0xff] %v1000
  %1065 = vst [vmem:[%s4 + $0xc8] sm:$0xff] %v1001
  %1066 = vst [vmem:[%s4 + $0xd0] sm:$0xff] %v1002
  %1067 = vst [vmem:[%s4 + $0xd8] sm:$0xff] %v1003
  %1068 = vst [vmem:[%s4 + $0xe0] sm:$0xff] %v1004
  %1069 = vst [vmem:[%s4 + $0xe8] sm:$0xff] %v1005
  %1070 = vst [vmem:[%s4 + $0xf0] sm:$0xff] %v1006
  %1071 = vst [vmem:[%s4 + $0xf8] sm:$0xff] %v1007
  %1072 = vst [vmem:[%s4 + $0x100] sm:$0xff] %v1008
  %1073 = vst [vmem:[%s4 + $0x108] sm:$0xff] %v1009
  %1074 = vst [vmem:[%s4 + $0x110] sm:$0xff] %v1010
  %1075 = vst [vmem:[%s4 + $0x118] sm:$0xff] %v1011
  %1076 = vst [vmem:[%s4 + $0x120] sm:$0xff] %v1012
  %1077 = vst [vmem:[%s4 + $0x128] sm:$0xff] %v1013
  %1078 = vst [vmem:[%s4 + $0x130] sm:$0xff] %v1014
  %1079 = vst [vmem:[%s4 + $0x138] sm:$0xff] %v1015
  %1080 = vst [vmem:[%s4 + $0x140] sm:$0xff] %v1016
  %1081 = vst [vmem:[%s4 + $0x148] sm:$0xff] %v1017
  %1082 = vst [vmem:[%s4 + $0x150] sm:$0xff] %v1018
  %1083 = vst [vmem:[%s4 + $0x158] sm:$0xff] %v1019
  %1084 = vst [vmem:[%s4 + $0x160] sm:$0xff] %v1020
  %1085 = vst [vmem:[%s4 + $0x168] sm:$0xff] %v1021
  %1086 = vst [vmem:[%s4 + $0x170] sm:$0xff] %v1022
  %1087 = vst [vmem:[%s4 + $0x178] sm:$0xff] %v1023
  %1088 = vst [vmem:[%s4 + $0x180] sm:$0xff] %v1024
  %1089 = vst [vmem:[%s4 + $0x188] sm:$0xff] %v1025
  %1090 = vst [vmem:[%s4 + $0x190] sm:$0xff] %v1026
  %1091 = vst [vmem:[%s4 + $0x198] sm:$0xff] %v1027
  %1092 = vst [vmem:[%s4 + $0x1a0] sm:$0xff] %v1028
  %1093 = vst [vmem:[%s4 + $0x1a8] sm:$0xff] %v1029
  %1094 = vst [vmem:[%s4 + $0x1b0] sm:$0xff] %v1030
  %1095 = vst [vmem:[%s4 + $0x1b8] sm:$0xff] %v1031
  %1096 = vst [vmem:[%s4 + $0x1c0] sm:$0xff] %v1032
  %1097 = vst [vmem:[%s4 + $0x1c8] sm:$0xff] %v1033
  %1098 = vst [vmem:[%s4 + $0x1d0] sm:$0xff] %v1034
  %1099 = vst [vmem:[%s4 + $0x1d8] sm:$0xff] %v1035
  %1100 = vst [vmem:[%s4 + $0x1e0] sm:$0xff] %v1036
  %1101 = vst [vmem:[%s4 + $0x1e8] sm:$0xff] %v1037
  %1102 = vst [vmem:[%s4 + $0x1f0] sm:$0xff] %v1038
  %1103 = vst [vmem:[%s4 + $0x1f8] sm:$0xff] %v1039
  // Predicated region
  $region18: #{_lambda_.7} parent=0 // pred_check
    _
  $region19: #{_lambda_.7} parent=0 // pred_check_branch
    %1105 = sbr.rel (0) target = $region21
  $region20: #{_lambda_.7} parent=0 // pred_region
    _
  $region21: #{_lambda_.7} parent=0 // pred_fallthru
    _
  // Predicated region
  $region22: #{_lambda_.7} parent=0 // pred_check
    _
  $region23: #{_lambda_.7} parent=0 // pred_check_branch
    %1107 = sbr.rel (0) target = $region25
  $region24: #{_lambda_.7} parent=0 // pred_region
    _
  $region25: #{_lambda_.7} parent=0 // pred_fallthru
    _

// kernel: _lambda_.9
$region0: #{_lambda_.9}
  #allocation0 [shape = 'u32[]', space=smem, size = 0x4, offset = 0x4, fixed_abs, tag = 'smem constant byte address 0x4 - core index']
  #allocation1 [shape = 'u32[72,128]{1,0:T(1,128)}', space=vmem, size = 0x9000, scoped, tag = 'internal scratch']
  %s0 = inlined_call_operand.vmem [shape: f32[128,144], index: 0, kind: input, shape index: {}]
  %s1 = inlined_call_operand.vmem [shape: f32[144,128], index: 1, kind: input, shape index: {}]
  %s2 = inlined_call_operand.vmem [shape: f32[1,128], index: 2, kind: input, shape index: {}]
  %s3 = inlined_call_operand.vmem [shape: f32[1,128], index: 3, kind: input, shape index: {}]
  %s4 = inlined_call_operand.vmem [shape: f32[128,128], index: 4, kind: output, shape index: {}]
  %s5 = sld [smem:[#allocation0]]
  $region26: #{_lambda_.9} parent=0
    _
  %s7 = ssub.s32 1, %s5
  %s8 = scalar_select 0, %s7, %s5
  // Predicated region
  $region2: #{_lambda_.9} parent=0 // pred_check
    _
  $region3: #{_lambda_.9} parent=0 // pred_check_branch
    %10 = sbr.rel (0) target = $region5
  $region4: #{_lambda_.9} parent=0 // pred_region
    _
  $region5: #{_lambda_.9} parent=0 // pred_fallthru
    _
  // Predicated region
  $region6: #{_lambda_.9} parent=0 // pred_check
    _
  $region7: #{_lambda_.9} parent=0 // pred_check_branch
    %12 = sbr.rel (0) target = $region9
  $region8: #{_lambda_.9} parent=0 // pred_region
    _
  $region9: #{_lambda_.9} parent=0 // pred_fallthru
    _
  // Predicated region
  $region10: #{_lambda_.9} parent=0 // pred_check
    _
  $region11: #{_lambda_.9} parent=0 // pred_check_branch
    %14 = sbr.rel (0) target = $region13
  $region12: #{_lambda_.9} parent=0 // pred_region
    _
  $region13: #{_lambda_.9} parent=0 // pred_fallthru
    _
  // Predicated region
  $region14: #{_lambda_.9} parent=0 // pred_check
    _
  $region15: #{_lambda_.9} parent=0 // pred_check_branch
    %16 = sbr.rel (0) target = $region17
  $region16: #{_lambda_.9} parent=0 // pred_region
    _
  $region17: #{_lambda_.9} parent=0 // pred_fallthru
    _
  %v17 = vld [vmem:[%s0] sm:$0xff]
  %v18 = vld [vmem:[%s0 + $0x8] sm:$0xff]
  %v19 = vld [vmem:[%s0 + $0x10] sm:$0xff]
  %v20 = vld [vmem:[%s0 + $0x18] sm:$0xff]
  %v21 = vld [vmem:[%s0 + $0x20] sm:$0xff]
  %v22 = vld [vmem:[%s0 + $0x28] sm:$0xff]
  %v23 = vld [vmem:[%s0 + $0x30] sm:$0xff]
  %v24 = vld [vmem:[%s0 + $0x38] sm:$0xff]
  %v25 = vld [vmem:[%s0 + $0x40] sm:$0xff]
  %v26 = vld [vmem:[%s0 + $0x48] sm:$0xff]
  %v27 = vld [vmem:[%s0 + $0x50] sm:$0xff]
  %v28 = vld [vmem:[%s0 + $0x58] sm:$0xff]
  %v29 = vld [vmem:[%s0 + $0x60] sm:$0xff]
  %v30 = vld [vmem:[%s0 + $0x68] sm:$0xff]
  %v31 = vld [vmem:[%s0 + $0x70] sm:$0xff]
  %v32 = vld [vmem:[%s0 + $0x78] sm:$0xff]
  %v33 = vld [vmem:[%s0 + $0x80] sm:$0xff]
  %v34 = vld [vmem:[%s0 + $0x88] sm:$0xff]
  %v35 = vld [vmem:[%s0 + $0x90] sm:$0xff]
  %v36 = vld [vmem:[%s0 + $0x98] sm:$0xff]
  %v37 = vld [vmem:[%s0 + $0xa0] sm:$0xff]
  %v38 = vld [vmem:[%s0 + $0xa8] sm:$0xff]
  %v39 = vld [vmem:[%s0 + $0xb0] sm:$0xff]
  %v40 = vld [vmem:[%s0 + $0xb8] sm:$0xff]
  %v41 = vld [vmem:[%s0 + $0xc0] sm:$0xff]
  %v42 = vld [vmem:[%s0 + $0xc8] sm:$0xff]
  %v43 = vld [vmem:[%s0 + $0xd0] sm:$0xff]
  %v44 = vld [vmem:[%s0 + $0xd8] sm:$0xff]
  %v45 = vld [vmem:[%s0 + $0xe0] sm:$0xff]
  %v46 = vld [vmem:[%s0 + $0xe8] sm:$0xff]
  %v47 = vld [vmem:[%s0 + $0xf0] sm:$0xff]
  %v48 = vld [vmem:[%s0 + $0xf8] sm:$0xff]
  %v49 = vld [vmem:[%s1] sm:$0xff]
  %v50 = vld [vmem:[%s1 + $0x8] sm:$0xff]
  %v51 = vld [vmem:[%s1 + $0x10] sm:$0xff]
  %v52 = vld [vmem:[%s1 + $0x18] sm:$0xff]
  %v53 = vld [vmem:[%s1 + $0x20] sm:$0xff]
  %v54 = vld [vmem:[%s1 + $0x28] sm:$0xff]
  %v55 = vld [vmem:[%s1 + $0x30] sm:$0xff]
  %v56 = vld [vmem:[%s1 + $0x38] sm:$0xff]
  %v57 = vld [vmem:[%s1 + $0x40] sm:$0xff]
  %v58 = vld [vmem:[%s1 + $0x48] sm:$0xff]
  %v59 = vld [vmem:[%s1 + $0x50] sm:$0xff]
  %v60 = vld [vmem:[%s1 + $0x58] sm:$0xff]
  %v61 = vld [vmem:[%s1 + $0x60] sm:$0xff]
  %v62 = vld [vmem:[%s1 + $0x68] sm:$0xff]
  %v63 = vld [vmem:[%s1 + $0x70] sm:$0xff]
  %v64 = vld [vmem:[%s1 + $0x78] sm:$0xff]
  %v65 = vld [vmem:[%s1 + $0x80] sm:$0xff]
  %v66 = vld [vmem:[%s1 + $0x88] sm:$0xff]
  %vm67 = vcmask 130048
  %v69 = vsel %vm67, %v18, 0
  %v72 = vsel %vm67, %v20, 0
  %v75 = vsel %vm67, %v22, 0
  %v78 = vsel %vm67, %v24, 0
  %v81 = vsel %vm67, %v26, 0
  %v84 = vsel %vm67, %v28, 0
  %v87 = vsel %vm67, %v30, 0
  %v90 = vsel %vm67, %v32, 0
  %v93 = vsel %vm67, %v34, 0
  %v96 = vsel %vm67, %v36, 0
  %v99 = vsel %vm67, %v38, 0
  %v102 = vsel %vm67, %v40, 0
  %v105 = vsel %vm67, %v42, 0
  %v108 = vsel %vm67, %v44, 0
  %v111 = vsel %vm67, %v46, 0
  %v114 = vsel %vm67, %v48, 0
  %116 = vmatpush.msra.mxu0 %v64
  %117 = vmatpush.msra.mxu0 %v63
  %118 = vmatpush.msra.mxu0 %v62
  %119 = vmatpush.msra.mxu0 %v61
  %120 = vmatpush.msra.mxu0 %v60
  %121 = vmatpush.msra.mxu0 %v59
  %122 = vmatpush.msra.mxu0 %v58
  %123 = vmatpush.msra.mxu0 %v57
  %124 = vmatpush.msra.mxu0 %v56
  %125 = vmatpush.msra.mxu0 %v55
  %126 = vmatpush.msra.mxu0 %v54
  %127 = vmatpush.msra.mxu0 %v53
  %128 = vmatpush.msra.mxu0 %v52
  %129 = vmatpush.msra.mxu0 %v51
  %130 = vmatpush.msra.mxu0 %v50
  %131 = vmatpush.msra.mxu0 %v49
  %132 = vmatmul.f32.gmra.mxu0 %v17
  %v133 = vpop.f32.mrf.mxu0
  %v134 = vadd.f32 0.0, %v133
  %135 = vmatmul.f32.gmra.mxu0 %v19
  %v136 = vpop.f32.mrf.mxu0
  %v137 = vadd.f32 0.0, %v136
  %138 = vmatmul.f32.gmra.mxu0 %v21
  %v139 = vpop.f32.mrf.mxu0
  %v140 = vadd.f32 0.0, %v139
  %141 = vmatmul.f32.gmra.mxu0 %v23
  %v142 = vpop.f32.mrf.mxu0
  %v143 = vadd.f32 0.0, %v142
  %144 = vmatmul.f32.gmra.mxu0 %v25
  %v145 = vpop.f32.mrf.mxu0
  %v146 = vadd.f32 0.0, %v145
  %147 = vmatmul.f32.gmra.mxu0 %v27
  %v148 = vpop.f32.mrf.mxu0
  %v149 = vadd.f32 0.0, %v148
  %150 = vmatmul.f32.gmra.mxu0 %v29
  %v151 = vpop.f32.mrf.mxu0
  %v152 = vadd.f32 0.0, %v151
  %153 = vmatmul.f32.gmra.mxu0 %v31
  %v154 = vpop.f32.mrf.mxu0
  %v155 = vadd.f32 0.0, %v154
  %156 = vmatmul.f32.gmra.mxu0 %v33
  %v157 = vpop.f32.mrf.mxu0
  %v158 = vadd.f32 0.0, %v157
  %159 = vmatmul.f32.gmra.mxu0 %v35
  %v160 = vpop.f32.mrf.mxu0
  %v161 = vadd.f32 0.0, %v160
  %162 = vmatmul.f32.gmra.mxu0 %v37
  %v163 = vpop.f32.mrf.mxu0
  %v164 = vadd.f32 0.0, %v163
  %165 = vmatmul.f32.gmra.mxu0 %v39
  %v166 = vpop.f32.mrf.mxu0
  %v167 = vadd.f32 0.0, %v166
  %168 = vmatmul.f32.gmra.mxu0 %v41
  %v169 = vpop.f32.mrf.mxu0
  %v170 = vadd.f32 0.0, %v169
  %171 = vmatmul.f32.gmra.mxu0 %v43
  %v172 = vpop.f32.mrf.mxu0
  %v173 = vadd.f32 0.0, %v172
  %174 = vmatmul.f32.gmra.mxu0 %v45
  %v175 = vpop.f32.mrf.mxu0
  %v176 = vadd.f32 0.0, %v175
  %177 = vmatmul.f32.gmra.mxu0 %v47
  %v178 = vpop.f32.mrf.mxu0
  %v179 = vadd.f32 0.0, %v178
  %180 = vdwg.mxu0
  %181 = vmatpush.msra.mxu0 0.0
  %182 = vmatpush.msra.mxu0 0.0
  %183 = vmatpush.msra.mxu0 0.0
  %184 = vmatpush.msra.mxu0 0.0
  %185 = vmatpush.msra.mxu0 0.0
  %186 = vmatpush.msra.mxu0 0.0
  %187 = vmatpush.msra.mxu0 0.0
  %188 = vmatpush.msra.mxu0 0.0
  %189 = vmatpush.msra.mxu0 0.0
  %190 = vmatpush.msra.mxu0 0.0
  %191 = vmatpush.msra.mxu0 0.0
  %192 = vmatpush.msra.mxu0 0.0
  %193 = vmatpush.msra.mxu0 0.0
  %194 = vmatpush.msra.mxu0 0.0
  %195 = vmatpush.msra.mxu0 %v66
  %196 = vmatpush.msra.mxu0 %v65
  %197 = vmatmul.f32.gmra.mxu0 %v69
  %v198 = vpop.f32.mrf.mxu0
  %v199 = vadd.f32 %v134, %v198
  %200 = vmatmul.f32.gmra.mxu0 %v72
  %v201 = vpop.f32.mrf.mxu0
  %v202 = vadd.f32 %v137, %v201
  %203 = vmatmul.f32.gmra.mxu0 %v75
  %v204 = vpop.f32.mrf.mxu0
  %v205 = vadd.f32 %v140, %v204
  %206 = vmatmul.f32.gmra.mxu0 %v78
  %v207 = vpop.f32.mrf.mxu0
  %v208 = vadd.f32 %v143, %v207
  %209 = vmatmul.f32.gmra.mxu0 %v81
  %v210 = vpop.f32.mrf.mxu0
  %v211 = vadd.f32 %v146, %v210
  %212 = vmatmul.f32.gmra.mxu0 %v84
  %v213 = vpop.f32.mrf.mxu0
  %v214 = vadd.f32 %v149, %v213
  %215 = vmatmul.f32.gmra.mxu0 %v87
  %v216 = vpop.f32.mrf.mxu0
  %v217 = vadd.f32 %v152, %v216
  %218 = vmatmul.f32.gmra.mxu0 %v90
  %v219 = vpop.f32.mrf.mxu0
  %v220 = vadd.f32 %v155, %v219
  %221 = vmatmul.f32.gmra.mxu0 %v93
  %v222 = vpop.f32.mrf.mxu0
  %v223 = vadd.f32 %v158, %v222
  %224 = vmatmul.f32.gmra.mxu0 %v96
  %v225 = vpop.f32.mrf.mxu0
  %v226 = vadd.f32 %v161, %v225
  %227 = vmatmul.f32.gmra.mxu0 %v99
  %v228 = vpop.f32.mrf.mxu0
  %v229 = vadd.f32 %v164, %v228
  %230 = vmatmul.f32.gmra.mxu0 %v102
  %v231 = vpop.f32.mrf.mxu0
  %v232 = vadd.f32 %v167, %v231
  %233 = vmatmul.f32.gmra.mxu0 %v105
  %v234 = vpop.f32.mrf.mxu0
  %v235 = vadd.f32 %v170, %v234
  %236 = vmatmul.f32.gmra.mxu0 %v108
  %v237 = vpop.f32.mrf.mxu0
  %v238 = vadd.f32 %v173, %v237
  %239 = vmatmul.f32.gmra.mxu0 %v111
  %v240 = vpop.f32.mrf.mxu0
  %v241 = vadd.f32 %v176, %v240
  %242 = vmatmul.f32.gmra.mxu0 %v114
  %v243 = vpop.f32.mrf.mxu0
  %v244 = vadd.f32 %v179, %v243
  %245 = vdwg.mxu0
  %v246 = vadd.f32 %v199, %v202
  %v247 = vadd.f32 %v246, %v205
  %v248 = vadd.f32 %v247, %v208
  %v249 = vadd.f32 %v248, %v211
  %v250 = vadd.f32 %v249, %v214
  %v251 = vadd.f32 %v250, %v217
  %v252 = vadd.f32 %v251, %v220
  %v253 = vadd.f32 %v252, %v223
  %v254 = vadd.f32 %v253, %v226
  %v255 = vadd.f32 %v254, %v229
  %v256 = vadd.f32 %v255, %v232
  %v257 = vadd.f32 %v256, %v235
  %v258 = vadd.f32 %v257, %v238
  %v259 = vadd.f32 %v258, %v241
  %v260 = vadd.f32 %v259, %v244
  %v261 = vrot.slane %v260, 4
  %v262 = vadd.f32 %v260, %v261
  %v263 = vrot.slane %v262, 2
  %v264 = vadd.f32 %v262, %v263
  %v265 = vrot.slane %v264, 1
  %v266 = vadd.f32 %v264, %v265
  %v267 = vmul.f32 %v266, 0.0078125
  %v268 = vmul.f32 %v199, %v199
  %v269 = vmul.f32 %v202, %v202
  %v270 = vmul.f32 %v205, %v205
  %v271 = vmul.f32 %v208, %v208
  %v272 = vmul.f32 %v211, %v211
  %v273 = vmul.f32 %v214, %v214
  %v274 = vmul.f32 %v217, %v217
  %v275 = vmul.f32 %v220, %v220
  %v276 = vmul.f32 %v223, %v223
  %v277 = vmul.f32 %v226, %v226
  %v278 = vmul.f32 %v229, %v229
  %v279 = vmul.f32 %v232, %v232
  %v280 = vmul.f32 %v235, %v235
  %v281 = vmul.f32 %v238, %v238
  %v282 = vmul.f32 %v241, %v241
  %v283 = vmul.f32 %v244, %v244
  %v284 = vadd.f32 %v268, %v269
  %v285 = vadd.f32 %v284, %v270
  %v286 = vadd.f32 %v285, %v271
  %v287 = vadd.f32 %v286, %v272
  %v288 = vadd.f32 %v287, %v273
  %v289 = vadd.f32 %v288, %v274
  %v290 = vadd.f32 %v289, %v275
  %v291 = vadd.f32 %v290, %v276
  %v292 = vadd.f32 %v291, %v277
  %v293 = vadd.f32 %v292, %v278
  %v294 = vadd.f32 %v293, %v279
  %v295 = vadd.f32 %v294, %v280
  %v296 = vadd.f32 %v295, %v281
  %v297 = vadd.f32 %v296, %v282
  %v298 = vadd.f32 %v297, %v283
  %v299 = vrot.slane %v298, 4
  %v300 = vadd.f32 %v298, %v299
  %v301 = vrot.slane %v300, 2
  %v302 = vadd.f32 %v300, %v301
  %v303 = vrot.slane %v302, 1
  %v304 = vadd.f32 %v302, %v303
  %v305 = vmul.f32 %v304, 0.0078125
  %v306 = vmul.f32 %v267, %v267
  %v307 = vsub.f32 %v305, %v306
  %v308 = vmax.f32 %v307, 0.0
  %v309 = vld [vmem:[%s2] sm:$0x1]
  %v310 = vadd.f32 %v308, 1e-05
  %v311 = vrsqrt.pop %v310
  %v312 = vmul.f32 %v311, %v310
  %v313 = vmul.f32 %v312, %v311
  %v314 = vmul.f32 0.5, %v313
  %v315 = vsub.f32 1.5, %v314
  %v316 = vmul.f32 %v311, %v315
  %vm317 = vweird.f32 %v310
  %vm318 = vweird.f32 %v311
  %vm319 = vmor %vm317, %vm318
  %v320 = vsel %vm319, %v311, %v316
  %v321 = vmul.f32 %v309, %v320
  %v322 = vld [vmem:[%s3] sm:$0x1]
  %v323 = vmul.f32 %v267, %v321
  %v324 = vsub.f32 %v322, %v323
  %v326 = vperm.slane %v321, 0
  %v328 = vmul.f32 %v199, %v326
  %v329 = vmul.f32 %v202, %v326
  %v330 = vmul.f32 %v205, %v326
  %v331 = vmul.f32 %v208, %v326
  %v332 = vmul.f32 %v211, %v326
  %v333 = vmul.f32 %v214, %v326
  %v334 = vmul.f32 %v217, %v326
  %v335 = vmul.f32 %v220, %v326
  %v336 = vmul.f32 %v223, %v326
  %v337 = vmul.f32 %v226, %v326
  %v338 = vmul.f32 %v229, %v326
  %v339 = vmul.f32 %v232, %v326
  %v340 = vmul.f32 %v235, %v326
  %v341 = vmul.f32 %v238, %v326
  %v342 = vmul.f32 %v241, %v326
  %v343 = vmul.f32 %v244, %v326
  %v345 = vperm.slane %v324, 0
  %v347 = vadd.f32 %v328, %v345
  %v348 = vadd.f32 %v329, %v345
  %v349 = vadd.f32 %v330, %v345
  %v350 = vadd.f32 %v331, %v345
  %v351 = vadd.f32 %v332, %v345
  %v352 = vadd.f32 %v333, %v345
  %v353 = vadd.f32 %v334, %v345
  %v354 = vadd.f32 %v335, %v345
  %v355 = vadd.f32 %v336, %v345
  %v356 = vadd.f32 %v337, %v345
  %v357 = vadd.f32 %v338, %v345
  %v358 = vadd.f32 %v339, %v345
  %v359 = vadd.f32 %v340, %v345
  %v360 = vadd.f32 %v341, %v345
  %v361 = vadd.f32 %v342, %v345
  %v362 = vadd.f32 %v343, %v345
  %vm363 = vcmp.gt.f32.partialorder %v347, 0.0
  %vm364 = vcmp.gt.f32.partialorder %v348, 0.0
  %vm365 = vcmp.gt.f32.partialorder %v349, 0.0
  %vm366 = vcmp.gt.f32.partialorder %v350, 0.0
  %vm367 = vcmp.gt.f32.partialorder %v351, 0.0
  %vm368 = vcmp.gt.f32.partialorder %v352, 0.0
  %vm369 = vcmp.gt.f32.partialorder %v353, 0.0
  %vm370 = vcmp.gt.f32.partialorder %v354, 0.0
  %vm371 = vcmp.gt.f32.partialorder %v355, 0.0
  %vm372 = vcmp.gt.f32.partialorder %v356, 0.0
  %vm373 = vcmp.gt.f32.partialorder %v357, 0.0
  %vm374 = vcmp.gt.f32.partialorder %v358, 0.0
  %vm375 = vcmp.gt.f32.partialorder %v359, 0.0
  %vm376 = vcmp.gt.f32.partialorder %v360, 0.0
  %vm377 = vcmp.gt.f32.partialorder %v361, 0.0
  %vm378 = vcmp.gt.f32.partialorder %v362, 0.0
  %v379 = vmul.f32 %v347, 0.1
  %v380 = vmul.f32 %v348, 0.1
  %v381 = vmul.f32 %v349, 0.1
  %v382 = vmul.f32 %v350, 0.1
  %v383 = vmul.f32 %v351, 0.1
  %v384 = vmul.f32 %v352, 0.1
  %v385 = vmul.f32 %v353, 0.1
  %v386 = vmul.f32 %v354, 0.1
  %v387 = vmul.f32 %v355, 0.1
  %v388 = vmul.f32 %v356, 0.1
  %v389 = vmul.f32 %v357, 0.1
  %v390 = vmul.f32 %v358, 0.1
  %v391 = vmul.f32 %v359, 0.1
  %v392 = vmul.f32 %v360, 0.1
  %v393 = vmul.f32 %v361, 0.1
  %v394 = vmul.f32 %v362, 0.1
  %v395 = vsel %vm363, %v347, %v379
  %v396 = vsel %vm364, %v348, %v380
  %v397 = vsel %vm365, %v349, %v381
  %v398 = vsel %vm366, %v350, %v382
  %v399 = vsel %vm367, %v351, %v383
  %v400 = vsel %vm368, %v352, %v384
  %v401 = vsel %vm369, %v353, %v385
  %v402 = vsel %vm370, %v354, %v386
  %v403 = vsel %vm371, %v355, %v387
  %v404 = vsel %vm372, %v356, %v388
  %v405 = vsel %vm373, %v357, %v389
  %v406 = vsel %vm374, %v358, %v390
  %v407 = vsel %vm375, %v359, %v391
  %v408 = vsel %vm376, %v360, %v392
  %v409 = vsel %vm377, %v361, %v393
  %v410 = vsel %vm378, %v362, %v394
  %411 = vst [vmem:[%s4] sm:$0xff] %v395
  %412 = vst [vmem:[%s4 + $0x8] sm:$0xff] %v396
  %413 = vst [vmem:[%s4 + $0x10] sm:$0xff] %v397
  %414 = vst [vmem:[%s4 + $0x18] sm:$0xff] %v398
  %415 = vst [vmem:[%s4 + $0x20] sm:$0xff] %v399
  %416 = vst [vmem:[%s4 + $0x28] sm:$0xff] %v400
  %417 = vst [vmem:[%s4 + $0x30] sm:$0xff] %v401
  %418 = vst [vmem:[%s4 + $0x38] sm:$0xff] %v402
  %419 = vst [vmem:[%s4 + $0x40] sm:$0xff] %v403
  %420 = vst [vmem:[%s4 + $0x48] sm:$0xff] %v404
  %421 = vst [vmem:[%s4 + $0x50] sm:$0xff] %v405
  %422 = vst [vmem:[%s4 + $0x58] sm:$0xff] %v406
  %423 = vst [vmem:[%s4 + $0x60] sm:$0xff] %v407
  %424 = vst [vmem:[%s4 + $0x68] sm:$0xff] %v408
  %425 = vst [vmem:[%s4 + $0x70] sm:$0xff] %v409
  %426 = vst [vmem:[%s4 + $0x78] sm:$0xff] %v410
  // Predicated region
  $region18: #{_lambda_.9} parent=0 // pred_check
    _
  $region19: #{_lambda_.9} parent=0 // pred_check_branch
    %428 = sbr.rel (0) target = $region21
  $region20: #{_lambda_.9} parent=0 // pred_region
    _
  $region21: #{_lambda_.9} parent=0 // pred_fallthru
    _
  // Predicated region
  $region22: #{_lambda_.9} parent=0 // pred_check
    _
  $region23: #{_lambda_.9} parent=0 // pred_check_branch
    %430 = sbr.rel (0) target = $region25
  $region24: #{_lambda_.9} parent=0 // pred_region
    _
  $region25: #{_lambda_.9} parent=0 // pred_fallthru
    _

// kernel: _lambda_.11
$region0: #{_lambda_.11}
  #allocation0 [shape = 'u32[]', space=smem, size = 0x4, offset = 0x4, fixed_abs, tag = 'smem constant byte address 0x4 - core index']
  #allocation1 [shape = 'u32[72,128]{1,0:T(1,128)}', space=vmem, size = 0x9000, scoped, tag = 'internal scratch']
  %s0 = inlined_call_operand.vmem [shape: f32[2,7,192], index: 0, kind: input, shape index: {}]
  %s1 = inlined_call_operand.vmem [shape: f32[1,7,192], index: 1, kind: input, shape index: {}]
  %s2 = inlined_call_operand.vmem [shape: f32[1,7,192], index: 2, kind: input, shape index: {}]
  %s3 = inlined_call_operand.vmem [shape: f32[2,7,192], index: 3, kind: output, shape index: {}]
  %s4 = sld [smem:[#allocation0]]
  $region22: #{_lambda_.11} parent=0
    _
  %s6 = ssub.s32 1, %s4
  %s7 = scalar_select 0, %s6, %s4
  // Predicated region
  $region2: #{_lambda_.11} parent=0 // pred_check
    _
  $region3: #{_lambda_.11} parent=0 // pred_check_branch
    %9 = sbr.rel (0) target = $region5
  $region4: #{_lambda_.11} parent=0 // pred_region
    _
  $region5: #{_lambda_.11} parent=0 // pred_fallthru
    _
  // Predicated region
  $region6: #{_lambda_.11} parent=0 // pred_check
    _
  $region7: #{_lambda_.11} parent=0 // pred_check_branch
    %11 = sbr.rel (0) target = $region9
  $region8: #{_lambda_.11} parent=0 // pred_region
    _
  $region9: #{_lambda_.11} parent=0 // pred_fallthru
    _
  // Predicated region
  $region10: #{_lambda_.11} parent=0 // pred_check
    _
  $region11: #{_lambda_.11} parent=0 // pred_check_branch
    %13 = sbr.rel (0) target = $region13
  $region12: #{_lambda_.11} parent=0 // pred_region
    _
  $region13: #{_lambda_.11} parent=0 // pred_fallthru
    _
  %v14 = vld [vmem:[%s0] sm:$0x7f]
  %v15 = vld [vmem:[%s0 + $0x8] sm:$0x7f]
  %v16 = vld [vmem:[%s0 + $0x10] sm:$0x7f]
  %v17 = vld [vmem:[%s0 + $0x18] sm:$0x7f]
  %v18 = vlaneseq
  %v19 = vshrl.u32 %v18, 7
  %vm20 = vcmp.ge.s32.totalorder %v19, 2
  %vm21 = vcmp.lt.s32.totalorder %v19, 4
  %vm22 = vmand %vm20, %vm21
  %v23 = vsub.f32 0.0, %v14
  %v24 = vsub.f32 0.0, %v15
  %v25 = vsub.f32 0.0, %v16
  %v26 = vsub.f32 0.0, %v17
  %v27 = vmul.f32 %v23, 1.442695
  %v28 = vpow.pop %v27
  %v29 = vmul.f32 %v24, 1.442695
  %v30 = vpow.pop %v29
  %v31 = vmul.f32 %v25, 1.442695
  %v32 = vpow.pop %v31
  %v33 = vmul.f32 %v26, 1.442695
  %v34 = vpow.pop %v33
  %v35 = vadd.f32 %v28, 1.0
  %v36 = vadd.f32 %v30, 1.0
  %v37 = vadd.f32 %v32, 1.0
  %v38 = vadd.f32 %v34, 1.0
  %v39 = vrcp.pop %v35
  %v40 = vmul.f32 %v35, %v39
  %v41 = vsub.f32 1.0, %v40
  %v42 = vmul.f32 %v39, %v41
  %v43 = vadd.f32 %v39, %v42
  %vm44 = vweird.f32 %v35
  %vm45 = vweird.f32 %v39
  %vm46 = vmor %vm44, %vm45
  %v47 = vsel %vm46, %v39, %v43
  %v48 = vand.u32 2147483647, %v35
  %vm49 = vcmp.eq.f32.partialorder %v48, 8.507059e+37
  %v50 = vand.u32 %v35, 2147483648
  %v51 = vor.u32 1.1754944e-38, %v50
  %v52 = vsel %vm49, %v51, %v47
  %v53 = vmul.f32 1.0, %v52
  %v54 = vrcp.pop %v36
  %v55 = vmul.f32 %v36, %v54
  %v56 = vsub.f32 1.0, %v55
  %v57 = vmul.f32 %v54, %v56
  %v58 = vadd.f32 %v54, %v57
  %vm59 = vweird.f32 %v36
  %vm60 = vweird.f32 %v54
  %vm61 = vmor %vm59, %vm60
  %v62 = vsel %vm61, %v54, %v58
  %v63 = vand.u32 2147483647, %v36
  %vm64 = vcmp.eq.f32.partialorder %v63, 8.507059e+37
  %v65 = vand.u32 %v36, 2147483648
  %v66 = vor.u32 1.1754944e-38, %v65
  %v67 = vsel %vm64, %v66, %v62
  %v68 = vmul.f32 1.0, %v67
  %v69 = vrcp.pop %v37
  %v70 = vmul.f32 %v37, %v69
  %v71 = vsub.f32 1.0, %v70
  %v72 = vmul.f32 %v69, %v71
  %v73 = vadd.f32 %v69, %v72
  %vm74 = vweird.f32 %v37
  %vm75 = vweird.f32 %v69
  %vm76 = vmor %vm74, %vm75
  %v77 = vsel %vm76, %v69, %v73
  %v78 = vand.u32 2147483647, %v37
  %vm79 = vcmp.eq.f32.partialorder %v78, 8.507059e+37
  %v80 = vand.u32 %v37, 2147483648
  %v81 = vor.u32 1.1754944e-38, %v80
  %v82 = vsel %vm79, %v81, %v77
  %v83 = vmul.f32 1.0, %v82
  %v84 = vrcp.pop %v38
  %v85 = vmul.f32 %v38, %v84
  %v86 = vsub.f32 1.0, %v85
  %v87 = vmul.f32 %v84, %v86
  %v88 = vadd.f32 %v84, %v87
  %vm89 = vweird.f32 %v38
  %vm90 = vweird.f32 %v84
  %vm91 = vmor %vm89, %vm90
  %v92 = vsel %vm91, %v84, %v88
  %v93 = vand.u32 2147483647, %v38
  %vm94 = vcmp.eq.f32.partialorder %v93, 8.507059e+37
  %v95 = vand.u32 %v38, 2147483648
  %v96 = vor.u32 1.1754944e-38, %v95
  %v97 = vsel %vm94, %v96, %v92
  %v98 = vmul.f32 1.0, %v97
  %v99 = vmul.f32 %v14, 1.442695
  %v100 = vpow.pop %v99
  %v101 = vmul.f32 %v15, 1.442695
  %v102 = vpow.pop %v101
  %v103 = vmul.f32 %v16, 1.442695
  %v104 = vpow.pop %v103
  %v105 = vmul.f32 %v17, 1.442695
  %v106 = vpow.pop %v105
  %v107 = vsel %vm22, %v100, %v53
  %v108 = vsel %vm22, %v102, %v68
  %v109 = vsel %vm22, %v104, %v83
  %v110 = vsel %vm22, %v106, %v98
  %v111 = vld [vmem:[%s1] sm:$0x7f]
  %v112 = vld [vmem:[%s1 + $0x8] sm:$0x7f]
  %v113 = vmul.f32 %v107, %v111
  %v114 = vmul.f32 %v108, %v112
  %v115 = vmul.f32 %v109, %v111
  %v116 = vmul.f32 %v110, %v112
  %v117 = vld [vmem:[%s2] sm:$0x7f]
  %v118 = vld [vmem:[%s2 + $0x8] sm:$0x7f]
  %v119 = vadd.f32 %v113, %v117
  %v120 = vadd.f32 %v114, %v118
  %v121 = vadd.f32 %v115, %v117
  %v122 = vadd.f32 %v116, %v118
  %123 = vst [vmem:[%s3] sm:$0x7f] %v119
  %vm124 = vcmask 522240
  %125 = vst.msk [vmem:[%s3 + $0x8] sm:$0x7f] %vm124, %v120
  %126 = vst [vmem:[%s3 + $0x10] sm:$0x7f] %v121
  %127 = vst.msk [vmem:[%s3 + $0x18] sm:$0x7f] %vm124, %v122
  // Predicated region
  $region14: #{_lambda_.11} parent=0 // pred_check
    _
  $region15: #{_lambda_.11} parent=0 // pred_check_branch
    %129 = sbr.rel (0) target = $region17
  $region16: #{_lambda_.11} parent=0 // pred_region
    _
  $region17: #{_lambda_.11} parent=0 // pred_fallthru
    _
  // Predicated region
  $region18: #{_lambda_.11} parent=0 // pred_check
    _
  $region19: #{_lambda_.11} parent=0 // pred_check_branch
    %131 = sbr.rel (0) target = $region21
  $region20: #{_lambda_.11} parent=0 // pred_region
    _
  $region21: #{_lambda_.11} parent=0 // pred_fallthru
    _

// kernel: _lambda_.10
$region0: #{_lambda_.10}
  #allocation0 [shape = 'u32[]', space=smem, size = 0x4, offset = 0x4, fixed_abs, tag = 'smem constant byte address 0x4 - core index']
  #allocation1 [shape = 'u32[72,128]{1,0:T(1,128)}', space=vmem, size = 0x9000, scoped, tag = 'internal scratch']
  %s0 = inlined_call_operand.vmem [shape: f32[128,16], index: 0, kind: input, shape index: {}]
  %s1 = inlined_call_operand.vmem [shape: f32[16,128], index: 1, kind: input, shape index: {}]
  %s2 = inlined_call_operand.vmem [shape: f32[1,128], index: 2, kind: input, shape index: {}]
  %s3 = inlined_call_operand.vmem [shape: f32[128,128], index: 3, kind: output, shape index: {}]
  %s4 = sld [smem:[#allocation0]]
  $region45: #{_lambda_.10} parent=0
    _
  %s6 = ssub.s32 1, %s4
  %s7 = scalar_select 0, %s6, %s4
  loop: start=0, step=1, limit=4
  $region2: #{_lambda_.10} parent=0 // loop_pre_header
    _
  $region3: #{_lambda_.10} parent=0 // loop_header
    %s9 = sphi 0, %s13
    %p10 = scmp.ge.s32.totalorder %s9, 4
    %s19 = sphi 0, %s21
    %s22 = sphi 0, %s19
    %s23 = sphi 0, %s22
    %s39 = sphi 0, %s23
    %s43 = sphi 0, %s43
    %s45 = sphi 0, %s43
    %s46 = sphi 0, %s45
    %s60 = sphi 0, %s46
    %s64 = sphi 0, %s64
    %s66 = sphi 0, %s64
    %s67 = sphi 0, %s66
    %s81 = sphi 0, %s67
    %s87 = sphi 0, %s89
    %s90 = sphi 0, %s87
    %s91 = sphi 0, %s90
    %s107 = sphi 0, %s91
  $region4: #{_lambda_.10} parent=0 // loop_header_branch
    %12 = sbr.rel (%p10) target = $region8
  $region5: #{_lambda_.10} parent=0 // loop_body
    %s14 = ssub.s32 %s9, 1
    %s15 = ssub.s32 %s9, 2
    %s16 = sadd.s32 %s9, 1
    %s17 = ssub.s32 %s9, %s16
    %p18 = scmp.eq.s32.totalorder %s17, 0
    %s20 = sadd.s32 %s19, 1
    %s21 = scalar_select %p18, %s19, %s20
    %p24 = pneg %p18
    %p25 = scmp.eq.s32.totalorder %s9, 1
    %p26 = por %p24, %p25
    %p27 = scmp.ne.s32.totalorder %s19, %s22
    %p28 = scmp.eq.s32.totalorder %s9, 0
    %p29 = por %p27, %p28
    %p30 = scmp.ne.s32.totalorder %s19, %s22
    %p31 = scmp.eq.s32.totalorder %s14, 1
    %p32 = por %p30, %p31
    %p33 = scmp.ne.s32.totalorder %s22, %s23
    %p34 = scmp.eq.s32.totalorder %s14, 0
    %p35 = por %p33, %p34
    %p36 = scmp.ne.s32.totalorder %s22, %s23
    %p37 = scmp.eq.s32.totalorder %s15, 1
    %p38 = por %p36, %p37
    %p40 = scmp.ne.s32.totalorder %s23, %s39
    %p41 = scmp.eq.s32.totalorder %s15, 0
    %p42 = por %p40, %p41
    %s44 = sadd.s32 %s43, 1
    %p47 = scmp.eq.s32.totalorder %s9, 1
    %p48 = scmp.ne.s32.totalorder %s43, %s45
    %p49 = scmp.eq.s32.totalorder %s9, 0
    %p50 = por %p48, %p49
    %p51 = scmp.ne.s32.totalorder %s43, %s45
    %p52 = scmp.eq.s32.totalorder %s14, 1
    %p53 = por %p51, %p52
    %p54 = scmp.ne.s32.totalorder %s45, %s46
    %p55 = scmp.eq.s32.totalorder %s14, 0
    %p56 = por %p54, %p55
    %p57 = scmp.ne.s32.totalorder %s45, %s46
    %p58 = scmp.eq.s32.totalorder %s15, 1
    %p59 = por %p57, %p58
    %p61 = scmp.ne.s32.totalorder %s46, %s60
    %p62 = scmp.eq.s32.totalorder %s15, 0
    %p63 = por %p61, %p62
    %s65 = sadd.s32 %s64, 1
    %p68 = scmp.eq.s32.totalorder %s9, 1
    %p69 = scmp.ne.s32.totalorder %s64, %s66
    %p70 = scmp.eq.s32.totalorder %s9, 0
    %p71 = por %p69, %p70
    %p72 = scmp.ne.s32.totalorder %s64, %s66
    %p73 = scmp.eq.s32.totalorder %s14, 1
    %p74 = por %p72, %p73
    %p75 = scmp.ne.s32.totalorder %s66, %s67
    %p76 = scmp.eq.s32.totalorder %s14, 0
    %p77 = por %p75, %p76
    %p78 = scmp.ne.s32.totalorder %s66, %s67
    %p79 = scmp.eq.s32.totalorder %s15, 1
    %p80 = por %p78, %p79
    %p82 = scmp.ne.s32.totalorder %s67, %s81
    %p83 = scmp.eq.s32.totalorder %s15, 0
    %p84 = por %p82, %p83
    %s85 = ssub.s32 %s9, %s16
    %p86 = scmp.eq.s32.totalorder %s85, 0
    %s88 = sadd.s32 %s87, 1
    %s89 = scalar_select %p86, %s87, %s88
    %p92 = pneg %p86
    %p93 = scmp.eq.s32.totalorder %s9, 1
    %p94 = por %p92, %p93
    %p95 = scmp.ne.s32.totalorder %s87, %s90
    %p96 = scmp.eq.s32.totalorder %s9, 0
    %p97 = por %p95, %p96
    %p98 = scmp.ne.s32.totalorder %s87, %s90
    %p99 = scmp.eq.s32.totalorder %s14, 1
    %p100 = por %p98, %p99
    %p101 = scmp.ne.s32.totalorder %s90, %s91
    %p102 = scmp.eq.s32.totalorder %s14, 0
    %p103 = por %p101, %p102
    %p104 = scmp.ne.s32.totalorder %s90, %s91
    %p105 = scmp.eq.s32.totalorder %s15, 1
    %p106 = por %p104, %p105
    %p108 = scmp.ne.s32.totalorder %s91, %s107
    %p109 = scmp.eq.s32.totalorder %s15, 0
    %p110 = por %p108, %p109
    %p111 = scmp.le.s32.totalorder 1, %s9
    %p112 = scmp.lt.s32.totalorder %s9, 3
    %p113 = pnand %p111, %p112
    %p114 = pneg %p113
    // Predicated region
    $region9: #{_lambda_.10} parent=5 // pred_check
      _
    $region10: #{_lambda_.10} parent=5 // pred_check_branch
      %116 = sbr.rel (%p113) target = $region12
    $region11: #{_lambda_.10} parent=5 // pred_region
      %s117 = ssub.s32 %s9, 1
      // Predicated region
      $region13: #{_lambda_.10} parent=11 // pred_check
        %p118 = pneg %p56
      $region14: #{_lambda_.10} parent=11 // pred_check_branch
        %120 = sbr.rel (%p118) target = $region16
      $region15: #{_lambda_.10} parent=11 // pred_region
        _
      $region16: #{_lambda_.10} parent=11 // pred_fallthru
        _
      // Predicated region
      $region17: #{_lambda_.10} parent=11 // pred_check
        %p121 = pneg %p77
      $region18: #{_lambda_.10} parent=11 // pred_check_branch
        %123 = sbr.rel (%p121) target = $region20
      $region19: #{_lambda_.10} parent=11 // pred_region
        _
      $region20: #{_lambda_.10} parent=11 // pred_fallthru
        _
    $region12: #{_lambda_.10} parent=5 // pred_fallthru
      _
    %p124 = scmp.lt.s32.totalorder %s9, 2
    // Predicated region
    $region21: #{_lambda_.10} parent=5 // pred_check
      %p125 = pneg %p124
    $region22: #{_lambda_.10} parent=5 // pred_check_branch
      %127 = sbr.rel (%p125) target = $region24
    $region23: #{_lambda_.10} parent=5 // pred_region
      // Predicated region
      $region25: #{_lambda_.10} parent=23 // pred_check
        %p128 = pneg %p29
      $region26: #{_lambda_.10} parent=23 // pred_check_branch
        %130 = sbr.rel (%p128) target = $region28
      $region27: #{_lambda_.10} parent=23 // pred_region
        %s131 = smul.u32 8, %s9
        %p132 = scmp.lt.s32.totalorder %s131, 15
        %s133 = scalar_select %p132, %s131, 15
        %s134 = smul.addr %s133, 8
        %s135 = scalar_lea.vmem %s0, %s134
        %s136 = smul.u32 8, %s9
      $region28: #{_lambda_.10} parent=23 // pred_fallthru
        _
    $region24: #{_lambda_.10} parent=5 // pred_fallthru
      _
    %p137 = scmp.le.s32.totalorder 1, %s9
    %p138 = scmp.lt.s32.totalorder %s9, 3
    %p139 = pnand %p137, %p138
    %p140 = pneg %p139
    // Predicated region
    $region29: #{_lambda_.10} parent=5 // pred_check
      _
    $region30: #{_lambda_.10} parent=5 // pred_check_branch
      %142 = sbr.rel (%p139) target = $region32
    $region31: #{_lambda_.10} parent=5 // pred_region
      %s143 = ssub.s32 %s9, 1
      %s144 = smul.u32 8, %s14
      %p145 = scmp.lt.s32.totalorder %s144, 15
      %s146 = scalar_select %p145, %s144, 15
      %s147 = smul.addr %s146, 8
      %s148 = scalar_lea.vmem %s0, %s147
      %p149 = pneg %p35
      %p150 = pneg %p32
      %p151 = pneg %p56
      %p152 = pneg %p53
      %p153 = pneg %p77
      %p154 = pneg %p74
      %p155 = pneg %p103
      %p156 = pneg %p100
      %s157 = smul.u32 8, %s14
      %p158 = scmp.lt.s32.totalorder %s157, 15
      %s159 = scalar_select %p158, %s157, 15
      %s160 = smul.addr %s159, 8
      %s161 = scalar_lea.vmem %s3, %s160
      %s162 = smul.u32 8, %s14
      %p163 = scmp.lt.s32.totalorder %s162, 15
      %s164 = scalar_select %p163, %s162, 15
      %s165 = smul.addr %s164, 8
      %s166 = scalar_lea.vmem %s0, %s165
      %s167 = smul.u32 8, %s14
      %s168 = smul.u32 8, %s14
      %p169 = scmp.lt.s32.totalorder %s168, 15
      %s170 = scalar_select %p169, %s168, 15
      %s171 = smul.addr %s170, 8
      %s172 = scalar_lea.vmem %s3, %s171
      %s173 = smul.u32 8, %s14
      %v174 = vld [vmem:[%s166] sm:$0xff]
      %v175 = vld [vmem:[%s166 + $0x8] sm:$0xff]
      %v176 = vld [vmem:[%s166 + $0x10] sm:$0xff]
      %v177 = vld [vmem:[%s166 + $0x18] sm:$0xff]
      %v178 = vld [vmem:[%s166 + $0x20] sm:$0xff]
      %v179 = vld [vmem:[%s166 + $0x28] sm:$0xff]
      %v180 = vld [vmem:[%s166 + $0x30] sm:$0xff]
      %v181 = vld [vmem:[%s166 + $0x38] sm:$0xff]
      %v182 = vld [vmem:[%s1] sm:$0xff]
      %v183 = vld [vmem:[%s1 + $0x8] sm:$0xff]
      %v184 = vld [vmem:[%s2] sm:$0x1]
      %v186 = vperm.slane %v184, 0
      %vm188 = vcmask 130048
      %v190 = vsel %vm188, %v174, 0
      %v193 = vsel %vm188, %v175, 0
      %v196 = vsel %vm188, %v176, 0
      %v199 = vsel %vm188, %v177, 0
      %v202 = vsel %vm188, %v178, 0
      %v205 = vsel %vm188, %v179, 0
      %v208 = vsel %vm188, %v180, 0
      %v211 = vsel %vm188, %v181, 0
      %213 = vmatpush.msra.mxu0 0.0
      %214 = vmatpush.msra.mxu0 0.0
      %215 = vmatpush.msra.mxu0 0.0
      %216 = vmatpush.msra.mxu0 0.0
      %217 = vmatpush.msra.mxu0 0.0
      %218 = vmatpush.msra.mxu0 0.0
      %219 = vmatpush.msra.mxu0 0.0
      %220 = vmatpush.msra.mxu0 0.0
      %221 = vmatpush.msra.mxu0 0.0
      %222 = vmatpush.msra.mxu0 0.0
      %223 = vmatpush.msra.mxu0 0.0
      %224 = vmatpush.msra.mxu0 0.0
      %225 = vmatpush.msra.mxu0 0.0
      %226 = vmatpush.msra.mxu0 0.0
      %227 = vmatpush.msra.mxu0 %v183
      %228 = vmatpush.msra.mxu0 %v182
      %229 = vmatmul.f32.gmra.mxu0 %v190
      %v230 = vpop.f32.mrf.mxu0
      %v231 = vadd.f32 %v186, %v230
      %232 = vmatmul.f32.gmra.mxu0 %v193
      %v233 = vpop.f32.mrf.mxu0
      %v234 = vadd.f32 %v186, %v233
      %235 = vmatmul.f32.gmra.mxu0 %v196
      %v236 = vpop.f32.mrf.mxu0
      %v237 = vadd.f32 %v186, %v236
      %238 = vmatmul.f32.gmra.mxu0 %v199
      %v239 = vpop.f32.mrf.mxu0
      %v240 = vadd.f32 %v186, %v239
      %241 = vmatmul.f32.gmra.mxu0 %v202
      %v242 = vpop.f32.mrf.mxu0
      %v243 = vadd.f32 %v186, %v242
      %244 = vmatmul.f32.gmra.mxu0 %v205
      %v245 = vpop.f32.mrf.mxu0
      %v246 = vadd.f32 %v186, %v245
      %247 = vmatmul.f32.gmra.mxu0 %v208
      %v248 = vpop.f32.mrf.mxu0
      %v249 = vadd.f32 %v186, %v248
      %250 = vmatmul.f32.gmra.mxu0 %v211
      %v251 = vpop.f32.mrf.mxu0
      %v252 = vadd.f32 %v186, %v251
      %253 = vdwg.mxu0
      %254 = vst [vmem:[%s172] sm:$0xff] %v231
      %255 = vst [vmem:[%s172 + $0x8] sm:$0xff] %v234
      %256 = vst [vmem:[%s172 + $0x10] sm:$0xff] %v237
      %257 = vst [vmem:[%s172 + $0x18] sm:$0xff] %v240
      %258 = vst [vmem:[%s172 + $0x20] sm:$0xff] %v243
      %259 = vst [vmem:[%s172 + $0x28] sm:$0xff] %v246
      %260 = vst [vmem:[%s172 + $0x30] sm:$0xff] %v249
      %261 = vst [vmem:[%s172 + $0x38] sm:$0xff] %v252
      %s262 = smul.u32 8, %s14
      %p263 = scmp.lt.s32.totalorder %s262, 15
      %s264 = scalar_select %p263, %s262, 15
      %s265 = smul.addr %s264, 8
      %s266 = scalar_lea.vmem %s3, %s265
      // Predicated region
      $region33: #{_lambda_.10} parent=31 // pred_check
        %p267 = pneg %p100
      $region34: #{_lambda_.10} parent=31 // pred_check_branch
        %269 = sbr.rel (%p267) target = $region36
      $region35: #{_lambda_.10} parent=31 // pred_region
        %s270 = smul.u32 8, %s14
      $region36: #{_lambda_.10} parent=31 // pred_fallthru
        _
    $region32: #{_lambda_.10} parent=5 // pred_fallthru
      _
    %p271 = scmp.le.s32.totalorder 2, %s9
    // Predicated region
    $region37: #{_lambda_.10} parent=5 // pred_check
      %p272 = pneg %p271
    $region38: #{_lambda_.10} parent=5 // pred_check_branch
      %274 = sbr.rel (%p272) target = $region40
    $region39: #{_lambda_.10} parent=5 // pred_region
      %s275 = ssub.s32 %s9, 2
      // Predicated region
      $region41: #{_lambda_.10} parent=39 // pred_check
        %p276 = pneg %p106
      $region42: #{_lambda_.10} parent=39 // pred_check_branch
        %278 = sbr.rel (%p276) target = $region44
      $region43: #{_lambda_.10} parent=39 // pred_region
        %s279 = smul.u32 8, %s15
        %p280 = scmp.lt.s32.totalorder %s279, 15
        %s281 = scalar_select %p280, %s279, 15
        %s282 = smul.addr %s281, 8
        %s283 = scalar_lea.vmem %s3, %s282
      $region44: #{_lambda_.10} parent=39 // pred_fallthru
        _
    $region40: #{_lambda_.10} parent=5 // pred_fallthru
      _
  $region6: #{_lambda_.10} parent=0 // loop_footer
    %s13 = sadd.s32 1, %s9
  $region7: #{_lambda_.10} parent=0 // loop_footer_branch
    %8 = sbr.rel target = $region3
  $region8: #{_lambda_.10} parent=0 // loop_exit
    _

// kernel: _lambda_.12
$region0: #{_lambda_.12}
  #allocation0 [shape = 'u32[]', space=smem, size = 0x4, offset = 0x4, fixed_abs, tag = 'smem constant byte address 0x4 - core index']
  #allocation1 [shape = 'u32[72,128]{1,0:T(1,128)}', space=vmem, size = 0x9000, scoped, tag = 'internal scratch']
  %s0 = inlined_call_operand.vmem [shape: f32[512,24], index: 0, kind: input, shape index: {}]
  %s1 = inlined_call_operand.vmem [shape: f32[24,128], index: 1, kind: input, shape index: {}]
  %s2 = inlined_call_operand.vmem [shape: f32[1,128], index: 2, kind: input, shape index: {}]
  %s3 = inlined_call_operand.vmem [shape: f32[512,128], index: 3, kind: output, shape index: {}]
  %s4 = sld [smem:[#allocation0]]
  $region45: #{_lambda_.12} parent=0
    _
  %s6 = ssub.s32 1, %s4
  %s7 = scalar_select 0, %s6, %s4
  loop: start=0, step=1, limit=4
  $region2: #{_lambda_.12} parent=0 // loop_pre_header
    _
  $region3: #{_lambda_.12} parent=0 // loop_header
    %s9 = sphi 0, %s13
    %p10 = scmp.ge.s32.totalorder %s9, 4
    %s19 = sphi 0, %s21
    %s22 = sphi 0, %s19
    %s23 = sphi 0, %s22
    %s39 = sphi 0, %s23
    %s43 = sphi 0, %s43
    %s45 = sphi 0, %s43
    %s46 = sphi 0, %s45
    %s60 = sphi 0, %s46
    %s64 = sphi 0, %s64
    %s66 = sphi 0, %s64
    %s67 = sphi 0, %s66
    %s81 = sphi 0, %s67
    %s87 = sphi 0, %s89
    %s90 = sphi 0, %s87
    %s91 = sphi 0, %s90
    %s107 = sphi 0, %s91
  $region4: #{_lambda_.12} parent=0 // loop_header_branch
    %12 = sbr.rel (%p10) target = $region8
  $region5: #{_lambda_.12} parent=0 // loop_body
    %s14 = ssub.s32 %s9, 1
    %s15 = ssub.s32 %s9, 2
    %s16 = sadd.s32 %s9, 1
    %s17 = ssub.s32 %s9, %s16
    %p18 = scmp.eq.s32.totalorder %s17, 0
    %s20 = sadd.s32 %s19, 1
    %s21 = scalar_select %p18, %s19, %s20
    %p24 = pneg %p18
    %p25 = scmp.eq.s32.totalorder %s9, 1
    %p26 = por %p24, %p25
    %p27 = scmp.ne.s32.totalorder %s19, %s22
    %p28 = scmp.eq.s32.totalorder %s9, 0
    %p29 = por %p27, %p28
    %p30 = scmp.ne.s32.totalorder %s19, %s22
    %p31 = scmp.eq.s32.totalorder %s14, 1
    %p32 = por %p30, %p31
    %p33 = scmp.ne.s32.totalorder %s22, %s23
    %p34 = scmp.eq.s32.totalorder %s14, 0
    %p35 = por %p33, %p34
    %p36 = scmp.ne.s32.totalorder %s22, %s23
    %p37 = scmp.eq.s32.totalorder %s15, 1
    %p38 = por %p36, %p37
    %p40 = scmp.ne.s32.totalorder %s23, %s39
    %p41 = scmp.eq.s32.totalorder %s15, 0
    %p42 = por %p40, %p41
    %s44 = sadd.s32 %s43, 1
    %p47 = scmp.eq.s32.totalorder %s9, 1
    %p48 = scmp.ne.s32.totalorder %s43, %s45
    %p49 = scmp.eq.s32.totalorder %s9, 0
    %p50 = por %p48, %p49
    %p51 = scmp.ne.s32.totalorder %s43, %s45
    %p52 = scmp.eq.s32.totalorder %s14, 1
    %p53 = por %p51, %p52
    %p54 = scmp.ne.s32.totalorder %s45, %s46
    %p55 = scmp.eq.s32.totalorder %s14, 0
    %p56 = por %p54, %p55
    %p57 = scmp.ne.s32.totalorder %s45, %s46
    %p58 = scmp.eq.s32.totalorder %s15, 1
    %p59 = por %p57, %p58
    %p61 = scmp.ne.s32.totalorder %s46, %s60
    %p62 = scmp.eq.s32.totalorder %s15, 0
    %p63 = por %p61, %p62
    %s65 = sadd.s32 %s64, 1
    %p68 = scmp.eq.s32.totalorder %s9, 1
    %p69 = scmp.ne.s32.totalorder %s64, %s66
    %p70 = scmp.eq.s32.totalorder %s9, 0
    %p71 = por %p69, %p70
    %p72 = scmp.ne.s32.totalorder %s64, %s66
    %p73 = scmp.eq.s32.totalorder %s14, 1
    %p74 = por %p72, %p73
    %p75 = scmp.ne.s32.totalorder %s66, %s67
    %p76 = scmp.eq.s32.totalorder %s14, 0
    %p77 = por %p75, %p76
    %p78 = scmp.ne.s32.totalorder %s66, %s67
    %p79 = scmp.eq.s32.totalorder %s15, 1
    %p80 = por %p78, %p79
    %p82 = scmp.ne.s32.totalorder %s67, %s81
    %p83 = scmp.eq.s32.totalorder %s15, 0
    %p84 = por %p82, %p83
    %s85 = ssub.s32 %s9, %s16
    %p86 = scmp.eq.s32.totalorder %s85, 0
    %s88 = sadd.s32 %s87, 1
    %s89 = scalar_select %p86, %s87, %s88
    %p92 = pneg %p86
    %p93 = scmp.eq.s32.totalorder %s9, 1
    %p94 = por %p92, %p93
    %p95 = scmp.ne.s32.totalorder %s87, %s90
    %p96 = scmp.eq.s32.totalorder %s9, 0
    %p97 = por %p95, %p96
    %p98 = scmp.ne.s32.totalorder %s87, %s90
    %p99 = scmp.eq.s32.totalorder %s14, 1
    %p100 = por %p98, %p99
    %p101 = scmp.ne.s32.totalorder %s90, %s91
    %p102 = scmp.eq.s32.totalorder %s14, 0
    %p103 = por %p101, %p102
    %p104 = scmp.ne.s32.totalorder %s90, %s91
    %p105 = scmp.eq.s32.totalorder %s15, 1
    %p106 = por %p104, %p105
    %p108 = scmp.ne.s32.totalorder %s91, %s107
    %p109 = scmp.eq.s32.totalorder %s15, 0
    %p110 = por %p108, %p109
    %p111 = scmp.le.s32.totalorder 1, %s9
    %p112 = scmp.lt.s32.totalorder %s9, 3
    %p113 = pnand %p111, %p112
    %p114 = pneg %p113
    // Predicated region
    $region9: #{_lambda_.12} parent=5 // pred_check
      _
    $region10: #{_lambda_.12} parent=5 // pred_check_branch
      %116 = sbr.rel (%p113) target = $region12
    $region11: #{_lambda_.12} parent=5 // pred_region
      %s117 = ssub.s32 %s9, 1
      // Predicated region
      $region13: #{_lambda_.12} parent=11 // pred_check
        %p118 = pneg %p56
      $region14: #{_lambda_.12} parent=11 // pred_check_branch
        %120 = sbr.rel (%p118) target = $region16
      $region15: #{_lambda_.12} parent=11 // pred_region
        _
      $region16: #{_lambda_.12} parent=11 // pred_fallthru
        _
      // Predicated region
      $region17: #{_lambda_.12} parent=11 // pred_check
        %p121 = pneg %p77
      $region18: #{_lambda_.12} parent=11 // pred_check_branch
        %123 = sbr.rel (%p121) target = $region20
      $region19: #{_lambda_.12} parent=11 // pred_region
        _
      $region20: #{_lambda_.12} parent=11 // pred_fallthru
        _
    $region12: #{_lambda_.12} parent=5 // pred_fallthru
      _
    %p124 = scmp.lt.s32.totalorder %s9, 2
    // Predicated region
    $region21: #{_lambda_.12} parent=5 // pred_check
      %p125 = pneg %p124
    $region22: #{_lambda_.12} parent=5 // pred_check_branch
      %127 = sbr.rel (%p125) target = $region24
    $region23: #{_lambda_.12} parent=5 // pred_region
      // Predicated region
      $region25: #{_lambda_.12} parent=23 // pred_check
        %p128 = pneg %p29
      $region26: #{_lambda_.12} parent=23 // pred_check_branch
        %130 = sbr.rel (%p128) target = $region28
      $region27: #{_lambda_.12} parent=23 // pred_region
        %s131 = smul.u32 32, %s9
        %p132 = scmp.lt.s32.totalorder %s131, 63
        %s133 = scalar_select %p132, %s131, 63
        %s134 = smul.addr %s133, 8
        %s135 = scalar_lea.vmem %s0, %s134
        %s136 = smul.u32 32, %s9
      $region28: #{_lambda_.12} parent=23 // pred_fallthru
        _
    $region24: #{_lambda_.12} parent=5 // pred_fallthru
      _
    %p137 = scmp.le.s32.totalorder 1, %s9
    %p138 = scmp.lt.s32.totalorder %s9, 3
    %p139 = pnand %p137, %p138
    %p140 = pneg %p139
    // Predicated region
    $region29: #{_lambda_.12} parent=5 // pred_check
      _
    $region30: #{_lambda_.12} parent=5 // pred_check_branch
      %142 = sbr.rel (%p139) target = $region32
    $region31: #{_lambda_.12} parent=5 // pred_region
      %s143 = ssub.s32 %s9, 1
      %s144 = smul.u32 32, %s14
      %p145 = scmp.lt.s32.totalorder %s144, 63
      %s146 = scalar_select %p145, %s144, 63
      %s147 = smul.addr %s146, 8
      %s148 = scalar_lea.vmem %s0, %s147
      %p149 = pneg %p35
      %p150 = pneg %p32
      %p151 = pneg %p56
      %p152 = pneg %p53
      %p153 = pneg %p77
      %p154 = pneg %p74
      %p155 = pneg %p103
      %p156 = pneg %p100
      %s157 = smul.u32 32, %s14
      %p158 = scmp.lt.s32.totalorder %s157, 63
      %s159 = scalar_select %p158, %s157, 63
      %s160 = smul.addr %s159, 8
      %s161 = scalar_lea.vmem %s3, %s160
      %s162 = smul.u32 32, %s14
      %p163 = scmp.lt.s32.totalorder %s162, 63
      %s164 = scalar_select %p163, %s162, 63
      %s165 = smul.addr %s164, 8
      %s166 = scalar_lea.vmem %s0, %s165
      %s167 = smul.u32 32, %s14
      %s168 = smul.u32 32, %s14
      %p169 = scmp.lt.s32.totalorder %s168, 63
      %s170 = scalar_select %p169, %s168, 63
      %s171 = smul.addr %s170, 8
      %s172 = scalar_lea.vmem %s3, %s171
      %s173 = smul.u32 32, %s14
      %v174 = vld [vmem:[%s166] sm:$0xff]
      %v175 = vld [vmem:[%s166 + $0x8] sm:$0xff]
      %v176 = vld [vmem:[%s166 + $0x10] sm:$0xff]
      %v177 = vld [vmem:[%s166 + $0x18] sm:$0xff]
      %v178 = vld [vmem:[%s166 + $0x20] sm:$0xff]
      %v179 = vld [vmem:[%s166 + $0x28] sm:$0xff]
      %v180 = vld [vmem:[%s166 + $0x30] sm:$0xff]
      %v181 = vld [vmem:[%s166 + $0x38] sm:$0xff]
      %v182 = vld [vmem:[%s166 + $0x40] sm:$0xff]
      %v183 = vld [vmem:[%s166 + $0x48] sm:$0xff]
      %v184 = vld [vmem:[%s166 + $0x50] sm:$0xff]
      %v185 = vld [vmem:[%s166 + $0x58] sm:$0xff]
      %v186 = vld [vmem:[%s166 + $0x60] sm:$0xff]
      %v187 = vld [vmem:[%s166 + $0x68] sm:$0xff]
      %v188 = vld [vmem:[%s166 + $0x70] sm:$0xff]
      %v189 = vld [vmem:[%s166 + $0x78] sm:$0xff]
      %v190 = vld [vmem:[%s166 + $0x80] sm:$0xff]
      %v191 = vld [vmem:[%s166 + $0x88] sm:$0xff]
      %v192 = vld [vmem:[%s166 + $0x90] sm:$0xff]
      %v193 = vld [vmem:[%s166 + $0x98] sm:$0xff]
      %v194 = vld [vmem:[%s166 + $0xa0] sm:$0xff]
      %v195 = vld [vmem:[%s166 + $0xa8] sm:$0xff]
      %v196 = vld [vmem:[%s166 + $0xb0] sm:$0xff]
      %v197 = vld [vmem:[%s166 + $0xb8] sm:$0xff]
      %v198 = vld [vmem:[%s166 + $0xc0] sm:$0xff]
      %v199 = vld [vmem:[%s166 + $0xc8] sm:$0xff]
      %v200 = vld [vmem:[%s166 + $0xd0] sm:$0xff]
      %v201 = vld [vmem:[%s166 + $0xd8] sm:$0xff]
      %v202 = vld [vmem:[%s166 + $0xe0] sm:$0xff]
      %v203 = vld [vmem:[%s166 + $0xe8] sm:$0xff]
      %v204 = vld [vmem:[%s166 + $0xf0] sm:$0xff]
      %v205 = vld [vmem:[%s166 + $0xf8] sm:$0xff]
      %v206 = vld [vmem:[%s1] sm:$0xff]
      %v207 = vld [vmem:[%s1 + $0x8] sm:$0xff]
      %v208 = vld [vmem:[%s1 + $0x10] sm:$0xff]
      %v209 = vld [vmem:[%s2] sm:$0x1]
      %v211 = vperm.slane %v209, 0
      %vm213 = vcmask 195584
      %v215 = vsel %vm213, %v174, 0
      %v218 = vsel %vm213, %v175, 0
      %v221 = vsel %vm213, %v176, 0
      %v224 = vsel %vm213, %v177, 0
      %v227 = vsel %vm213, %v178, 0
      %v230 = vsel %vm213, %v179, 0
      %v233 = vsel %vm213, %v180, 0
      %v236 = vsel %vm213, %v181, 0
      %v239 = vsel %vm213, %v182, 0
      %v242 = vsel %vm213, %v183, 0
      %v245 = vsel %vm213, %v184, 0
      %v248 = vsel %vm213, %v185, 0
      %v251 = vsel %vm213, %v186, 0
      %v254 = vsel %vm213, %v187, 0
      %v257 = vsel %vm213, %v188, 0
      %v260 = vsel %vm213, %v189, 0
      %v263 = vsel %vm213, %v190, 0
      %v266 = vsel %vm213, %v191, 0
      %v269 = vsel %vm213, %v192, 0
      %v272 = vsel %vm213, %v193, 0
      %v275 = vsel %vm213, %v194, 0
      %v278 = vsel %vm213, %v195, 0
      %v281 = vsel %vm213, %v196, 0
      %v284 = vsel %vm213, %v197, 0
      %v287 = vsel %vm213, %v198, 0
      %v290 = vsel %vm213, %v199, 0
      %v293 = vsel %vm213, %v200, 0
      %v296 = vsel %vm213, %v201, 0
      %v299 = vsel %vm213, %v202, 0
      %v302 = vsel %vm213, %v203, 0
      %v305 = vsel %vm213, %v204, 0
      %v308 = vsel %vm213, %v205, 0
      %310 = vmatpush.msra.mxu0 0.0
      %311 = vmatpush.msra.mxu0 0.0
      %312 = vmatpush.msra.mxu0 0.0
      %313 = vmatpush.msra.mxu0 0.0
      %314 = vmatpush.msra.mxu0 0.0
      %315 = vmatpush.msra.mxu0 0.0
      %316 = vmatpush.msra.mxu0 0.0
      %317 = vmatpush.msra.mxu0 0.0
      %318 = vmatpush.msra.mxu0 0.0
      %319 = vmatpush.msra.mxu0 0.0
      %320 = vmatpush.msra.mxu0 0.0
      %321 = vmatpush.msra.mxu0 0.0
      %322 = vmatpush.msra.mxu0 0.0
      %323 = vmatpush.msra.mxu0 %v208
      %324 = vmatpush.msra.mxu0 %v207
      %325 = vmatpush.msra.mxu0 %v206
      %326 = vmatmul.f32.gmra.mxu0 %v215
      %v327 = vpop.f32.mrf.mxu0
      %v328 = vadd.f32 %v211, %v327
      %329 = vmatmul.f32.gmra.mxu0 %v218
      %v330 = vpop.f32.mrf.mxu0
      %v331 = vadd.f32 %v211, %v330
      %332 = vmatmul.f32.gmra.mxu0 %v221
      %v333 = vpop.f32.mrf.mxu0
      %v334 = vadd.f32 %v211, %v333
      %335 = vmatmul.f32.gmra.mxu0 %v224
      %v336 = vpop.f32.mrf.mxu0
      %v337 = vadd.f32 %v211, %v336
      %338 = vmatmul.f32.gmra.mxu0 %v227
      %v339 = vpop.f32.mrf.mxu0
      %v340 = vadd.f32 %v211, %v339
      %341 = vmatmul.f32.gmra.mxu0 %v230
      %v342 = vpop.f32.mrf.mxu0
      %v343 = vadd.f32 %v211, %v342
      %344 = vmatmul.f32.gmra.mxu0 %v233
      %v345 = vpop.f32.mrf.mxu0
      %v346 = vadd.f32 %v211, %v345
      %347 = vmatmul.f32.gmra.mxu0 %v236
      %v348 = vpop.f32.mrf.mxu0
      %v349 = vadd.f32 %v211, %v348
      %350 = vmatmul.f32.gmra.mxu0 %v239
      %v351 = vpop.f32.mrf.mxu0
      %v352 = vadd.f32 %v211, %v351
      %353 = vmatmul.f32.gmra.mxu0 %v242
      %v354 = vpop.f32.mrf.mxu0
      %v355 = vadd.f32 %v211, %v354
      %356 = vmatmul.f32.gmra.mxu0 %v245
      %v357 = vpop.f32.mrf.mxu0
      %v358 = vadd.f32 %v211, %v357
      %359 = vmatmul.f32.gmra.mxu0 %v248
      %v360 = vpop.f32.mrf.mxu0
      %v361 = vadd.f32 %v211, %v360
      %362 = vmatmul.f32.gmra.mxu0 %v251
      %v363 = vpop.f32.mrf.mxu0
      %v364 = vadd.f32 %v211, %v363
      %365 = vmatmul.f32.gmra.mxu0 %v254
      %v366 = vpop.f32.mrf.mxu0
      %v367 = vadd.f32 %v211, %v366
      %368 = vmatmul.f32.gmra.mxu0 %v257
      %v369 = vpop.f32.mrf.mxu0
      %v370 = vadd.f32 %v211, %v369
      %371 = vmatmul.f32.gmra.mxu0 %v260
      %v372 = vpop.f32.mrf.mxu0
      %v373 = vadd.f32 %v211, %v372
      %374 = vmatmul.f32.gmra.mxu0 %v263
      %v375 = vpop.f32.mrf.mxu0
      %v376 = vadd.f32 %v211, %v375
      %377 = vmatmul.f32.gmra.mxu0 %v266
      %v378 = vpop.f32.mrf.mxu0
      %v379 = vadd.f32 %v211, %v378
      %380 = vmatmul.f32.gmra.mxu0 %v269
      %v381 = vpop.f32.mrf.mxu0
      %v382 = vadd.f32 %v211, %v381
      %383 = vmatmul.f32.gmra.mxu0 %v272
      %v384 = vpop.f32.mrf.mxu0
      %v385 = vadd.f32 %v211, %v384
      %386 = vmatmul.f32.gmra.mxu0 %v275
      %v387 = vpop.f32.mrf.mxu0
      %v388 = vadd.f32 %v211, %v387
      %389 = vmatmul.f32.gmra.mxu0 %v278
      %v390 = vpop.f32.mrf.mxu0
      %v391 = vadd.f32 %v211, %v390
      %392 = vmatmul.f32.gmra.mxu0 %v281
      %v393 = vpop.f32.mrf.mxu0
      %v394 = vadd.f32 %v211, %v393
      %395 = vmatmul.f32.gmra.mxu0 %v284
      %v396 = vpop.f32.mrf.mxu0
      %v397 = vadd.f32 %v211, %v396
      %398 = vmatmul.f32.gmra.mxu0 %v287
      %v399 = vpop.f32.mrf.mxu0
      %v400 = vadd.f32 %v211, %v399
      %401 = vmatmul.f32.gmra.mxu0 %v290
      %v402 = vpop.f32.mrf.mxu0
      %v403 = vadd.f32 %v211, %v402
      %404 = vmatmul.f32.gmra.mxu0 %v293
      %v405 = vpop.f32.mrf.mxu0
      %v406 = vadd.f32 %v211, %v405
      %407 = vmatmul.f32.gmra.mxu0 %v296
      %v408 = vpop.f32.mrf.mxu0
      %v409 = vadd.f32 %v211, %v408
      %410 = vmatmul.f32.gmra.mxu0 %v299
      %v411 = vpop.f32.mrf.mxu0
      %v412 = vadd.f32 %v211, %v411
      %413 = vmatmul.f32.gmra.mxu0 %v302
      %v414 = vpop.f32.mrf.mxu0
      %v415 = vadd.f32 %v211, %v414
      %416 = vmatmul.f32.gmra.mxu0 %v305
      %v417 = vpop.f32.mrf.mxu0
      %v418 = vadd.f32 %v211, %v417
      %419 = vmatmul.f32.gmra.mxu0 %v308
      %v420 = vpop.f32.mrf.mxu0
      %v421 = vadd.f32 %v211, %v420
      %422 = vdwg.mxu0
      %423 = vst [vmem:[%s172] sm:$0xff] %v328
      %424 = vst [vmem:[%s172 + $0x8] sm:$0xff] %v331
      %425 = vst [vmem:[%s172 + $0x10] sm:$0xff] %v334
      %426 = vst [vmem:[%s172 + $0x18] sm:$0xff] %v337
      %427 = vst [vmem:[%s172 + $0x20] sm:$0xff] %v340
      %428 = vst [vmem:[%s172 + $0x28] sm:$0xff] %v343
      %429 = vst [vmem:[%s172 + $0x30] sm:$0xff] %v346
      %430 = vst [vmem:[%s172 + $0x38] sm:$0xff] %v349
      %431 = vst [vmem:[%s172 + $0x40] sm:$0xff] %v352
      %432 = vst [vmem:[%s172 + $0x48] sm:$0xff] %v355
      %433 = vst [vmem:[%s172 + $0x50] sm:$0xff] %v358
      %434 = vst [vmem:[%s172 + $0x58] sm:$0xff] %v361
      %435 = vst [vmem:[%s172 + $0x60] sm:$0xff] %v364
      %436 = vst [vmem:[%s172 + $0x68] sm:$0xff] %v367
      %437 = vst [vmem:[%s172 + $0x70] sm:$0xff] %v370
      %438 = vst [vmem:[%s172 + $0x78] sm:$0xff] %v373
      %439 = vst [vmem:[%s172 + $0x80] sm:$0xff] %v376
      %440 = vst [vmem:[%s172 + $0x88] sm:$0xff] %v379
      %441 = vst [vmem:[%s172 + $0x90] sm:$0xff] %v382
      %442 = vst [vmem:[%s172 + $0x98] sm:$0xff] %v385
      %443 = vst [vmem:[%s172 + $0xa0] sm:$0xff] %v388
      %444 = vst [vmem:[%s172 + $0xa8] sm:$0xff] %v391
      %445 = vst [vmem:[%s172 + $0xb0] sm:$0xff] %v394
      %446 = vst [vmem:[%s172 + $0xb8] sm:$0xff] %v397
      %447 = vst [vmem:[%s172 + $0xc0] sm:$0xff] %v400
      %448 = vst [vmem:[%s172 + $0xc8] sm:$0xff] %v403
      %449 = vst [vmem:[%s172 + $0xd0] sm:$0xff] %v406
      %450 = vst [vmem:[%s172 + $0xd8] sm:$0xff] %v409
      %451 = vst [vmem:[%s172 + $0xe0] sm:$0xff] %v412
      %452 = vst [vmem:[%s172 + $0xe8] sm:$0xff] %v415
      %453 = vst [vmem:[%s172 + $0xf0] sm:$0xff] %v418
      %454 = vst [vmem:[%s172 + $0xf8] sm:$0xff] %v421
      %s455 = smul.u32 32, %s14
      %p456 = scmp.lt.s32.totalorder %s455, 63
      %s457 = scalar_select %p456, %s455, 63
      %s458 = smul.addr %s457, 8
      %s459 = scalar_lea.vmem %s3, %s458
      // Predicated region
      $region33: #{_lambda_.12} parent=31 // pred_check
        %p460 = pneg %p100
      $region34: #{_lambda_.12} parent=31 // pred_check_branch
        %462 = sbr.rel (%p460) target = $region36
      $region35: #{_lambda_.12} parent=31 // pred_region
        %s463 = smul.u32 32, %s14
      $region36: #{_lambda_.12} parent=31 // pred_fallthru
        _
    $region32: #{_lambda_.12} parent=5 // pred_fallthru
      _
    %p464 = scmp.le.s32.totalorder 2, %s9
    // Predicated region
    $region37: #{_lambda_.12} parent=5 // pred_check
      %p465 = pneg %p464
    $region38: #{_lambda_.12} parent=5 // pred_check_branch
      %467 = sbr.rel (%p465) target = $region40
    $region39: #{_lambda_.12} parent=5 // pred_region
      %s468 = ssub.s32 %s9, 2
      // Predicated region
      $region41: #{_lambda_.12} parent=39 // pred_check
        %p469 = pneg %p106
      $region42: #{_lambda_.12} parent=39 // pred_check_branch
        %471 = sbr.rel (%p469) target = $region44
      $region43: #{_lambda_.12} parent=39 // pred_region
        %s472 = smul.u32 32, %s15
        %p473 = scmp.lt.s32.totalorder %s472, 63
        %s474 = scalar_select %p473, %s472, 63
        %s475 = smul.addr %s474, 8
        %s476 = scalar_lea.vmem %s3, %s475
      $region44: #{_lambda_.12} parent=39 // pred_fallthru
        _
    $region40: #{_lambda_.12} parent=5 // pred_fallthru
      _
  $region6: #{_lambda_.12} parent=0 // loop_footer
    %s13 = sadd.s32 1, %s9
  $region7: #{_lambda_.12} parent=0 // loop_footer_branch
    %8 = sbr.rel target = $region3
  $region8: #{_lambda_.12} parent=0 // loop_exit
    _

// kernel: _lambda_.13
$region0: #{_lambda_.13}
  #allocation0 [shape = 'u32[]', space=smem, size = 0x4, offset = 0x4, fixed_abs, tag = 'smem constant byte address 0x4 - core index']
  #allocation1 [shape = 'u32[72,128]{1,0:T(1,128)}', space=vmem, size = 0x9000, scoped, tag = 'internal scratch']
  %s0 = inlined_call_operand.vmem [shape: f32[2,7,768], index: 0, kind: input, shape index: {}]
  %s1 = inlined_call_operand.vmem [shape: f32[1,7,768], index: 1, kind: input, shape index: {}]
  %s2 = inlined_call_operand.vmem [shape: f32[1,7,768], index: 2, kind: input, shape index: {}]
  %s3 = inlined_call_operand.vmem [shape: f32[2,7,768], index: 3, kind: output, shape index: {}]
  %s4 = sld [smem:[#allocation0]]
  $region22: #{_lambda_.13} parent=0
    _
  %s6 = ssub.s32 1, %s4
  %s7 = scalar_select 0, %s6, %s4
  // Predicated region
  $region2: #{_lambda_.13} parent=0 // pred_check
    _
  $region3: #{_lambda_.13} parent=0 // pred_check_branch
    %9 = sbr.rel (0) target = $region5
  $region4: #{_lambda_.13} parent=0 // pred_region
    _
  $region5: #{_lambda_.13} parent=0 // pred_fallthru
    _
  // Predicated region
  $region6: #{_lambda_.13} parent=0 // pred_check
    _
  $region7: #{_lambda_.13} parent=0 // pred_check_branch
    %11 = sbr.rel (0) target = $region9
  $region8: #{_lambda_.13} parent=0 // pred_region
    _
  $region9: #{_lambda_.13} parent=0 // pred_fallthru
    _
  // Predicated region
  $region10: #{_lambda_.13} parent=0 // pred_check
    _
  $region11: #{_lambda_.13} parent=0 // pred_check_branch
    %13 = sbr.rel (0) target = $region13
  $region12: #{_lambda_.13} parent=0 // pred_region
    _
  $region13: #{_lambda_.13} parent=0 // pred_fallthru
    _
  %v14 = vld [vmem:[%s0] sm:$0x7f]
  %v15 = vld [vmem:[%s0 + $0x8] sm:$0x7f]
  %v16 = vld [vmem:[%s0 + $0x10] sm:$0x7f]
  %v17 = vld [vmem:[%s0 + $0x18] sm:$0x7f]
  %v18 = vld [vmem:[%s0 + $0x20] sm:$0x7f]
  %v19 = vld [vmem:[%s0 + $0x28] sm:$0x7f]
  %v20 = vld [vmem:[%s0 + $0x30] sm:$0x7f]
  %v21 = vld [vmem:[%s0 + $0x38] sm:$0x7f]
  %v22 = vld [vmem:[%s0 + $0x40] sm:$0x7f]
  %v23 = vld [vmem:[%s0 + $0x48] sm:$0x7f]
  %v24 = vld [vmem:[%s0 + $0x50] sm:$0x7f]
  %v25 = vld [vmem:[%s0 + $0x58] sm:$0x7f]
  %v26 = vlaneseq
  %v27 = vshrl.u32 %v26, 7
  %vm28 = vcmp.ge.s32.totalorder %v27, 2
  %vm29 = vcmp.lt.s32.totalorder %v27, 4
  %vm30 = vmand %vm28, %vm29
  %v31 = vsub.f32 0.0, %v14
  %v32 = vsub.f32 0.0, %v15
  %v33 = vsub.f32 0.0, %v16
  %v34 = vsub.f32 0.0, %v17
  %v35 = vsub.f32 0.0, %v18
  %v36 = vsub.f32 0.0, %v19
  %v37 = vsub.f32 0.0, %v20
  %v38 = vsub.f32 0.0, %v21
  %v39 = vsub.f32 0.0, %v22
  %v40 = vsub.f32 0.0, %v23
  %v41 = vsub.f32 0.0, %v24
  %v42 = vsub.f32 0.0, %v25
  %v43 = vmul.f32 %v31, 1.442695
  %v44 = vpow.pop %v43
  %v45 = vmul.f32 %v32, 1.442695
  %v46 = vpow.pop %v45
  %v47 = vmul.f32 %v33, 1.442695
  %v48 = vpow.pop %v47
  %v49 = vmul.f32 %v34, 1.442695
  %v50 = vpow.pop %v49
  %v51 = vmul.f32 %v35, 1.442695
  %v52 = vpow.pop %v51
  %v53 = vmul.f32 %v36, 1.442695
  %v54 = vpow.pop %v53
  %v55 = vmul.f32 %v37, 1.442695
  %v56 = vpow.pop %v55
  %v57 = vmul.f32 %v38, 1.442695
  %v58 = vpow.pop %v57
  %v59 = vmul.f32 %v39, 1.442695
  %v60 = vpow.pop %v59
  %v61 = vmul.f32 %v40, 1.442695
  %v62 = vpow.pop %v61
  %v63 = vmul.f32 %v41, 1.442695
  %v64 = vpow.pop %v63
  %v65 = vmul.f32 %v42, 1.442695
  %v66 = vpow.pop %v65
  %v67 = vadd.f32 %v44, 1.0
  %v68 = vadd.f32 %v46, 1.0
  %v69 = vadd.f32 %v48, 1.0
  %v70 = vadd.f32 %v50, 1.0
  %v71 = vadd.f32 %v52, 1.0
  %v72 = vadd.f32 %v54, 1.0
  %v73 = vadd.f32 %v56, 1.0
  %v74 = vadd.f32 %v58, 1.0
  %v75 = vadd.f32 %v60, 1.0
  %v76 = vadd.f32 %v62, 1.0
  %v77 = vadd.f32 %v64, 1.0
  %v78 = vadd.f32 %v66, 1.0
  %v79 = vrcp.pop %v67
  %v80 = vmul.f32 %v67, %v79
  %v81 = vsub.f32 1.0, %v80
  %v82 = vmul.f32 %v79, %v81
  %v83 = vadd.f32 %v79, %v82
  %vm84 = vweird.f32 %v67
  %vm85 = vweird.f32 %v79
  %vm86 = vmor %vm84, %vm85
  %v87 = vsel %vm86, %v79, %v83
  %v88 = vand.u32 2147483647, %v67
  %vm89 = vcmp.eq.f32.partialorder %v88, 8.507059e+37
  %v90 = vand.u32 %v67, 2147483648
  %v91 = vor.u32 1.1754944e-38, %v90
  %v92 = vsel %vm89, %v91, %v87
  %v93 = vmul.f32 1.0, %v92
  %v94 = vrcp.pop %v68
  %v95 = vmul.f32 %v68, %v94
  %v96 = vsub.f32 1.0, %v95
  %v97 = vmul.f32 %v94, %v96
  %v98 = vadd.f32 %v94, %v97
  %vm99 = vweird.f32 %v68
  %vm100 = vweird.f32 %v94
  %vm101 = vmor %vm99, %vm100
  %v102 = vsel %vm101, %v94, %v98
  %v103 = vand.u32 2147483647, %v68
  %vm104 = vcmp.eq.f32.partialorder %v103, 8.507059e+37
  %v105 = vand.u32 %v68, 2147483648
  %v106 = vor.u32 1.1754944e-38, %v105
  %v107 = vsel %vm104, %v106, %v102
  %v108 = vmul.f32 1.0, %v107
  %v109 = vrcp.pop %v69
  %v110 = vmul.f32 %v69, %v109
  %v111 = vsub.f32 1.0, %v110
  %v112 = vmul.f32 %v109, %v111
  %v113 = vadd.f32 %v109, %v112
  %vm114 = vweird.f32 %v69
  %vm115 = vweird.f32 %v109
  %vm116 = vmor %vm114, %vm115
  %v117 = vsel %vm116, %v109, %v113
  %v118 = vand.u32 2147483647, %v69
  %vm119 = vcmp.eq.f32.partialorder %v118, 8.507059e+37
  %v120 = vand.u32 %v69, 2147483648
  %v121 = vor.u32 1.1754944e-38, %v120
  %v122 = vsel %vm119, %v121, %v117
  %v123 = vmul.f32 1.0, %v122
  %v124 = vrcp.pop %v70
  %v125 = vmul.f32 %v70, %v124
  %v126 = vsub.f32 1.0, %v125
  %v127 = vmul.f32 %v124, %v126
  %v128 = vadd.f32 %v124, %v127
  %vm129 = vweird.f32 %v70
  %vm130 = vweird.f32 %v124
  %vm131 = vmor %vm129, %vm130
  %v132 = vsel %vm131, %v124, %v128
  %v133 = vand.u32 2147483647, %v70
  %vm134 = vcmp.eq.f32.partialorder %v133, 8.507059e+37
  %v135 = vand.u32 %v70, 2147483648
  %v136 = vor.u32 1.1754944e-38, %v135
  %v137 = vsel %vm134, %v136, %v132
  %v138 = vmul.f32 1.0, %v137
  %v139 = vrcp.pop %v71
  %v140 = vmul.f32 %v71, %v139
  %v141 = vsub.f32 1.0, %v140
  %v142 = vmul.f32 %v139, %v141
  %v143 = vadd.f32 %v139, %v142
  %vm144 = vweird.f32 %v71
  %vm145 = vweird.f32 %v139
  %vm146 = vmor %vm144, %vm145
  %v147 = vsel %vm146, %v139, %v143
  %v148 = vand.u32 2147483647, %v71
  %vm149 = vcmp.eq.f32.partialorder %v148, 8.507059e+37
  %v150 = vand.u32 %v71, 2147483648
  %v151 = vor.u32 1.1754944e-38, %v150
  %v152 = vsel %vm149, %v151, %v147
  %v153 = vmul.f32 1.0, %v152
  %v154 = vrcp.pop %v72
  %v155 = vmul.f32 %v72, %v154
  %v156 = vsub.f32 1.0, %v155
  %v157 = vmul.f32 %v154, %v156
  %v158 = vadd.f32 %v154, %v157
  %vm159 = vweird.f32 %v72
  %vm160 = vweird.f32 %v154
  %vm161 = vmor %vm159, %vm160
  %v162 = vsel %vm161, %v154, %v158
  %v163 = vand.u32 2147483647, %v72
  %vm164 = vcmp.eq.f32.partialorder %v163, 8.507059e+37
  %v165 = vand.u32 %v72, 2147483648
  %v166 = vor.u32 1.1754944e-38, %v165
  %v167 = vsel %vm164, %v166, %v162
  %v168 = vmul.f32 1.0, %v167
  %v169 = vrcp.pop %v73
  %v170 = vmul.f32 %v73, %v169
  %v171 = vsub.f32 1.0, %v170
  %v172 = vmul.f32 %v169, %v171
  %v173 = vadd.f32 %v169, %v172
  %vm174 = vweird.f32 %v73
  %vm175 = vweird.f32 %v169
  %vm176 = vmor %vm174, %vm175
  %v177 = vsel %vm176, %v169, %v173
  %v178 = vand.u32 2147483647, %v73
  %vm179 = vcmp.eq.f32.partialorder %v178, 8.507059e+37
  %v180 = vand.u32 %v73, 2147483648
  %v181 = vor.u32 1.1754944e-38, %v180
  %v182 = vsel %vm179, %v181, %v177
  %v183 = vmul.f32 1.0, %v182
  %v184 = vrcp.pop %v74
  %v185 = vmul.f32 %v74, %v184
  %v186 = vsub.f32 1.0, %v185
  %v187 = vmul.f32 %v184, %v186
  %v188 = vadd.f32 %v184, %v187
  %vm189 = vweird.f32 %v74
  %vm190 = vweird.f32 %v184
  %vm191 = vmor %vm189, %vm190
  %v192 = vsel %vm191, %v184, %v188
  %v193 = vand.u32 2147483647, %v74
  %vm194 = vcmp.eq.f32.partialorder %v193, 8.507059e+37
  %v195 = vand.u32 %v74, 2147483648
  %v196 = vor.u32 1.1754944e-38, %v195
  %v197 = vsel %vm194, %v196, %v192
  %v198 = vmul.f32 1.0, %v197
  %v199 = vrcp.pop %v75
  %v200 = vmul.f32 %v75, %v199
  %v201 = vsub.f32 1.0, %v200
  %v202 = vmul.f32 %v199, %v201
  %v203 = vadd.f32 %v199, %v202
  %vm204 = vweird.f32 %v75
  %vm205 = vweird.f32 %v199
  %vm206 = vmor %vm204, %vm205
  %v207 = vsel %vm206, %v199, %v203
  %v208 = vand.u32 2147483647, %v75
  %vm209 = vcmp.eq.f32.partialorder %v208, 8.507059e+37
  %v210 = vand.u32 %v75, 2147483648
  %v211 = vor.u32 1.1754944e-38, %v210
  %v212 = vsel %vm209, %v211, %v207
  %v213 = vmul.f32 1.0, %v212
  %v214 = vrcp.pop %v76
  %v215 = vmul.f32 %v76, %v214
  %v216 = vsub.f32 1.0, %v215
  %v217 = vmul.f32 %v214, %v216
  %v218 = vadd.f32 %v214, %v217
  %vm219 = vweird.f32 %v76
  %vm220 = vweird.f32 %v214
  %vm221 = vmor %vm219, %vm220
  %v222 = vsel %vm221, %v214, %v218
  %v223 = vand.u32 2147483647, %v76
  %vm224 = vcmp.eq.f32.partialorder %v223, 8.507059e+37
  %v225 = vand.u32 %v76, 2147483648
  %v226 = vor.u32 1.1754944e-38, %v225
  %v227 = vsel %vm224, %v226, %v222
  %v228 = vmul.f32 1.0, %v227
  %v229 = vrcp.pop %v77
  %v230 = vmul.f32 %v77, %v229
  %v231 = vsub.f32 1.0, %v230
  %v232 = vmul.f32 %v229, %v231
  %v233 = vadd.f32 %v229, %v232
  %vm234 = vweird.f32 %v77
  %vm235 = vweird.f32 %v229
  %vm236 = vmor %vm234, %vm235
  %v237 = vsel %vm236, %v229, %v233
  %v238 = vand.u32 2147483647, %v77
  %vm239 = vcmp.eq.f32.partialorder %v238, 8.507059e+37
  %v240 = vand.u32 %v77, 2147483648
  %v241 = vor.u32 1.1754944e-38, %v240
  %v242 = vsel %vm239, %v241, %v237
  %v243 = vmul.f32 1.0, %v242
  %v244 = vrcp.pop %v78
  %v245 = vmul.f32 %v78, %v244
  %v246 = vsub.f32 1.0, %v245
  %v247 = vmul.f32 %v244, %v246
  %v248 = vadd.f32 %v244, %v247
  %vm249 = vweird.f32 %v78
  %vm250 = vweird.f32 %v244
  %vm251 = vmor %vm249, %vm250
  %v252 = vsel %vm251, %v244, %v248
  %v253 = vand.u32 2147483647, %v78
  %vm254 = vcmp.eq.f32.partialorder %v253, 8.507059e+37
  %v255 = vand.u32 %v78, 2147483648
  %v256 = vor.u32 1.1754944e-38, %v255
  %v257 = vsel %vm254, %v256, %v252
  %v258 = vmul.f32 1.0, %v257
  %v259 = vmul.f32 %v14, 1.442695
  %v260 = vpow.pop %v259
  %v261 = vmul.f32 %v15, 1.442695
  %v262 = vpow.pop %v261
  %v263 = vmul.f32 %v16, 1.442695
  %v264 = vpow.pop %v263
  %v265 = vmul.f32 %v17, 1.442695
  %v266 = vpow.pop %v265
  %v267 = vmul.f32 %v18, 1.442695
  %v268 = vpow.pop %v267
  %v269 = vmul.f32 %v19, 1.442695
  %v270 = vpow.pop %v269
  %v271 = vmul.f32 %v20, 1.442695
  %v272 = vpow.pop %v271
  %v273 = vmul.f32 %v21, 1.442695
  %v274 = vpow.pop %v273
  %v275 = vmul.f32 %v22, 1.442695
  %v276 = vpow.pop %v275
  %v277 = vmul.f32 %v23, 1.442695
  %v278 = vpow.pop %v277
  %v279 = vmul.f32 %v24, 1.442695
  %v280 = vpow.pop %v279
  %v281 = vmul.f32 %v25, 1.442695
  %v282 = vpow.pop %v281
  %v283 = vsel %vm30, %v260, %v93
  %v284 = vsel %vm30, %v262, %v108
  %v285 = vsel %vm30, %v264, %v123
  %v286 = vsel %vm30, %v266, %v138
  %v287 = vsel %vm30, %v268, %v153
  %v288 = vsel %vm30, %v270, %v168
  %v289 = vsel %vm30, %v272, %v183
  %v290 = vsel %vm30, %v274, %v198
  %v291 = vsel %vm30, %v276, %v213
  %v292 = vsel %vm30, %v278, %v228
  %v293 = vsel %vm30, %v280, %v243
  %v294 = vsel %vm30, %v282, %v258
  %v295 = vld [vmem:[%s1] sm:$0x7f]
  %v296 = vld [vmem:[%s1 + $0x8] sm:$0x7f]
  %v297 = vld [vmem:[%s1 + $0x10] sm:$0x7f]
  %v298 = vld [vmem:[%s1 + $0x18] sm:$0x7f]
  %v299 = vld [vmem:[%s1 + $0x20] sm:$0x7f]
  %v300 = vld [vmem:[%s1 + $0x28] sm:$0x7f]
  %v301 = vmul.f32 %v283, %v295
  %v302 = vmul.f32 %v284, %v296
  %v303 = vmul.f32 %v285, %v297
  %v304 = vmul.f32 %v286, %v298
  %v305 = vmul.f32 %v287, %v299
  %v306 = vmul.f32 %v288, %v300
  %v307 = vmul.f32 %v289, %v295
  %v308 = vmul.f32 %v290, %v296
  %v309 = vmul.f32 %v291, %v297
  %v310 = vmul.f32 %v292, %v298
  %v311 = vmul.f32 %v293, %v299
  %v312 = vmul.f32 %v294, %v300
  %v313 = vld [vmem:[%s2] sm:$0x7f]
  %v314 = vld [vmem:[%s2 + $0x8] sm:$0x7f]
  %v315 = vld [vmem:[%s2 + $0x10] sm:$0x7f]
  %v316 = vld [vmem:[%s2 + $0x18] sm:$0x7f]
  %v317 = vld [vmem:[%s2 + $0x20] sm:$0x7f]
  %v318 = vld [vmem:[%s2 + $0x28] sm:$0x7f]
  %v319 = vadd.f32 %v301, %v313
  %v320 = vadd.f32 %v302, %v314
  %v321 = vadd.f32 %v303, %v315
  %v322 = vadd.f32 %v304, %v316
  %v323 = vadd.f32 %v305, %v317
  %v324 = vadd.f32 %v306, %v318
  %v325 = vadd.f32 %v307, %v313
  %v326 = vadd.f32 %v308, %v314
  %v327 = vadd.f32 %v309, %v315
  %v328 = vadd.f32 %v310, %v316
  %v329 = vadd.f32 %v311, %v317
  %v330 = vadd.f32 %v312, %v318
  %331 = vst [vmem:[%s3] sm:$0x7f] %v319
  %332 = vst [vmem:[%s3 + $0x8] sm:$0x7f] %v320
  %333 = vst [vmem:[%s3 + $0x10] sm:$0x7f] %v321
  %334 = vst [vmem:[%s3 + $0x18] sm:$0x7f] %v322
  %335 = vst [vmem:[%s3 + $0x20] sm:$0x7f] %v323
  %336 = vst [vmem:[%s3 + $0x28] sm:$0x7f] %v324
  %337 = vst [vmem:[%s3 + $0x30] sm:$0x7f] %v325
  %338 = vst [vmem:[%s3 + $0x38] sm:$0x7f] %v326
  %339 = vst [vmem:[%s3 + $0x40] sm:$0x7f] %v327
  %340 = vst [vmem:[%s3 + $0x48] sm:$0x7f] %v328
  %341 = vst [vmem:[%s3 + $0x50] sm:$0x7f] %v329
  %342 = vst [vmem:[%s3 + $0x58] sm:$0x7f] %v330
  // Predicated region
  $region14: #{_lambda_.13} parent=0 // pred_check
    _
  $region15: #{_lambda_.13} parent=0 // pred_check_branch
    %344 = sbr.rel (0) target = $region17
  $region16: #{_lambda_.13} parent=0 // pred_region
    _
  $region17: #{_lambda_.13} parent=0 // pred_fallthru
    _
  // Predicated region
  $region18: #{_lambda_.13} parent=0 // pred_check
    _
  $region19: #{_lambda_.13} parent=0 // pred_check_branch
    %346 = sbr.rel (0) target = $region21
  $region20: #{_lambda_.13} parent=0 // pred_region
    _
  $region21: #{_lambda_.13} parent=0 // pred_fallthru
    _

</llo_original>
